<compile_context>
chip_gen: v7x
topology: tpu7x:2x2x1
jax: 0.10.0
libtpu: 0.0.40
codegen_flags: <defaults>
</compile_context>

<pallas_src>
import jax
import jax.numpy as jnp
import numpy as np
from jax import lax
from jax.experimental import pallas as pl
from jax.experimental.pallas import tpu as pltpu


def make_params(key, sDim, xDim, yDim, attDim):
    """DecoderUnit parameters, stored as (in_features, out_features) matrices."""
    emdDim = attDim
    ks = jax.random.split(key, 14)
    n = lambda k, shape, std: (std * jax.random.normal(k, shape)).astype(jnp.float32)
    return dict(
        wx=n(ks[0], (xDim, attDim), 0.01),   bx=n(ks[1], (1, attDim), 0.05),
        ws=n(ks[2], (sDim, attDim), 0.01),   bs=n(ks[3], (1, attDim), 0.05),
        ww=n(ks[4], (1, attDim), 0.01),      bw=n(ks[5], (1, 1), 0.05),
        emb=n(ks[6], (yDim + 1, emdDim), 0.01),
        wih_y=n(ks[7], (emdDim, 3 * sDim), 0.05),   # GRU W_ih rows acting on yProj
        wih_c=n(ks[8], (xDim, 3 * sDim), 0.05),     # GRU W_ih rows acting on context
        bih=n(ks[9], (1, 3 * sDim), 0.05),
        whh=n(ks[10], (sDim, 3 * sDim), 0.05),
        bhh=n(ks[11], (1, 3 * sDim), 0.05),
        wfc=n(ks[12], (sDim, yDim), 0.01),
        bfc=jnp.zeros((1, yDim), jnp.float32),
    )


def attention_recognition_head_forward_train(x, targets, lengths, params, *,
                                             num_classes, sDim, attDim,
                                             max_len_labels):
    """Pallas implementation of AttentionRecognitionHead.forward_train.

    x:       (B, T, in_planes) encoder features
    targets: (B, >= max(lengths)-1) int labels (teacher forcing)
    lengths: python list of ints; decode loop runs max(lengths) steps
    returns (padded_outputs (B, max_len_labels, num_classes), None)
    """
    B, T, X = x.shape
    S, A, C = sDim, attDim, num_classes
    E = attDim                      # emdDim == attDim in the module
    V1 = num_classes + 1
    n_steps = int(max(lengths))

    if not (S == A == X == E):
        # The single packed weight slab needs a common contraction dim; for
        # unequal dims pack one slab per row-count instead.
        raise ValueError("packed-slab path assumes sDim == attDim == in_planes")

    # ---- pack parameters: one bf16 weight slab + one f32 bias/attention row ----
    slab = jnp.concatenate(
        [params['ws'], params['whh'],      # fused state weight: s @ [ws | whh]
         params['wih_c'],                  # GRU input weight, context half
         params['wih_y'],                  # GRU input weight, embedding half
         params['wx'],                     # attention xEmbed
         params['wfc']], axis=1).astype(jnp.bfloat16)       # (S, 2A + 9S + C)
    misc = jnp.concatenate(
        [params['bx'],
         params['bs'], params['bhh'],      # bias of the fused state matmul
         params['bih'],
         params['bfc'],
         params['ww']], axis=1).astype(jnp.float32)         # (1, 3A + 6S + C)
    # wEmbed bias (bw) is intentionally omitted: a constant added to every
    # attention logit cancels exactly in the softmax.

    emb_b = params['emb'].astype(jnp.bfloat16)              # (V1, E)
    x_b = x.astype(jnp.bfloat16)                            # bf16 MXU operands

    # y_prev per step: SOS (= num_classes) at step 0, then teacher-forced labels.
    # One-hot is wrapper glue that turns the embedding gather into an MXU matmul.
    y_ids = jnp.concatenate(
        [jnp.full((B, 1), num_classes, jnp.int32),
         targets.astype(jnp.int32)[:, :n_steps - 1]], axis=1)   # (B, n_steps)
    y1h = jax.nn.one_hot(y_ids.T, V1, dtype=jnp.float32)        # (n_steps, B, V1)

    # static column offsets inside the packed buffers
    o1 = A + 3 * S          # end of fused state weight
    o2 = o1 + 3 * S         # end of wih_c
    o3 = o2 + 3 * S         # end of wih_y
    o4 = o3 + A             # end of wx
    o5 = o4 + C             # end of wfc
    m1 = A                  # end of bx
    m2 = m1 + A + 3 * S     # end of [bs | bhh]
    m3 = m2 + 3 * S         # end of bih
    m4 = m3 + C             # end of bfc
    m5 = m4 + A             # end of ww

    def kernel(x_ref, y1h_ref, slab_ref, emb_ref, misc_ref, out_ref):
        xb = x_ref[...]                                     # (B, T, X) bf16
        # hoist all packed-parameter slices out of the decode loop (one-time)
        w_state = slab_ref[:, 0:o1]                         # (S, A+3S) bf16
        w_ih_c = slab_ref[:, o1:o2]                         # (X, 3S)
        w_ih_y = slab_ref[:, o2:o3]                         # (E, 3S)
        w_x = slab_ref[:, o3:o4]                            # (X, A)
        w_fc = slab_ref[:, o4:o5]                           # (S, C)
        b_x = misc_ref[:, 0:m1]                             # (1, A)
        b_state = misc_ref[:, m1:m2]                        # (1, A+3S)
        b_ih = misc_ref[:, m2:m3]                           # (1, 3S)
        b_fc = misc_ref[:, m3:m4]                           # (1, C)
        w_att = misc_ref[:, m4:m5]                          # (1, A)  wEmbed weight

        # ---- loop-invariant work, computed once per sequence ----
        xProj = (jnp.dot(xb.reshape(B * T, X), w_x,
                         preferred_element_type=jnp.float32)
                 .reshape(B, T, A) + b_x)                   # (B, T, A) f32
        # tgt_embedding folded into the GRU input projection:
        #   onehot @ (emb @ W_ih_y)  ==  (onehot @ emb) @ W_ih_y
        emb_gi = jnp.dot(emb_ref[...], w_ih_y,
                         preferred_element_type=jnp.float32)   # (V1, 3S) f32

        def step(i, h):
            hb = h.astype(jnp.bfloat16)
            # fused sEmbed + GRU hidden projection: one 128-lane matmul
            st = jnp.dot(hb, w_state,
                         preferred_element_type=jnp.float32) + b_state   # (B, A+3S)
            sProj, gh = st[:, :A], st[:, A:]
            # AttentionUnit scores + softmax over T (f32)
            sumTanh = jnp.tanh(xProj + sProj[:, None, :])                # (B, T, A)
            v = jnp.sum(sumTanh * w_att, axis=-1)                        # (B, T)
            m = jnp.max(v, axis=1, keepdims=True)
            e = jnp.exp(v - m)
            alpha = e / jnp.sum(e, axis=1, keepdims=True)
            # context = bmm(alpha, x) on the MXU (batched over B)
            ctx = jnp.einsum('bqt,btx->bqx',
                             alpha.astype(jnp.bfloat16)[:, None, :], xb,
                             preferred_element_type=jnp.float32)[:, 0, :]  # (B, X)
            # GRU input projection without the lane concat:
            #   [yProj | ctx] @ W_ih == onehot @ emb_gi + ctx @ W_ih_c
            gi = (jnp.dot(y1h_ref[i], emb_gi, preferred_element_type=jnp.float32)
                  + jnp.dot(ctx.astype(jnp.bfloat16), w_ih_c,
                            preferred_element_type=jnp.float32)
                  + b_ih)                                                  # (B, 3S)
            # single-step GRU, PyTorch gate order (r, z, n)
            r = jax.nn.sigmoid(gi[:, :S] + gh[:, :S])
            z = jax.nn.sigmoid(gi[:, S:2 * S] + gh[:, S:2 * S])
            n = jnp.tanh(gi[:, 2 * S:] + r * gh[:, 2 * S:])
            h_new = (1.0 - z) * n + z * h
            out_ref[i] = jnp.dot(h_new.astype(jnp.bfloat16), w_fc,
                                 preferred_element_type=jnp.float32) + b_fc
            return h_new

        lax.fori_loop(0, n_steps, step, jnp.zeros((B, S), jnp.float32),
                      unroll=True)

    vmem = pl.BlockSpec(memory_space=pltpu.MemorySpace.VMEM)
    out_steps = pl.pallas_call(
        kernel,
        out_shape=jax.ShapeDtypeStruct((n_steps, B, C), jnp.float32),
        in_specs=[vmem] * 5,
        out_specs=vmem,
    )(x_b, y1h, slab, emb_b, misc)

    outputs = jnp.transpose(out_steps, (1, 0, 2))            # (B, n_steps, C)
    padded = jnp.zeros((B, max_len_labels, C), jnp.float32)
    padded = padded.at[:, :n_steps, :].set(outputs)
    return padded, None


def forward_train_ref(x, targets, lengths, params, *, num_classes, sDim,
                      max_len_labels, mm_dtype=jnp.float32):
    """Pure-JAX reference for AttentionRecognitionHead.forward_train.

    mm_dtype=float32  -> faithful PyTorch math.
    mm_dtype=bfloat16 -> mirrors the kernel's MXU operand precision (tight check).
    """
    B, T, X = x.shape
    S, C = sDim, num_classes
    f32 = jnp.float32
    cast = lambda a: a.astype(mm_dtype)
    dot32 = lambda a, b: jnp.dot(cast(a), cast(b), preferred_element_type=f32)
    wih = jnp.concatenate([params['wih_y'], params['wih_c']], axis=0)
    n_steps = int(max(lengths))

    h = jnp.zeros((B, S), f32)
    outs = []
    for i in range(n_steps):
        y_prev = (jnp.full((B,), num_classes, jnp.int32) if i == 0
                  else targets[:, i - 1].astype(jnp.int32))
        # AttentionUnit
        xProj = dot32(x.reshape(-1, X), params['wx']).reshape(B, T, -1) + params['bx']
        sProj = dot32(h, params['ws']) + params['bs']
        sumTanh = jnp.tanh(xProj + sProj[:, None, :])
        v = jnp.sum(sumTanh * params['ww'], axis=-1) + params['bw'][0, 0]
        alpha = jax.nn.softmax(v, axis=1)
        # DecoderUnit
        context = jnp.einsum('bt,btx->bx', cast(alpha), cast(x),
                             preferred_element_type=f32)
        yProj = params['emb'].astype(mm_dtype).astype(f32)[y_prev]
        gru_in = jnp.concatenate([yProj, context], axis=1)
        gi = dot32(gru_in, wih) + params['bih']
        gh = dot32(h, params['whh']) + params['bhh']
        r = jax.nn.sigmoid(gi[:, :S] + gh[:, :S])
        z = jax.nn.sigmoid(gi[:, S:2 * S] + gh[:, S:2 * S])
        n = jnp.tanh(gi[:, 2 * S:] + r * gh[:, 2 * S:])
        h = (1.0 - z) * n + z * h
        outs.append(dot32(h, params['wfc']) + params['bfc'])
    outputs = jnp.stack(outs, axis=1)
    padded = jnp.zeros((B, max_len_labels, C), f32).at[:, :n_steps, :].set(outputs)
    return padded, None


if __name__ == "__main__":
    key = jax.random.PRNGKey(0)
    B, T = 2, 8                    # batch, encoder time steps
    num_classes = 16
    in_planes = 32                 # xDim
    sDim = 32
    attDim = 32
    max_len_labels = 10

    k_p, k_x, k_t = jax.random.split(key, 3)
    params = make_params(k_p, sDim, in_planes, num_classes, attDim)
    x = jax.random.normal(k_x, (B, T, in_planes), jnp.float32)
    targets = jax.random.randint(k_t, (B, max_len_labels), 0, num_classes, jnp.int32)
    lengths = [8, 6]               # decode loop runs max(lengths) = 8 steps

    out, _ = attention_recognition_head_forward_train(
        x, targets, lengths, params, num_classes=num_classes, sDim=sDim,
        attDim=attDim, max_len_labels=max_len_labels)
    out = jax.block_until_ready(out)
    assert out.shape == (B, max_len_labels, num_classes)

    # Tight check: identical math at the kernel's bf16 MXU operand precision.
    ref_bf16, _ = forward_train_ref(x, targets, lengths, params,
                                    num_classes=num_classes, sDim=sDim,
                                    max_len_labels=max_len_labels,
                                    mm_dtype=jnp.bfloat16)
    assert np.allclose(np.asarray(out), np.asarray(ref_bf16),
                       atol=2e-3, rtol=2e-3), \
        float(np.max(np.abs(np.asarray(out) - np.asarray(ref_bf16))))

    # Loose check: faithful f32 (PyTorch-equivalent) math bounds the bf16 error.
    ref_f32, _ = forward_train_ref(x, targets, lengths, params,
                                   num_classes=num_classes, sDim=sDim,
                                   max_len_labels=max_len_labels,
                                   mm_dtype=jnp.float32)
    assert np.allclose(np.asarray(out), np.asarray(ref_f32),
                       atol=1e-2, rtol=1e-2), \
        float(np.max(np.abs(np.asarray(out) - np.asarray(ref_f32))))

    print("KERNEL_OK")
</pallas_src>

<mosaic_0001>
module attributes {stable_mosaic.version = 11 : i64} {
  func.func @kernel(%arg0: memref<2x8x32xbf16, #tpu.memory_space<vmem>>, %arg1: memref<8x2x17xf32, #tpu.memory_space<vmem>>, %arg2: memref<32x368xbf16, #tpu.memory_space<vmem>>, %arg3: memref<17x32xbf16, #tpu.memory_space<vmem>>, %arg4: memref<1x304xf32, #tpu.memory_space<vmem>>, %arg5: memref<8x2x16xf32, #tpu.memory_space<vmem>>) attributes {dimension_semantics = [], scalar_prefetch = 0 : i64, scratch_operands = 0 : i64, tpu.core_type = #tpu.core_type<tc>} {
    %c0 = arith.constant 0 : index
    %c0_0 = arith.constant 0 : index
    %c0_1 = arith.constant 0 : index
    %0 = vector.load %arg0[%c0, %c0_0, %c0_1] : memref<2x8x32xbf16, #tpu.memory_space<vmem>>, vector<2x8x32xbf16>
    %c0_2 = arith.constant 0 : index
    %c0_3 = arith.constant 0 : index
    %1 = vector.load %arg2[%c0_2, %c0_3] : memref<32x368xbf16, #tpu.memory_space<vmem>>, vector<32x128xbf16>
    %c0_4 = arith.constant 0 : index
    %c128 = arith.constant 128 : index
    %2 = vector.load %arg2[%c0_4, %c128] : memref<32x368xbf16, #tpu.memory_space<vmem>>, vector<32x96xbf16>
    %c0_5 = arith.constant 0 : index
    %c224 = arith.constant 224 : index
    %3 = vector.load %arg2[%c0_5, %c224] : memref<32x368xbf16, #tpu.memory_space<vmem>>, vector<32x96xbf16>
    %c0_6 = arith.constant 0 : index
    %c320 = arith.constant 320 : index
    %4 = vector.load %arg2[%c0_6, %c320] : memref<32x368xbf16, #tpu.memory_space<vmem>>, vector<32x32xbf16>
    %c0_7 = arith.constant 0 : index
    %c352 = arith.constant 352 : index
    %5 = vector.load %arg2[%c0_7, %c352] : memref<32x368xbf16, #tpu.memory_space<vmem>>, vector<32x16xbf16>
    %c0_8 = arith.constant 0 : index
    %c0_9 = arith.constant 0 : index
    %6 = vector.load %arg4[%c0_8, %c0_9] : memref<1x304xf32, #tpu.memory_space<vmem>>, vector<1x32xf32>
    %c0_10 = arith.constant 0 : index
    %c32 = arith.constant 32 : index
    %7 = vector.load %arg4[%c0_10, %c32] : memref<1x304xf32, #tpu.memory_space<vmem>>, vector<1x128xf32>
    %c0_11 = arith.constant 0 : index
    %c160 = arith.constant 160 : index
    %8 = vector.load %arg4[%c0_11, %c160] : memref<1x304xf32, #tpu.memory_space<vmem>>, vector<1x96xf32>
    %c0_12 = arith.constant 0 : index
    %c256 = arith.constant 256 : index
    %9 = vector.load %arg4[%c0_12, %c256] : memref<1x304xf32, #tpu.memory_space<vmem>>, vector<1x16xf32>
    %c0_13 = arith.constant 0 : index
    %c272 = arith.constant 272 : index
    %10 = vector.load %arg4[%c0_13, %c272] : memref<1x304xf32, #tpu.memory_space<vmem>>, vector<1x32xf32>
    %11 = vector.shape_cast %0 : vector<2x8x32xbf16> to vector<16x32xbf16>
    %cst = arith.constant dense<0.000000e+00> : vector<16x32xf32>
    %12 = tpu.matmul %11, %4, %cst {dimension_numbers = #tpu.dot_dimension_numbers<[1], [0], [0], [1], [0, 0, 1, 1], [], []>} : vector<16x32xbf16>, vector<32x32xbf16>, vector<16x32xf32> -> vector<16x32xf32>
    %13 = vector.shape_cast %12 : vector<16x32xf32> to vector<2x8x32xf32>
    %14 = vector.shape_cast %6 : vector<1x32xf32> to vector<1x1x32xf32>
    %15 = vector.broadcast %14 : vector<1x1x32xf32> to vector<2x8x32xf32>
    %16 = arith.addf %13, %15 : vector<2x8x32xf32>
    %c0_14 = arith.constant 0 : index
    %c0_15 = arith.constant 0 : index
    %17 = vector.load %arg3[%c0_14, %c0_15] : memref<17x32xbf16, #tpu.memory_space<vmem>>, vector<17x32xbf16>
    %cst_16 = arith.constant dense<0.000000e+00> : vector<17x96xf32>
    %18 = tpu.matmul %17, %3, %cst_16 {dimension_numbers = #tpu.dot_dimension_numbers<[1], [0], [0], [1], [0, 0, 1, 1], [], []>} : vector<17x32xbf16>, vector<32x96xbf16>, vector<17x96xf32> -> vector<17x96xf32>
    %cst_17 = arith.constant 0.000000e+00 : f32
    %19 = vector.broadcast %cst_17 : f32 to vector<2x32xf32>
    %c0_i32 = arith.constant 0 : i32
    %20 = arith.truncf %19 : vector<2x32xf32> to vector<2x32xbf16>
    %cst_18 = arith.constant dense<0.000000e+00> : vector<2x128xf32>
    %21 = tpu.matmul %20, %1, %cst_18 {dimension_numbers = #tpu.dot_dimension_numbers<[1], [0], [0], [1], [0, 0, 1, 1], [], []>} : vector<2x32xbf16>, vector<32x128xbf16>, vector<2x128xf32> -> vector<2x128xf32>
    %22 = vector.broadcast %7 : vector<1x128xf32> to vector<2x128xf32>
    %23 = arith.addf %21, %22 : vector<2x128xf32>
    %24 = vector.extract_strided_slice %23 {offsets = [0, 0], sizes = [2, 32], strides = [1, 1]} : vector<2x128xf32> to vector<2x32xf32>
    %25 = vector.extract_strided_slice %23 {offsets = [0, 32], sizes = [2, 96], strides = [1, 1]} : vector<2x128xf32> to vector<2x96xf32>
    %26 = vector.shape_cast %24 : vector<2x32xf32> to vector<2x1x32xf32>
    %27 = vector.broadcast %26 : vector<2x1x32xf32> to vector<2x8x32xf32>
    %28 = arith.addf %16, %27 : vector<2x8x32xf32>
    %29 = math.tanh %28 : vector<2x8x32xf32>
    %30 = vector.shape_cast %10 : vector<1x32xf32> to vector<1x1x32xf32>
    %31 = vector.broadcast %30 : vector<1x1x32xf32> to vector<2x8x32xf32>
    %32 = arith.mulf %29, %31 : vector<2x8x32xf32>
    %cst_19 = arith.constant dense<0.000000e+00> : vector<2x8xf32>
    %33 = vector.multi_reduction <add>, %32, %cst_19 [2] : vector<2x8x32xf32> to vector<2x8xf32>
    %cst_20 = arith.constant dense<0xFF800000> : vector<2xf32>
    %34 = vector.multi_reduction <maximumf>, %33, %cst_20 [1] : vector<2x8xf32> to vector<2xf32>
    %35 = vector.shape_cast %34 : vector<2xf32> to vector<2x1xf32>
    %36 = vector.broadcast %35 : vector<2x1xf32> to vector<2x8xf32>
    %37 = arith.subf %33, %36 : vector<2x8xf32>
    %38 = math.exp %37 : vector<2x8xf32>
    %cst_21 = arith.constant dense<0.000000e+00> : vector<2xf32>
    %39 = vector.multi_reduction <add>, %38, %cst_21 [1] : vector<2x8xf32> to vector<2xf32>
    %40 = vector.shape_cast %39 : vector<2xf32> to vector<2x1xf32>
    %41 = vector.broadcast %40 : vector<2x1xf32> to vector<2x8xf32>
    %42 = arith.divf %38, %41 : vector<2x8xf32>
    %43 = arith.truncf %42 : vector<2x8xf32> to vector<2x8xbf16>
    %44 = vector.shape_cast %43 : vector<2x8xbf16> to vector<2x1x8xbf16>
    "tpu.trace_start"() <{level = 10 : i32, message = "bqt,btx->bqx"}> : () -> ()
    %cst_22 = arith.constant dense<0.000000e+00> : vector<2x1x32xf32>
    %45 = tpu.matmul %44, %0, %cst_22 {dimension_numbers = #tpu.dot_dimension_numbers<[2], [1], [1], [2], [0, 0, 0, 1, 1, 2], [0], [0]>} : vector<2x1x8xbf16>, vector<2x8x32xbf16>, vector<2x1x32xf32> -> vector<2x1x32xf32>
    "tpu.trace_stop"() : () -> ()
    %46 = vector.shape_cast %45 : vector<2x1x32xf32> to vector<2x32xf32>
    %47 = arith.index_cast %c0_i32 : i32 to index
    %c0_23 = arith.constant 0 : index
    %c0_24 = arith.constant 0 : index
    %48 = vector.load %arg1[%47, %c0_23, %c0_24] : memref<8x2x17xf32, #tpu.memory_space<vmem>>, vector<1x2x17xf32>
    %49 = vector.shape_cast %48 : vector<1x2x17xf32> to vector<2x17xf32>
    %cst_25 = arith.constant dense<0.000000e+00> : vector<2x96xf32>
    %50 = tpu.matmul %49, %18, %cst_25 {dimension_numbers = #tpu.dot_dimension_numbers<[1], [0], [0], [1], [0, 0, 1, 1], [], []>} : vector<2x17xf32>, vector<17x96xf32>, vector<2x96xf32> -> vector<2x96xf32>
    %51 = arith.truncf %46 : vector<2x32xf32> to vector<2x32xbf16>
    %cst_26 = arith.constant dense<0.000000e+00> : vector<2x96xf32>
    %52 = tpu.matmul %51, %2, %cst_26 {dimension_numbers = #tpu.dot_dimension_numbers<[1], [0], [0], [1], [0, 0, 1, 1], [], []>} : vector<2x32xbf16>, vector<32x96xbf16>, vector<2x96xf32> -> vector<2x96xf32>
    %53 = arith.addf %50, %52 : vector<2x96xf32>
    %54 = vector.broadcast %8 : vector<1x96xf32> to vector<2x96xf32>
    %55 = arith.addf %53, %54 : vector<2x96xf32>
    %56 = vector.extract_strided_slice %55 {offsets = [0, 0], sizes = [2, 32], strides = [1, 1]} : vector<2x96xf32> to vector<2x32xf32>
    %57 = vector.extract_strided_slice %25 {offsets = [0, 0], sizes = [2, 32], strides = [1, 1]} : vector<2x96xf32> to vector<2x32xf32>
    %58 = arith.addf %56, %57 : vector<2x32xf32>
    %59 = arith.negf %58 : vector<2x32xf32>
    %60 = math.exp %59 : vector<2x32xf32>
    %cst_27 = arith.constant 1.000000e+00 : f32
    %61 = vector.broadcast %cst_27 : f32 to vector<2x32xf32>
    %62 = arith.addf %61, %60 : vector<2x32xf32>
    %63 = arith.divf %61, %62 : vector<2x32xf32>
    %64 = vector.extract_strided_slice %55 {offsets = [0, 32], sizes = [2, 32], strides = [1, 1]} : vector<2x96xf32> to vector<2x32xf32>
    %65 = vector.extract_strided_slice %25 {offsets = [0, 32], sizes = [2, 32], strides = [1, 1]} : vector<2x96xf32> to vector<2x32xf32>
    %66 = arith.addf %64, %65 : vector<2x32xf32>
    %67 = arith.negf %66 : vector<2x32xf32>
    %68 = math.exp %67 : vector<2x32xf32>
    %cst_28 = arith.constant 1.000000e+00 : f32
    %69 = vector.broadcast %cst_28 : f32 to vector<2x32xf32>
    %70 = arith.addf %69, %68 : vector<2x32xf32>
    %71 = arith.divf %69, %70 : vector<2x32xf32>
    %72 = vector.extract_strided_slice %55 {offsets = [0, 64], sizes = [2, 32], strides = [1, 1]} : vector<2x96xf32> to vector<2x32xf32>
    %73 = vector.extract_strided_slice %25 {offsets = [0, 64], sizes = [2, 32], strides = [1, 1]} : vector<2x96xf32> to vector<2x32xf32>
    %74 = arith.mulf %63, %73 : vector<2x32xf32>
    %75 = arith.addf %72, %74 : vector<2x32xf32>
    %76 = math.tanh %75 : vector<2x32xf32>
    %cst_29 = arith.constant 1.000000e+00 : f32
    %77 = vector.broadcast %cst_29 : f32 to vector<2x32xf32>
    %78 = arith.subf %77, %71 : vector<2x32xf32>
    %79 = arith.mulf %78, %76 : vector<2x32xf32>
    %80 = arith.mulf %71, %19 : vector<2x32xf32>
    %81 = arith.addf %79, %80 : vector<2x32xf32>
    %82 = arith.truncf %81 : vector<2x32xf32> to vector<2x32xbf16>
    %cst_30 = arith.constant dense<0.000000e+00> : vector<2x16xf32>
    %83 = tpu.matmul %82, %5, %cst_30 {dimension_numbers = #tpu.dot_dimension_numbers<[1], [0], [0], [1], [0, 0, 1, 1], [], []>} : vector<2x32xbf16>, vector<32x16xbf16>, vector<2x16xf32> -> vector<2x16xf32>
    %84 = vector.broadcast %9 : vector<1x16xf32> to vector<2x16xf32>
    %85 = arith.addf %83, %84 : vector<2x16xf32>
    %86 = arith.index_cast %c0_i32 : i32 to index
    %c0_31 = arith.constant 0 : index
    %c0_32 = arith.constant 0 : index
    %87 = vector.load %arg5[%86, %c0_31, %c0_32] : memref<8x2x16xf32, #tpu.memory_space<vmem>>, vector<1x2x16xf32>
    %88 = vector.shape_cast %87 : vector<1x2x16xf32> to vector<2x16xf32>
    %89 = vector.shape_cast %85 : vector<2x16xf32> to vector<1x2x16xf32>
    tpu.vector_store %arg5[%86, %c0_31, %c0_32], %89 {strides = array<i32>} : memref<8x2x16xf32, #tpu.memory_space<vmem>>, vector<1x2x16xf32>,
    %c1_i32 = arith.constant 1 : i32
    %90 = arith.truncf %81 : vector<2x32xf32> to vector<2x32xbf16>
    %cst_33 = arith.constant dense<0.000000e+00> : vector<2x128xf32>
    %91 = tpu.matmul %90, %1, %cst_33 {dimension_numbers = #tpu.dot_dimension_numbers<[1], [0], [0], [1], [0, 0, 1, 1], [], []>} : vector<2x32xbf16>, vector<32x128xbf16>, vector<2x128xf32> -> vector<2x128xf32>
    %92 = vector.broadcast %7 : vector<1x128xf32> to vector<2x128xf32>
    %93 = arith.addf %91, %92 : vector<2x128xf32>
    %94 = vector.extract_strided_slice %93 {offsets = [0, 0], sizes = [2, 32], strides = [1, 1]} : vector<2x128xf32> to vector<2x32xf32>
    %95 = vector.extract_strided_slice %93 {offsets = [0, 32], sizes = [2, 96], strides = [1, 1]} : vector<2x128xf32> to vector<2x96xf32>
    %96 = vector.shape_cast %94 : vector<2x32xf32> to vector<2x1x32xf32>
    %97 = vector.broadcast %96 : vector<2x1x32xf32> to vector<2x8x32xf32>
    %98 = arith.addf %16, %97 : vector<2x8x32xf32>
    %99 = math.tanh %98 : vector<2x8x32xf32>
    %100 = vector.shape_cast %10 : vector<1x32xf32> to vector<1x1x32xf32>
    %101 = vector.broadcast %100 : vector<1x1x32xf32> to vector<2x8x32xf32>
    %102 = arith.mulf %99, %101 : vector<2x8x32xf32>
    %cst_34 = arith.constant dense<0.000000e+00> : vector<2x8xf32>
    %103 = vector.multi_reduction <add>, %102, %cst_34 [2] : vector<2x8x32xf32> to vector<2x8xf32>
    %cst_35 = arith.constant dense<0xFF800000> : vector<2xf32>
    %104 = vector.multi_reduction <maximumf>, %103, %cst_35 [1] : vector<2x8xf32> to vector<2xf32>
    %105 = vector.shape_cast %104 : vector<2xf32> to vector<2x1xf32>
    %106 = vector.broadcast %105 : vector<2x1xf32> to vector<2x8xf32>
    %107 = arith.subf %103, %106 : vector<2x8xf32>
    %108 = math.exp %107 : vector<2x8xf32>
    %cst_36 = arith.constant dense<0.000000e+00> : vector<2xf32>
    %109 = vector.multi_reduction <add>, %108, %cst_36 [1] : vector<2x8xf32> to vector<2xf32>
    %110 = vector.shape_cast %109 : vector<2xf32> to vector<2x1xf32>
    %111 = vector.broadcast %110 : vector<2x1xf32> to vector<2x8xf32>
    %112 = arith.divf %108, %111 : vector<2x8xf32>
    %113 = arith.truncf %112 : vector<2x8xf32> to vector<2x8xbf16>
    %114 = vector.shape_cast %113 : vector<2x8xbf16> to vector<2x1x8xbf16>
    "tpu.trace_start"() <{level = 10 : i32, message = "bqt,btx->bqx"}> : () -> ()
    %cst_37 = arith.constant dense<0.000000e+00> : vector<2x1x32xf32>
    %115 = tpu.matmul %114, %0, %cst_37 {dimension_numbers = #tpu.dot_dimension_numbers<[2], [1], [1], [2], [0, 0, 0, 1, 1, 2], [0], [0]>} : vector<2x1x8xbf16>, vector<2x8x32xbf16>, vector<2x1x32xf32> -> vector<2x1x32xf32>
    "tpu.trace_stop"() : () -> ()
    %116 = vector.shape_cast %115 : vector<2x1x32xf32> to vector<2x32xf32>
    %117 = arith.index_cast %c1_i32 : i32 to index
    %c0_38 = arith.constant 0 : index
    %c0_39 = arith.constant 0 : index
    %118 = vector.load %arg1[%117, %c0_38, %c0_39] : memref<8x2x17xf32, #tpu.memory_space<vmem>>, vector<1x2x17xf32>
    %119 = vector.shape_cast %118 : vector<1x2x17xf32> to vector<2x17xf32>
    %cst_40 = arith.constant dense<0.000000e+00> : vector<2x96xf32>
    %120 = tpu.matmul %119, %18, %cst_40 {dimension_numbers = #tpu.dot_dimension_numbers<[1], [0], [0], [1], [0, 0, 1, 1], [], []>} : vector<2x17xf32>, vector<17x96xf32>, vector<2x96xf32> -> vector<2x96xf32>
    %121 = arith.truncf %116 : vector<2x32xf32> to vector<2x32xbf16>
    %cst_41 = arith.constant dense<0.000000e+00> : vector<2x96xf32>
    %122 = tpu.matmul %121, %2, %cst_41 {dimension_numbers = #tpu.dot_dimension_numbers<[1], [0], [0], [1], [0, 0, 1, 1], [], []>} : vector<2x32xbf16>, vector<32x96xbf16>, vector<2x96xf32> -> vector<2x96xf32>
    %123 = arith.addf %120, %122 : vector<2x96xf32>
    %124 = vector.broadcast %8 : vector<1x96xf32> to vector<2x96xf32>
    %125 = arith.addf %123, %124 : vector<2x96xf32>
    %126 = vector.extract_strided_slice %125 {offsets = [0, 0], sizes = [2, 32], strides = [1, 1]} : vector<2x96xf32> to vector<2x32xf32>
    %127 = vector.extract_strided_slice %95 {offsets = [0, 0], sizes = [2, 32], strides = [1, 1]} : vector<2x96xf32> to vector<2x32xf32>
    %128 = arith.addf %126, %127 : vector<2x32xf32>
    %129 = arith.negf %128 : vector<2x32xf32>
    %130 = math.exp %129 : vector<2x32xf32>
    %cst_42 = arith.constant 1.000000e+00 : f32
    %131 = vector.broadcast %cst_42 : f32 to vector<2x32xf32>
    %132 = arith.addf %131, %130 : vector<2x32xf32>
    %133 = arith.divf %131, %132 : vector<2x32xf32>
    %134 = vector.extract_strided_slice %125 {offsets = [0, 32], sizes = [2, 32], strides = [1, 1]} : vector<2x96xf32> to vector<2x32xf32>
    %135 = vector.extract_strided_slice %95 {offsets = [0, 32], sizes = [2, 32], strides = [1, 1]} : vector<2x96xf32> to vector<2x32xf32>
    %136 = arith.addf %134, %135 : vector<2x32xf32>
    %137 = arith.negf %136 : vector<2x32xf32>
    %138 = math.exp %137 : vector<2x32xf32>
    %cst_43 = arith.constant 1.000000e+00 : f32
    %139 = vector.broadcast %cst_43 : f32 to vector<2x32xf32>
    %140 = arith.addf %139, %138 : vector<2x32xf32>
    %141 = arith.divf %139, %140 : vector<2x32xf32>
    %142 = vector.extract_strided_slice %125 {offsets = [0, 64], sizes = [2, 32], strides = [1, 1]} : vector<2x96xf32> to vector<2x32xf32>
    %143 = vector.extract_strided_slice %95 {offsets = [0, 64], sizes = [2, 32], strides = [1, 1]} : vector<2x96xf32> to vector<2x32xf32>
    %144 = arith.mulf %133, %143 : vector<2x32xf32>
    %145 = arith.addf %142, %144 : vector<2x32xf32>
    %146 = math.tanh %145 : vector<2x32xf32>
    %cst_44 = arith.constant 1.000000e+00 : f32
    %147 = vector.broadcast %cst_44 : f32 to vector<2x32xf32>
    %148 = arith.subf %147, %141 : vector<2x32xf32>
    %149 = arith.mulf %148, %146 : vector<2x32xf32>
    %150 = arith.mulf %141, %81 : vector<2x32xf32>
    %151 = arith.addf %149, %150 : vector<2x32xf32>
    %152 = arith.truncf %151 : vector<2x32xf32> to vector<2x32xbf16>
    %cst_45 = arith.constant dense<0.000000e+00> : vector<2x16xf32>
    %153 = tpu.matmul %152, %5, %cst_45 {dimension_numbers = #tpu.dot_dimension_numbers<[1], [0], [0], [1], [0, 0, 1, 1], [], []>} : vector<2x32xbf16>, vector<32x16xbf16>, vector<2x16xf32> -> vector<2x16xf32>
    %154 = vector.broadcast %9 : vector<1x16xf32> to vector<2x16xf32>
    %155 = arith.addf %153, %154 : vector<2x16xf32>
    %156 = arith.index_cast %c1_i32 : i32 to index
    %c0_46 = arith.constant 0 : index
    %c0_47 = arith.constant 0 : index
    %157 = vector.load %arg5[%156, %c0_46, %c0_47] : memref<8x2x16xf32, #tpu.memory_space<vmem>>, vector<1x2x16xf32>
    %158 = vector.shape_cast %157 : vector<1x2x16xf32> to vector<2x16xf32>
    %159 = vector.shape_cast %155 : vector<2x16xf32> to vector<1x2x16xf32>
    tpu.vector_store %arg5[%156, %c0_46, %c0_47], %159 {strides = array<i32>} : memref<8x2x16xf32, #tpu.memory_space<vmem>>, vector<1x2x16xf32>,
    %c2_i32 = arith.constant 2 : i32
    %160 = arith.truncf %151 : vector<2x32xf32> to vector<2x32xbf16>
    %cst_48 = arith.constant dense<0.000000e+00> : vector<2x128xf32>
    %161 = tpu.matmul %160, %1, %cst_48 {dimension_numbers = #tpu.dot_dimension_numbers<[1], [0], [0], [1], [0, 0, 1, 1], [], []>} : vector<2x32xbf16>, vector<32x128xbf16>, vector<2x128xf32> -> vector<2x128xf32>
    %162 = vector.broadcast %7 : vector<1x128xf32> to vector<2x128xf32>
    %163 = arith.addf %161, %162 : vector<2x128xf32>
    %164 = vector.extract_strided_slice %163 {offsets = [0, 0], sizes = [2, 32], strides = [1, 1]} : vector<2x128xf32> to vector<2x32xf32>
    %165 = vector.extract_strided_slice %163 {offsets = [0, 32], sizes = [2, 96], strides = [1, 1]} : vector<2x128xf32> to vector<2x96xf32>
    %166 = vector.shape_cast %164 : vector<2x32xf32> to vector<2x1x32xf32>
    %167 = vector.broadcast %166 : vector<2x1x32xf32> to vector<2x8x32xf32>
    %168 = arith.addf %16, %167 : vector<2x8x32xf32>
    %169 = math.tanh %168 : vector<2x8x32xf32>
    %170 = vector.shape_cast %10 : vector<1x32xf32> to vector<1x1x32xf32>
    %171 = vector.broadcast %170 : vector<1x1x32xf32> to vector<2x8x32xf32>
    %172 = arith.mulf %169, %171 : vector<2x8x32xf32>
    %cst_49 = arith.constant dense<0.000000e+00> : vector<2x8xf32>
    %173 = vector.multi_reduction <add>, %172, %cst_49 [2] : vector<2x8x32xf32> to vector<2x8xf32>
    %cst_50 = arith.constant dense<0xFF800000> : vector<2xf32>
    %174 = vector.multi_reduction <maximumf>, %173, %cst_50 [1] : vector<2x8xf32> to vector<2xf32>
    %175 = vector.shape_cast %174 : vector<2xf32> to vector<2x1xf32>
    %176 = vector.broadcast %175 : vector<2x1xf32> to vector<2x8xf32>
    %177 = arith.subf %173, %176 : vector<2x8xf32>
    %178 = math.exp %177 : vector<2x8xf32>
    %cst_51 = arith.constant dense<0.000000e+00> : vector<2xf32>
    %179 = vector.multi_reduction <add>, %178, %cst_51 [1] : vector<2x8xf32> to vector<2xf32>
    %180 = vector.shape_cast %179 : vector<2xf32> to vector<2x1xf32>
    %181 = vector.broadcast %180 : vector<2x1xf32> to vector<2x8xf32>
    %182 = arith.divf %178, %181 : vector<2x8xf32>
    %183 = arith.truncf %182 : vector<2x8xf32> to vector<2x8xbf16>
    %184 = vector.shape_cast %183 : vector<2x8xbf16> to vector<2x1x8xbf16>
    "tpu.trace_start"() <{level = 10 : i32, message = "bqt,btx->bqx"}> : () -> ()
    %cst_52 = arith.constant dense<0.000000e+00> : vector<2x1x32xf32>
    %185 = tpu.matmul %184, %0, %cst_52 {dimension_numbers = #tpu.dot_dimension_numbers<[2], [1], [1], [2], [0, 0, 0, 1, 1, 2], [0], [0]>} : vector<2x1x8xbf16>, vector<2x8x32xbf16>, vector<2x1x32xf32> -> vector<2x1x32xf32>
    "tpu.trace_stop"() : () -> ()
    %186 = vector.shape_cast %185 : vector<2x1x32xf32> to vector<2x32xf32>
    %187 = arith.index_cast %c2_i32 : i32 to index
    %c0_53 = arith.constant 0 : index
    %c0_54 = arith.constant 0 : index
    %188 = vector.load %arg1[%187, %c0_53, %c0_54] : memref<8x2x17xf32, #tpu.memory_space<vmem>>, vector<1x2x17xf32>
    %189 = vector.shape_cast %188 : vector<1x2x17xf32> to vector<2x17xf32>
    %cst_55 = arith.constant dense<0.000000e+00> : vector<2x96xf32>
    %190 = tpu.matmul %189, %18, %cst_55 {dimension_numbers = #tpu.dot_dimension_numbers<[1], [0], [0], [1], [0, 0, 1, 1], [], []>} : vector<2x17xf32>, vector<17x96xf32>, vector<2x96xf32> -> vector<2x96xf32>
    %191 = arith.truncf %186 : vector<2x32xf32> to vector<2x32xbf16>
    %cst_56 = arith.constant dense<0.000000e+00> : vector<2x96xf32>
    %192 = tpu.matmul %191, %2, %cst_56 {dimension_numbers = #tpu.dot_dimension_numbers<[1], [0], [0], [1], [0, 0, 1, 1], [], []>} : vector<2x32xbf16>, vector<32x96xbf16>, vector<2x96xf32> -> vector<2x96xf32>
    %193 = arith.addf %190, %192 : vector<2x96xf32>
    %194 = vector.broadcast %8 : vector<1x96xf32> to vector<2x96xf32>
    %195 = arith.addf %193, %194 : vector<2x96xf32>
    %196 = vector.extract_strided_slice %195 {offsets = [0, 0], sizes = [2, 32], strides = [1, 1]} : vector<2x96xf32> to vector<2x32xf32>
    %197 = vector.extract_strided_slice %165 {offsets = [0, 0], sizes = [2, 32], strides = [1, 1]} : vector<2x96xf32> to vector<2x32xf32>
    %198 = arith.addf %196, %197 : vector<2x32xf32>
    %199 = arith.negf %198 : vector<2x32xf32>
    %200 = math.exp %199 : vector<2x32xf32>
    %cst_57 = arith.constant 1.000000e+00 : f32
    %201 = vector.broadcast %cst_57 : f32 to vector<2x32xf32>
    %202 = arith.addf %201, %200 : vector<2x32xf32>
    %203 = arith.divf %201, %202 : vector<2x32xf32>
    %204 = vector.extract_strided_slice %195 {offsets = [0, 32], sizes = [2, 32], strides = [1, 1]} : vector<2x96xf32> to vector<2x32xf32>
    %205 = vector.extract_strided_slice %165 {offsets = [0, 32], sizes = [2, 32], strides = [1, 1]} : vector<2x96xf32> to vector<2x32xf32>
    %206 = arith.addf %204, %205 : vector<2x32xf32>
    %207 = arith.negf %206 : vector<2x32xf32>
    %208 = math.exp %207 : vector<2x32xf32>
    %cst_58 = arith.constant 1.000000e+00 : f32
    %209 = vector.broadcast %cst_58 : f32 to vector<2x32xf32>
    %210 = arith.addf %209, %208 : vector<2x32xf32>
    %211 = arith.divf %209, %210 : vector<2x32xf32>
    %212 = vector.extract_strided_slice %195 {offsets = [0, 64], sizes = [2, 32], strides = [1, 1]} : vector<2x96xf32> to vector<2x32xf32>
    %213 = vector.extract_strided_slice %165 {offsets = [0, 64], sizes = [2, 32], strides = [1, 1]} : vector<2x96xf32> to vector<2x32xf32>
    %214 = arith.mulf %203, %213 : vector<2x32xf32>
    %215 = arith.addf %212, %214 : vector<2x32xf32>
    %216 = math.tanh %215 : vector<2x32xf32>
    %cst_59 = arith.constant 1.000000e+00 : f32
    %217 = vector.broadcast %cst_59 : f32 to vector<2x32xf32>
    %218 = arith.subf %217, %211 : vector<2x32xf32>
    %219 = arith.mulf %218, %216 : vector<2x32xf32>
    %220 = arith.mulf %211, %151 : vector<2x32xf32>
    %221 = arith.addf %219, %220 : vector<2x32xf32>
    %222 = arith.truncf %221 : vector<2x32xf32> to vector<2x32xbf16>
    %cst_60 = arith.constant dense<0.000000e+00> : vector<2x16xf32>
    %223 = tpu.matmul %222, %5, %cst_60 {dimension_numbers = #tpu.dot_dimension_numbers<[1], [0], [0], [1], [0, 0, 1, 1], [], []>} : vector<2x32xbf16>, vector<32x16xbf16>, vector<2x16xf32> -> vector<2x16xf32>
    %224 = vector.broadcast %9 : vector<1x16xf32> to vector<2x16xf32>
    %225 = arith.addf %223, %224 : vector<2x16xf32>
    %226 = arith.index_cast %c2_i32 : i32 to index
    %c0_61 = arith.constant 0 : index
    %c0_62 = arith.constant 0 : index
    %227 = vector.load %arg5[%226, %c0_61, %c0_62] : memref<8x2x16xf32, #tpu.memory_space<vmem>>, vector<1x2x16xf32>
    %228 = vector.shape_cast %227 : vector<1x2x16xf32> to vector<2x16xf32>
    %229 = vector.shape_cast %225 : vector<2x16xf32> to vector<1x2x16xf32>
    tpu.vector_store %arg5[%226, %c0_61, %c0_62], %229 {strides = array<i32>} : memref<8x2x16xf32, #tpu.memory_space<vmem>>, vector<1x2x16xf32>,
    %c3_i32 = arith.constant 3 : i32
    %230 = arith.truncf %221 : vector<2x32xf32> to vector<2x32xbf16>
    %cst_63 = arith.constant dense<0.000000e+00> : vector<2x128xf32>
    %231 = tpu.matmul %230, %1, %cst_63 {dimension_numbers = #tpu.dot_dimension_numbers<[1], [0], [0], [1], [0, 0, 1, 1], [], []>} : vector<2x32xbf16>, vector<32x128xbf16>, vector<2x128xf32> -> vector<2x128xf32>
    %232 = vector.broadcast %7 : vector<1x128xf32> to vector<2x128xf32>
    %233 = arith.addf %231, %232 : vector<2x128xf32>
    %234 = vector.extract_strided_slice %233 {offsets = [0, 0], sizes = [2, 32], strides = [1, 1]} : vector<2x128xf32> to vector<2x32xf32>
    %235 = vector.extract_strided_slice %233 {offsets = [0, 32], sizes = [2, 96], strides = [1, 1]} : vector<2x128xf32> to vector<2x96xf32>
    %236 = vector.shape_cast %234 : vector<2x32xf32> to vector<2x1x32xf32>
    %237 = vector.broadcast %236 : vector<2x1x32xf32> to vector<2x8x32xf32>
    %238 = arith.addf %16, %237 : vector<2x8x32xf32>
    %239 = math.tanh %238 : vector<2x8x32xf32>
    %240 = vector.shape_cast %10 : vector<1x32xf32> to vector<1x1x32xf32>
    %241 = vector.broadcast %240 : vector<1x1x32xf32> to vector<2x8x32xf32>
    %242 = arith.mulf %239, %241 : vector<2x8x32xf32>
    %cst_64 = arith.constant dense<0.000000e+00> : vector<2x8xf32>
    %243 = vector.multi_reduction <add>, %242, %cst_64 [2] : vector<2x8x32xf32> to vector<2x8xf32>
    %cst_65 = arith.constant dense<0xFF800000> : vector<2xf32>
    %244 = vector.multi_reduction <maximumf>, %243, %cst_65 [1] : vector<2x8xf32> to vector<2xf32>
    %245 = vector.shape_cast %244 : vector<2xf32> to vector<2x1xf32>
    %246 = vector.broadcast %245 : vector<2x1xf32> to vector<2x8xf32>
    %247 = arith.subf %243, %246 : vector<2x8xf32>
    %248 = math.exp %247 : vector<2x8xf32>
    %cst_66 = arith.constant dense<0.000000e+00> : vector<2xf32>
    %249 = vector.multi_reduction <add>, %248, %cst_66 [1] : vector<2x8xf32> to vector<2xf32>
    %250 = vector.shape_cast %249 : vector<2xf32> to vector<2x1xf32>
    %251 = vector.broadcast %250 : vector<2x1xf32> to vector<2x8xf32>
    %252 = arith.divf %248, %251 : vector<2x8xf32>
    %253 = arith.truncf %252 : vector<2x8xf32> to vector<2x8xbf16>
    %254 = vector.shape_cast %253 : vector<2x8xbf16> to vector<2x1x8xbf16>
    "tpu.trace_start"() <{level = 10 : i32, message = "bqt,btx->bqx"}> : () -> ()
    %cst_67 = arith.constant dense<0.000000e+00> : vector<2x1x32xf32>
    %255 = tpu.matmul %254, %0, %cst_67 {dimension_numbers = #tpu.dot_dimension_numbers<[2], [1], [1], [2], [0, 0, 0, 1, 1, 2], [0], [0]>} : vector<2x1x8xbf16>, vector<2x8x32xbf16>, vector<2x1x32xf32> -> vector<2x1x32xf32>
    "tpu.trace_stop"() : () -> ()
    %256 = vector.shape_cast %255 : vector<2x1x32xf32> to vector<2x32xf32>
    %257 = arith.index_cast %c3_i32 : i32 to index
    %c0_68 = arith.constant 0 : index
    %c0_69 = arith.constant 0 : index
    %258 = vector.load %arg1[%257, %c0_68, %c0_69] : memref<8x2x17xf32, #tpu.memory_space<vmem>>, vector<1x2x17xf32>
    %259 = vector.shape_cast %258 : vector<1x2x17xf32> to vector<2x17xf32>
    %cst_70 = arith.constant dense<0.000000e+00> : vector<2x96xf32>
    %260 = tpu.matmul %259, %18, %cst_70 {dimension_numbers = #tpu.dot_dimension_numbers<[1], [0], [0], [1], [0, 0, 1, 1], [], []>} : vector<2x17xf32>, vector<17x96xf32>, vector<2x96xf32> -> vector<2x96xf32>
    %261 = arith.truncf %256 : vector<2x32xf32> to vector<2x32xbf16>
    %cst_71 = arith.constant dense<0.000000e+00> : vector<2x96xf32>
    %262 = tpu.matmul %261, %2, %cst_71 {dimension_numbers = #tpu.dot_dimension_numbers<[1], [0], [0], [1], [0, 0, 1, 1], [], []>} : vector<2x32xbf16>, vector<32x96xbf16>, vector<2x96xf32> -> vector<2x96xf32>
    %263 = arith.addf %260, %262 : vector<2x96xf32>
    %264 = vector.broadcast %8 : vector<1x96xf32> to vector<2x96xf32>
    %265 = arith.addf %263, %264 : vector<2x96xf32>
    %266 = vector.extract_strided_slice %265 {offsets = [0, 0], sizes = [2, 32], strides = [1, 1]} : vector<2x96xf32> to vector<2x32xf32>
    %267 = vector.extract_strided_slice %235 {offsets = [0, 0], sizes = [2, 32], strides = [1, 1]} : vector<2x96xf32> to vector<2x32xf32>
    %268 = arith.addf %266, %267 : vector<2x32xf32>
    %269 = arith.negf %268 : vector<2x32xf32>
    %270 = math.exp %269 : vector<2x32xf32>
    %cst_72 = arith.constant 1.000000e+00 : f32
    %271 = vector.broadcast %cst_72 : f32 to vector<2x32xf32>
    %272 = arith.addf %271, %270 : vector<2x32xf32>
    %273 = arith.divf %271, %272 : vector<2x32xf32>
    %274 = vector.extract_strided_slice %265 {offsets = [0, 32], sizes = [2, 32], strides = [1, 1]} : vector<2x96xf32> to vector<2x32xf32>
    %275 = vector.extract_strided_slice %235 {offsets = [0, 32], sizes = [2, 32], strides = [1, 1]} : vector<2x96xf32> to vector<2x32xf32>
    %276 = arith.addf %274, %275 : vector<2x32xf32>
    %277 = arith.negf %276 : vector<2x32xf32>
    %278 = math.exp %277 : vector<2x32xf32>
    %cst_73 = arith.constant 1.000000e+00 : f32
    %279 = vector.broadcast %cst_73 : f32 to vector<2x32xf32>
    %280 = arith.addf %279, %278 : vector<2x32xf32>
    %281 = arith.divf %279, %280 : vector<2x32xf32>
    %282 = vector.extract_strided_slice %265 {offsets = [0, 64], sizes = [2, 32], strides = [1, 1]} : vector<2x96xf32> to vector<2x32xf32>
    %283 = vector.extract_strided_slice %235 {offsets = [0, 64], sizes = [2, 32], strides = [1, 1]} : vector<2x96xf32> to vector<2x32xf32>
    %284 = arith.mulf %273, %283 : vector<2x32xf32>
    %285 = arith.addf %282, %284 : vector<2x32xf32>
    %286 = math.tanh %285 : vector<2x32xf32>
    %cst_74 = arith.constant 1.000000e+00 : f32
    %287 = vector.broadcast %cst_74 : f32 to vector<2x32xf32>
    %288 = arith.subf %287, %281 : vector<2x32xf32>
    %289 = arith.mulf %288, %286 : vector<2x32xf32>
    %290 = arith.mulf %281, %221 : vector<2x32xf32>
    %291 = arith.addf %289, %290 : vector<2x32xf32>
    %292 = arith.truncf %291 : vector<2x32xf32> to vector<2x32xbf16>
    %cst_75 = arith.constant dense<0.000000e+00> : vector<2x16xf32>
    %293 = tpu.matmul %292, %5, %cst_75 {dimension_numbers = #tpu.dot_dimension_numbers<[1], [0], [0], [1], [0, 0, 1, 1], [], []>} : vector<2x32xbf16>, vector<32x16xbf16>, vector<2x16xf32> -> vector<2x16xf32>
    %294 = vector.broadcast %9 : vector<1x16xf32> to vector<2x16xf32>
    %295 = arith.addf %293, %294 : vector<2x16xf32>
    %296 = arith.index_cast %c3_i32 : i32 to index
    %c0_76 = arith.constant 0 : index
    %c0_77 = arith.constant 0 : index
    %297 = vector.load %arg5[%296, %c0_76, %c0_77] : memref<8x2x16xf32, #tpu.memory_space<vmem>>, vector<1x2x16xf32>
    %298 = vector.shape_cast %297 : vector<1x2x16xf32> to vector<2x16xf32>
    %299 = vector.shape_cast %295 : vector<2x16xf32> to vector<1x2x16xf32>
    tpu.vector_store %arg5[%296, %c0_76, %c0_77], %299 {strides = array<i32>} : memref<8x2x16xf32, #tpu.memory_space<vmem>>, vector<1x2x16xf32>,
    %c4_i32 = arith.constant 4 : i32
    %300 = arith.truncf %291 : vector<2x32xf32> to vector<2x32xbf16>
    %cst_78 = arith.constant dense<0.000000e+00> : vector<2x128xf32>
    %301 = tpu.matmul %300, %1, %cst_78 {dimension_numbers = #tpu.dot_dimension_numbers<[1], [0], [0], [1], [0, 0, 1, 1], [], []>} : vector<2x32xbf16>, vector<32x128xbf16>, vector<2x128xf32> -> vector<2x128xf32>
    %302 = vector.broadcast %7 : vector<1x128xf32> to vector<2x128xf32>
    %303 = arith.addf %301, %302 : vector<2x128xf32>
    %304 = vector.extract_strided_slice %303 {offsets = [0, 0], sizes = [2, 32], strides = [1, 1]} : vector<2x128xf32> to vector<2x32xf32>
    %305 = vector.extract_strided_slice %303 {offsets = [0, 32], sizes = [2, 96], strides = [1, 1]} : vector<2x128xf32> to vector<2x96xf32>
    %306 = vector.shape_cast %304 : vector<2x32xf32> to vector<2x1x32xf32>
    %307 = vector.broadcast %306 : vector<2x1x32xf32> to vector<2x8x32xf32>
    %308 = arith.addf %16, %307 : vector<2x8x32xf32>
    %309 = math.tanh %308 : vector<2x8x32xf32>
    %310 = vector.shape_cast %10 : vector<1x32xf32> to vector<1x1x32xf32>
    %311 = vector.broadcast %310 : vector<1x1x32xf32> to vector<2x8x32xf32>
    %312 = arith.mulf %309, %311 : vector<2x8x32xf32>
    %cst_79 = arith.constant dense<0.000000e+00> : vector<2x8xf32>
    %313 = vector.multi_reduction <add>, %312, %cst_79 [2] : vector<2x8x32xf32> to vector<2x8xf32>
    %cst_80 = arith.constant dense<0xFF800000> : vector<2xf32>
    %314 = vector.multi_reduction <maximumf>, %313, %cst_80 [1] : vector<2x8xf32> to vector<2xf32>
    %315 = vector.shape_cast %314 : vector<2xf32> to vector<2x1xf32>
    %316 = vector.broadcast %315 : vector<2x1xf32> to vector<2x8xf32>
    %317 = arith.subf %313, %316 : vector<2x8xf32>
    %318 = math.exp %317 : vector<2x8xf32>
    %cst_81 = arith.constant dense<0.000000e+00> : vector<2xf32>
    %319 = vector.multi_reduction <add>, %318, %cst_81 [1] : vector<2x8xf32> to vector<2xf32>
    %320 = vector.shape_cast %319 : vector<2xf32> to vector<2x1xf32>
    %321 = vector.broadcast %320 : vector<2x1xf32> to vector<2x8xf32>
    %322 = arith.divf %318, %321 : vector<2x8xf32>
    %323 = arith.truncf %322 : vector<2x8xf32> to vector<2x8xbf16>
    %324 = vector.shape_cast %323 : vector<2x8xbf16> to vector<2x1x8xbf16>
    "tpu.trace_start"() <{level = 10 : i32, message = "bqt,btx->bqx"}> : () -> ()
    %cst_82 = arith.constant dense<0.000000e+00> : vector<2x1x32xf32>
    %325 = tpu.matmul %324, %0, %cst_82 {dimension_numbers = #tpu.dot_dimension_numbers<[2], [1], [1], [2], [0, 0, 0, 1, 1, 2], [0], [0]>} : vector<2x1x8xbf16>, vector<2x8x32xbf16>, vector<2x1x32xf32> -> vector<2x1x32xf32>
    "tpu.trace_stop"() : () -> ()
    %326 = vector.shape_cast %325 : vector<2x1x32xf32> to vector<2x32xf32>
    %327 = arith.index_cast %c4_i32 : i32 to index
    %c0_83 = arith.constant 0 : index
    %c0_84 = arith.constant 0 : index
    %328 = vector.load %arg1[%327, %c0_83, %c0_84] : memref<8x2x17xf32, #tpu.memory_space<vmem>>, vector<1x2x17xf32>
    %329 = vector.shape_cast %328 : vector<1x2x17xf32> to vector<2x17xf32>
    %cst_85 = arith.constant dense<0.000000e+00> : vector<2x96xf32>
    %330 = tpu.matmul %329, %18, %cst_85 {dimension_numbers = #tpu.dot_dimension_numbers<[1], [0], [0], [1], [0, 0, 1, 1], [], []>} : vector<2x17xf32>, vector<17x96xf32>, vector<2x96xf32> -> vector<2x96xf32>
    %331 = arith.truncf %326 : vector<2x32xf32> to vector<2x32xbf16>
    %cst_86 = arith.constant dense<0.000000e+00> : vector<2x96xf32>
    %332 = tpu.matmul %331, %2, %cst_86 {dimension_numbers = #tpu.dot_dimension_numbers<[1], [0], [0], [1], [0, 0, 1, 1], [], []>} : vector<2x32xbf16>, vector<32x96xbf16>, vector<2x96xf32> -> vector<2x96xf32>
    %333 = arith.addf %330, %332 : vector<2x96xf32>
    %334 = vector.broadcast %8 : vector<1x96xf32> to vector<2x96xf32>
    %335 = arith.addf %333, %334 : vector<2x96xf32>
    %336 = vector.extract_strided_slice %335 {offsets = [0, 0], sizes = [2, 32], strides = [1, 1]} : vector<2x96xf32> to vector<2x32xf32>
    %337 = vector.extract_strided_slice %305 {offsets = [0, 0], sizes = [2, 32], strides = [1, 1]} : vector<2x96xf32> to vector<2x32xf32>
    %338 = arith.addf %336, %337 : vector<2x32xf32>
    %339 = arith.negf %338 : vector<2x32xf32>
    %340 = math.exp %339 : vector<2x32xf32>
    %cst_87 = arith.constant 1.000000e+00 : f32
    %341 = vector.broadcast %cst_87 : f32 to vector<2x32xf32>
    %342 = arith.addf %341, %340 : vector<2x32xf32>
    %343 = arith.divf %341, %342 : vector<2x32xf32>
    %344 = vector.extract_strided_slice %335 {offsets = [0, 32], sizes = [2, 32], strides = [1, 1]} : vector<2x96xf32> to vector<2x32xf32>
    %345 = vector.extract_strided_slice %305 {offsets = [0, 32], sizes = [2, 32], strides = [1, 1]} : vector<2x96xf32> to vector<2x32xf32>
    %346 = arith.addf %344, %345 : vector<2x32xf32>
    %347 = arith.negf %346 : vector<2x32xf32>
    %348 = math.exp %347 : vector<2x32xf32>
    %cst_88 = arith.constant 1.000000e+00 : f32
    %349 = vector.broadcast %cst_88 : f32 to vector<2x32xf32>
    %350 = arith.addf %349, %348 : vector<2x32xf32>
    %351 = arith.divf %349, %350 : vector<2x32xf32>
    %352 = vector.extract_strided_slice %335 {offsets = [0, 64], sizes = [2, 32], strides = [1, 1]} : vector<2x96xf32> to vector<2x32xf32>
    %353 = vector.extract_strided_slice %305 {offsets = [0, 64], sizes = [2, 32], strides = [1, 1]} : vector<2x96xf32> to vector<2x32xf32>
    %354 = arith.mulf %343, %353 : vector<2x32xf32>
    %355 = arith.addf %352, %354 : vector<2x32xf32>
    %356 = math.tanh %355 : vector<2x32xf32>
    %cst_89 = arith.constant 1.000000e+00 : f32
    %357 = vector.broadcast %cst_89 : f32 to vector<2x32xf32>
    %358 = arith.subf %357, %351 : vector<2x32xf32>
    %359 = arith.mulf %358, %356 : vector<2x32xf32>
    %360 = arith.mulf %351, %291 : vector<2x32xf32>
    %361 = arith.addf %359, %360 : vector<2x32xf32>
    %362 = arith.truncf %361 : vector<2x32xf32> to vector<2x32xbf16>
    %cst_90 = arith.constant dense<0.000000e+00> : vector<2x16xf32>
    %363 = tpu.matmul %362, %5, %cst_90 {dimension_numbers = #tpu.dot_dimension_numbers<[1], [0], [0], [1], [0, 0, 1, 1], [], []>} : vector<2x32xbf16>, vector<32x16xbf16>, vector<2x16xf32> -> vector<2x16xf32>
    %364 = vector.broadcast %9 : vector<1x16xf32> to vector<2x16xf32>
    %365 = arith.addf %363, %364 : vector<2x16xf32>
    %366 = arith.index_cast %c4_i32 : i32 to index
    %c0_91 = arith.constant 0 : index
    %c0_92 = arith.constant 0 : index
    %367 = vector.load %arg5[%366, %c0_91, %c0_92] : memref<8x2x16xf32, #tpu.memory_space<vmem>>, vector<1x2x16xf32>
    %368 = vector.shape_cast %367 : vector<1x2x16xf32> to vector<2x16xf32>
    %369 = vector.shape_cast %365 : vector<2x16xf32> to vector<1x2x16xf32>
    tpu.vector_store %arg5[%366, %c0_91, %c0_92], %369 {strides = array<i32>} : memref<8x2x16xf32, #tpu.memory_space<vmem>>, vector<1x2x16xf32>,
    %c5_i32 = arith.constant 5 : i32
    %370 = arith.truncf %361 : vector<2x32xf32> to vector<2x32xbf16>
    %cst_93 = arith.constant dense<0.000000e+00> : vector<2x128xf32>
    %371 = tpu.matmul %370, %1, %cst_93 {dimension_numbers = #tpu.dot_dimension_numbers<[1], [0], [0], [1], [0, 0, 1, 1], [], []>} : vector<2x32xbf16>, vector<32x128xbf16>, vector<2x128xf32> -> vector<2x128xf32>
    %372 = vector.broadcast %7 : vector<1x128xf32> to vector<2x128xf32>
    %373 = arith.addf %371, %372 : vector<2x128xf32>
    %374 = vector.extract_strided_slice %373 {offsets = [0, 0], sizes = [2, 32], strides = [1, 1]} : vector<2x128xf32> to vector<2x32xf32>
    %375 = vector.extract_strided_slice %373 {offsets = [0, 32], sizes = [2, 96], strides = [1, 1]} : vector<2x128xf32> to vector<2x96xf32>
    %376 = vector.shape_cast %374 : vector<2x32xf32> to vector<2x1x32xf32>
    %377 = vector.broadcast %376 : vector<2x1x32xf32> to vector<2x8x32xf32>
    %378 = arith.addf %16, %377 : vector<2x8x32xf32>
    %379 = math.tanh %378 : vector<2x8x32xf32>
    %380 = vector.shape_cast %10 : vector<1x32xf32> to vector<1x1x32xf32>
    %381 = vector.broadcast %380 : vector<1x1x32xf32> to vector<2x8x32xf32>
    %382 = arith.mulf %379, %381 : vector<2x8x32xf32>
    %cst_94 = arith.constant dense<0.000000e+00> : vector<2x8xf32>
    %383 = vector.multi_reduction <add>, %382, %cst_94 [2] : vector<2x8x32xf32> to vector<2x8xf32>
    %cst_95 = arith.constant dense<0xFF800000> : vector<2xf32>
    %384 = vector.multi_reduction <maximumf>, %383, %cst_95 [1] : vector<2x8xf32> to vector<2xf32>
    %385 = vector.shape_cast %384 : vector<2xf32> to vector<2x1xf32>
    %386 = vector.broadcast %385 : vector<2x1xf32> to vector<2x8xf32>
    %387 = arith.subf %383, %386 : vector<2x8xf32>
    %388 = math.exp %387 : vector<2x8xf32>
    %cst_96 = arith.constant dense<0.000000e+00> : vector<2xf32>
    %389 = vector.multi_reduction <add>, %388, %cst_96 [1] : vector<2x8xf32> to vector<2xf32>
    %390 = vector.shape_cast %389 : vector<2xf32> to vector<2x1xf32>
    %391 = vector.broadcast %390 : vector<2x1xf32> to vector<2x8xf32>
    %392 = arith.divf %388, %391 : vector<2x8xf32>
    %393 = arith.truncf %392 : vector<2x8xf32> to vector<2x8xbf16>
    %394 = vector.shape_cast %393 : vector<2x8xbf16> to vector<2x1x8xbf16>
    "tpu.trace_start"() <{level = 10 : i32, message = "bqt,btx->bqx"}> : () -> ()
    %cst_97 = arith.constant dense<0.000000e+00> : vector<2x1x32xf32>
    %395 = tpu.matmul %394, %0, %cst_97 {dimension_numbers = #tpu.dot_dimension_numbers<[2], [1], [1], [2], [0, 0, 0, 1, 1, 2], [0], [0]>} : vector<2x1x8xbf16>, vector<2x8x32xbf16>, vector<2x1x32xf32> -> vector<2x1x32xf32>
    "tpu.trace_stop"() : () -> ()
    %396 = vector.shape_cast %395 : vector<2x1x32xf32> to vector<2x32xf32>
    %397 = arith.index_cast %c5_i32 : i32 to index
    %c0_98 = arith.constant 0 : index
    %c0_99 = arith.constant 0 : index
    %398 = vector.load %arg1[%397, %c0_98, %c0_99] : memref<8x2x17xf32, #tpu.memory_space<vmem>>, vector<1x2x17xf32>
    %399 = vector.shape_cast %398 : vector<1x2x17xf32> to vector<2x17xf32>
    %cst_100 = arith.constant dense<0.000000e+00> : vector<2x96xf32>
    %400 = tpu.matmul %399, %18, %cst_100 {dimension_numbers = #tpu.dot_dimension_numbers<[1], [0], [0], [1], [0, 0, 1, 1], [], []>} : vector<2x17xf32>, vector<17x96xf32>, vector<2x96xf32> -> vector<2x96xf32>
    %401 = arith.truncf %396 : vector<2x32xf32> to vector<2x32xbf16>
    %cst_101 = arith.constant dense<0.000000e+00> : vector<2x96xf32>
    %402 = tpu.matmul %401, %2, %cst_101 {dimension_numbers = #tpu.dot_dimension_numbers<[1], [0], [0], [1], [0, 0, 1, 1], [], []>} : vector<2x32xbf16>, vector<32x96xbf16>, vector<2x96xf32> -> vector<2x96xf32>
    %403 = arith.addf %400, %402 : vector<2x96xf32>
    %404 = vector.broadcast %8 : vector<1x96xf32> to vector<2x96xf32>
    %405 = arith.addf %403, %404 : vector<2x96xf32>
    %406 = vector.extract_strided_slice %405 {offsets = [0, 0], sizes = [2, 32], strides = [1, 1]} : vector<2x96xf32> to vector<2x32xf32>
    %407 = vector.extract_strided_slice %375 {offsets = [0, 0], sizes = [2, 32], strides = [1, 1]} : vector<2x96xf32> to vector<2x32xf32>
    %408 = arith.addf %406, %407 : vector<2x32xf32>
    %409 = arith.negf %408 : vector<2x32xf32>
    %410 = math.exp %409 : vector<2x32xf32>
    %cst_102 = arith.constant 1.000000e+00 : f32
    %411 = vector.broadcast %cst_102 : f32 to vector<2x32xf32>
    %412 = arith.addf %411, %410 : vector<2x32xf32>
    %413 = arith.divf %411, %412 : vector<2x32xf32>
    %414 = vector.extract_strided_slice %405 {offsets = [0, 32], sizes = [2, 32], strides = [1, 1]} : vector<2x96xf32> to vector<2x32xf32>
    %415 = vector.extract_strided_slice %375 {offsets = [0, 32], sizes = [2, 32], strides = [1, 1]} : vector<2x96xf32> to vector<2x32xf32>
    %416 = arith.addf %414, %415 : vector<2x32xf32>
    %417 = arith.negf %416 : vector<2x32xf32>
    %418 = math.exp %417 : vector<2x32xf32>
    %cst_103 = arith.constant 1.000000e+00 : f32
    %419 = vector.broadcast %cst_103 : f32 to vector<2x32xf32>
    %420 = arith.addf %419, %418 : vector<2x32xf32>
    %421 = arith.divf %419, %420 : vector<2x32xf32>
    %422 = vector.extract_strided_slice %405 {offsets = [0, 64], sizes = [2, 32], strides = [1, 1]} : vector<2x96xf32> to vector<2x32xf32>
    %423 = vector.extract_strided_slice %375 {offsets = [0, 64], sizes = [2, 32], strides = [1, 1]} : vector<2x96xf32> to vector<2x32xf32>
    %424 = arith.mulf %413, %423 : vector<2x32xf32>
    %425 = arith.addf %422, %424 : vector<2x32xf32>
    %426 = math.tanh %425 : vector<2x32xf32>
    %cst_104 = arith.constant 1.000000e+00 : f32
    %427 = vector.broadcast %cst_104 : f32 to vector<2x32xf32>
    %428 = arith.subf %427, %421 : vector<2x32xf32>
    %429 = arith.mulf %428, %426 : vector<2x32xf32>
    %430 = arith.mulf %421, %361 : vector<2x32xf32>
    %431 = arith.addf %429, %430 : vector<2x32xf32>
    %432 = arith.truncf %431 : vector<2x32xf32> to vector<2x32xbf16>
    %cst_105 = arith.constant dense<0.000000e+00> : vector<2x16xf32>
    %433 = tpu.matmul %432, %5, %cst_105 {dimension_numbers = #tpu.dot_dimension_numbers<[1], [0], [0], [1], [0, 0, 1, 1], [], []>} : vector<2x32xbf16>, vector<32x16xbf16>, vector<2x16xf32> -> vector<2x16xf32>
    %434 = vector.broadcast %9 : vector<1x16xf32> to vector<2x16xf32>
    %435 = arith.addf %433, %434 : vector<2x16xf32>
    %436 = arith.index_cast %c5_i32 : i32 to index
    %c0_106 = arith.constant 0 : index
    %c0_107 = arith.constant 0 : index
    %437 = vector.load %arg5[%436, %c0_106, %c0_107] : memref<8x2x16xf32, #tpu.memory_space<vmem>>, vector<1x2x16xf32>
    %438 = vector.shape_cast %437 : vector<1x2x16xf32> to vector<2x16xf32>
    %439 = vector.shape_cast %435 : vector<2x16xf32> to vector<1x2x16xf32>
    tpu.vector_store %arg5[%436, %c0_106, %c0_107], %439 {strides = array<i32>} : memref<8x2x16xf32, #tpu.memory_space<vmem>>, vector<1x2x16xf32>,
    %c6_i32 = arith.constant 6 : i32
    %440 = arith.truncf %431 : vector<2x32xf32> to vector<2x32xbf16>
    %cst_108 = arith.constant dense<0.000000e+00> : vector<2x128xf32>
    %441 = tpu.matmul %440, %1, %cst_108 {dimension_numbers = #tpu.dot_dimension_numbers<[1], [0], [0], [1], [0, 0, 1, 1], [], []>} : vector<2x32xbf16>, vector<32x128xbf16>, vector<2x128xf32> -> vector<2x128xf32>
    %442 = vector.broadcast %7 : vector<1x128xf32> to vector<2x128xf32>
    %443 = arith.addf %441, %442 : vector<2x128xf32>
    %444 = vector.extract_strided_slice %443 {offsets = [0, 0], sizes = [2, 32], strides = [1, 1]} : vector<2x128xf32> to vector<2x32xf32>
    %445 = vector.extract_strided_slice %443 {offsets = [0, 32], sizes = [2, 96], strides = [1, 1]} : vector<2x128xf32> to vector<2x96xf32>
    %446 = vector.shape_cast %444 : vector<2x32xf32> to vector<2x1x32xf32>
    %447 = vector.broadcast %446 : vector<2x1x32xf32> to vector<2x8x32xf32>
    %448 = arith.addf %16, %447 : vector<2x8x32xf32>
    %449 = math.tanh %448 : vector<2x8x32xf32>
    %450 = vector.shape_cast %10 : vector<1x32xf32> to vector<1x1x32xf32>
    %451 = vector.broadcast %450 : vector<1x1x32xf32> to vector<2x8x32xf32>
    %452 = arith.mulf %449, %451 : vector<2x8x32xf32>
    %cst_109 = arith.constant dense<0.000000e+00> : vector<2x8xf32>
    %453 = vector.multi_reduction <add>, %452, %cst_109 [2] : vector<2x8x32xf32> to vector<2x8xf32>
    %cst_110 = arith.constant dense<0xFF800000> : vector<2xf32>
    %454 = vector.multi_reduction <maximumf>, %453, %cst_110 [1] : vector<2x8xf32> to vector<2xf32>
    %455 = vector.shape_cast %454 : vector<2xf32> to vector<2x1xf32>
    %456 = vector.broadcast %455 : vector<2x1xf32> to vector<2x8xf32>
    %457 = arith.subf %453, %456 : vector<2x8xf32>
    %458 = math.exp %457 : vector<2x8xf32>
    %cst_111 = arith.constant dense<0.000000e+00> : vector<2xf32>
    %459 = vector.multi_reduction <add>, %458, %cst_111 [1] : vector<2x8xf32> to vector<2xf32>
    %460 = vector.shape_cast %459 : vector<2xf32> to vector<2x1xf32>
    %461 = vector.broadcast %460 : vector<2x1xf32> to vector<2x8xf32>
    %462 = arith.divf %458, %461 : vector<2x8xf32>
    %463 = arith.truncf %462 : vector<2x8xf32> to vector<2x8xbf16>
    %464 = vector.shape_cast %463 : vector<2x8xbf16> to vector<2x1x8xbf16>
    "tpu.trace_start"() <{level = 10 : i32, message = "bqt,btx->bqx"}> : () -> ()
    %cst_112 = arith.constant dense<0.000000e+00> : vector<2x1x32xf32>
    %465 = tpu.matmul %464, %0, %cst_112 {dimension_numbers = #tpu.dot_dimension_numbers<[2], [1], [1], [2], [0, 0, 0, 1, 1, 2], [0], [0]>} : vector<2x1x8xbf16>, vector<2x8x32xbf16>, vector<2x1x32xf32> -> vector<2x1x32xf32>
    "tpu.trace_stop"() : () -> ()
    %466 = vector.shape_cast %465 : vector<2x1x32xf32> to vector<2x32xf32>
    %467 = arith.index_cast %c6_i32 : i32 to index
    %c0_113 = arith.constant 0 : index
    %c0_114 = arith.constant 0 : index
    %468 = vector.load %arg1[%467, %c0_113, %c0_114] : memref<8x2x17xf32, #tpu.memory_space<vmem>>, vector<1x2x17xf32>
    %469 = vector.shape_cast %468 : vector<1x2x17xf32> to vector<2x17xf32>
    %cst_115 = arith.constant dense<0.000000e+00> : vector<2x96xf32>
    %470 = tpu.matmul %469, %18, %cst_115 {dimension_numbers = #tpu.dot_dimension_numbers<[1], [0], [0], [1], [0, 0, 1, 1], [], []>} : vector<2x17xf32>, vector<17x96xf32>, vector<2x96xf32> -> vector<2x96xf32>
    %471 = arith.truncf %466 : vector<2x32xf32> to vector<2x32xbf16>
    %cst_116 = arith.constant dense<0.000000e+00> : vector<2x96xf32>
    %472 = tpu.matmul %471, %2, %cst_116 {dimension_numbers = #tpu.dot_dimension_numbers<[1], [0], [0], [1], [0, 0, 1, 1], [], []>} : vector<2x32xbf16>, vector<32x96xbf16>, vector<2x96xf32> -> vector<2x96xf32>
    %473 = arith.addf %470, %472 : vector<2x96xf32>
    %474 = vector.broadcast %8 : vector<1x96xf32> to vector<2x96xf32>
    %475 = arith.addf %473, %474 : vector<2x96xf32>
    %476 = vector.extract_strided_slice %475 {offsets = [0, 0], sizes = [2, 32], strides = [1, 1]} : vector<2x96xf32> to vector<2x32xf32>
    %477 = vector.extract_strided_slice %445 {offsets = [0, 0], sizes = [2, 32], strides = [1, 1]} : vector<2x96xf32> to vector<2x32xf32>
    %478 = arith.addf %476, %477 : vector<2x32xf32>
    %479 = arith.negf %478 : vector<2x32xf32>
    %480 = math.exp %479 : vector<2x32xf32>
    %cst_117 = arith.constant 1.000000e+00 : f32
    %481 = vector.broadcast %cst_117 : f32 to vector<2x32xf32>
    %482 = arith.addf %481, %480 : vector<2x32xf32>
    %483 = arith.divf %481, %482 : vector<2x32xf32>
    %484 = vector.extract_strided_slice %475 {offsets = [0, 32], sizes = [2, 32], strides = [1, 1]} : vector<2x96xf32> to vector<2x32xf32>
    %485 = vector.extract_strided_slice %445 {offsets = [0, 32], sizes = [2, 32], strides = [1, 1]} : vector<2x96xf32> to vector<2x32xf32>
    %486 = arith.addf %484, %485 : vector<2x32xf32>
    %487 = arith.negf %486 : vector<2x32xf32>
    %488 = math.exp %487 : vector<2x32xf32>
    %cst_118 = arith.constant 1.000000e+00 : f32
    %489 = vector.broadcast %cst_118 : f32 to vector<2x32xf32>
    %490 = arith.addf %489, %488 : vector<2x32xf32>
    %491 = arith.divf %489, %490 : vector<2x32xf32>
    %492 = vector.extract_strided_slice %475 {offsets = [0, 64], sizes = [2, 32], strides = [1, 1]} : vector<2x96xf32> to vector<2x32xf32>
    %493 = vector.extract_strided_slice %445 {offsets = [0, 64], sizes = [2, 32], strides = [1, 1]} : vector<2x96xf32> to vector<2x32xf32>
    %494 = arith.mulf %483, %493 : vector<2x32xf32>
    %495 = arith.addf %492, %494 : vector<2x32xf32>
    %496 = math.tanh %495 : vector<2x32xf32>
    %cst_119 = arith.constant 1.000000e+00 : f32
    %497 = vector.broadcast %cst_119 : f32 to vector<2x32xf32>
    %498 = arith.subf %497, %491 : vector<2x32xf32>
    %499 = arith.mulf %498, %496 : vector<2x32xf32>
    %500 = arith.mulf %491, %431 : vector<2x32xf32>
    %501 = arith.addf %499, %500 : vector<2x32xf32>
    %502 = arith.truncf %501 : vector<2x32xf32> to vector<2x32xbf16>
    %cst_120 = arith.constant dense<0.000000e+00> : vector<2x16xf32>
    %503 = tpu.matmul %502, %5, %cst_120 {dimension_numbers = #tpu.dot_dimension_numbers<[1], [0], [0], [1], [0, 0, 1, 1], [], []>} : vector<2x32xbf16>, vector<32x16xbf16>, vector<2x16xf32> -> vector<2x16xf32>
    %504 = vector.broadcast %9 : vector<1x16xf32> to vector<2x16xf32>
    %505 = arith.addf %503, %504 : vector<2x16xf32>
    %506 = arith.index_cast %c6_i32 : i32 to index
    %c0_121 = arith.constant 0 : index
    %c0_122 = arith.constant 0 : index
    %507 = vector.load %arg5[%506, %c0_121, %c0_122] : memref<8x2x16xf32, #tpu.memory_space<vmem>>, vector<1x2x16xf32>
    %508 = vector.shape_cast %507 : vector<1x2x16xf32> to vector<2x16xf32>
    %509 = vector.shape_cast %505 : vector<2x16xf32> to vector<1x2x16xf32>
    tpu.vector_store %arg5[%506, %c0_121, %c0_122], %509 {strides = array<i32>} : memref<8x2x16xf32, #tpu.memory_space<vmem>>, vector<1x2x16xf32>,
    %c7_i32 = arith.constant 7 : i32
    %510 = arith.truncf %501 : vector<2x32xf32> to vector<2x32xbf16>
    %cst_123 = arith.constant dense<0.000000e+00> : vector<2x128xf32>
    %511 = tpu.matmul %510, %1, %cst_123 {dimension_numbers = #tpu.dot_dimension_numbers<[1], [0], [0], [1], [0, 0, 1, 1], [], []>} : vector<2x32xbf16>, vector<32x128xbf16>, vector<2x128xf32> -> vector<2x128xf32>
    %512 = vector.broadcast %7 : vector<1x128xf32> to vector<2x128xf32>
    %513 = arith.addf %511, %512 : vector<2x128xf32>
    %514 = vector.extract_strided_slice %513 {offsets = [0, 0], sizes = [2, 32], strides = [1, 1]} : vector<2x128xf32> to vector<2x32xf32>
    %515 = vector.extract_strided_slice %513 {offsets = [0, 32], sizes = [2, 96], strides = [1, 1]} : vector<2x128xf32> to vector<2x96xf32>
    %516 = vector.shape_cast %514 : vector<2x32xf32> to vector<2x1x32xf32>
    %517 = vector.broadcast %516 : vector<2x1x32xf32> to vector<2x8x32xf32>
    %518 = arith.addf %16, %517 : vector<2x8x32xf32>
    %519 = math.tanh %518 : vector<2x8x32xf32>
    %520 = vector.shape_cast %10 : vector<1x32xf32> to vector<1x1x32xf32>
    %521 = vector.broadcast %520 : vector<1x1x32xf32> to vector<2x8x32xf32>
    %522 = arith.mulf %519, %521 : vector<2x8x32xf32>
    %cst_124 = arith.constant dense<0.000000e+00> : vector<2x8xf32>
    %523 = vector.multi_reduction <add>, %522, %cst_124 [2] : vector<2x8x32xf32> to vector<2x8xf32>
    %cst_125 = arith.constant dense<0xFF800000> : vector<2xf32>
    %524 = vector.multi_reduction <maximumf>, %523, %cst_125 [1] : vector<2x8xf32> to vector<2xf32>
    %525 = vector.shape_cast %524 : vector<2xf32> to vector<2x1xf32>
    %526 = vector.broadcast %525 : vector<2x1xf32> to vector<2x8xf32>
    %527 = arith.subf %523, %526 : vector<2x8xf32>
    %528 = math.exp %527 : vector<2x8xf32>
    %cst_126 = arith.constant dense<0.000000e+00> : vector<2xf32>
    %529 = vector.multi_reduction <add>, %528, %cst_126 [1] : vector<2x8xf32> to vector<2xf32>
    %530 = vector.shape_cast %529 : vector<2xf32> to vector<2x1xf32>
    %531 = vector.broadcast %530 : vector<2x1xf32> to vector<2x8xf32>
    %532 = arith.divf %528, %531 : vector<2x8xf32>
    %533 = arith.truncf %532 : vector<2x8xf32> to vector<2x8xbf16>
    %534 = vector.shape_cast %533 : vector<2x8xbf16> to vector<2x1x8xbf16>
    "tpu.trace_start"() <{level = 10 : i32, message = "bqt,btx->bqx"}> : () -> ()
    %cst_127 = arith.constant dense<0.000000e+00> : vector<2x1x32xf32>
    %535 = tpu.matmul %534, %0, %cst_127 {dimension_numbers = #tpu.dot_dimension_numbers<[2], [1], [1], [2], [0, 0, 0, 1, 1, 2], [0], [0]>} : vector<2x1x8xbf16>, vector<2x8x32xbf16>, vector<2x1x32xf32> -> vector<2x1x32xf32>
    "tpu.trace_stop"() : () -> ()
    %536 = vector.shape_cast %535 : vector<2x1x32xf32> to vector<2x32xf32>
    %537 = arith.index_cast %c7_i32 : i32 to index
    %c0_128 = arith.constant 0 : index
    %c0_129 = arith.constant 0 : index
    %538 = vector.load %arg1[%537, %c0_128, %c0_129] : memref<8x2x17xf32, #tpu.memory_space<vmem>>, vector<1x2x17xf32>
    %539 = vector.shape_cast %538 : vector<1x2x17xf32> to vector<2x17xf32>
    %cst_130 = arith.constant dense<0.000000e+00> : vector<2x96xf32>
    %540 = tpu.matmul %539, %18, %cst_130 {dimension_numbers = #tpu.dot_dimension_numbers<[1], [0], [0], [1], [0, 0, 1, 1], [], []>} : vector<2x17xf32>, vector<17x96xf32>, vector<2x96xf32> -> vector<2x96xf32>
    %541 = arith.truncf %536 : vector<2x32xf32> to vector<2x32xbf16>
    %cst_131 = arith.constant dense<0.000000e+00> : vector<2x96xf32>
    %542 = tpu.matmul %541, %2, %cst_131 {dimension_numbers = #tpu.dot_dimension_numbers<[1], [0], [0], [1], [0, 0, 1, 1], [], []>} : vector<2x32xbf16>, vector<32x96xbf16>, vector<2x96xf32> -> vector<2x96xf32>
    %543 = arith.addf %540, %542 : vector<2x96xf32>
    %544 = vector.broadcast %8 : vector<1x96xf32> to vector<2x96xf32>
    %545 = arith.addf %543, %544 : vector<2x96xf32>
    %546 = vector.extract_strided_slice %545 {offsets = [0, 0], sizes = [2, 32], strides = [1, 1]} : vector<2x96xf32> to vector<2x32xf32>
    %547 = vector.extract_strided_slice %515 {offsets = [0, 0], sizes = [2, 32], strides = [1, 1]} : vector<2x96xf32> to vector<2x32xf32>
    %548 = arith.addf %546, %547 : vector<2x32xf32>
    %549 = arith.negf %548 : vector<2x32xf32>
    %550 = math.exp %549 : vector<2x32xf32>
    %cst_132 = arith.constant 1.000000e+00 : f32
    %551 = vector.broadcast %cst_132 : f32 to vector<2x32xf32>
    %552 = arith.addf %551, %550 : vector<2x32xf32>
    %553 = arith.divf %551, %552 : vector<2x32xf32>
    %554 = vector.extract_strided_slice %545 {offsets = [0, 32], sizes = [2, 32], strides = [1, 1]} : vector<2x96xf32> to vector<2x32xf32>
    %555 = vector.extract_strided_slice %515 {offsets = [0, 32], sizes = [2, 32], strides = [1, 1]} : vector<2x96xf32> to vector<2x32xf32>
    %556 = arith.addf %554, %555 : vector<2x32xf32>
    %557 = arith.negf %556 : vector<2x32xf32>
    %558 = math.exp %557 : vector<2x32xf32>
    %cst_133 = arith.constant 1.000000e+00 : f32
    %559 = vector.broadcast %cst_133 : f32 to vector<2x32xf32>
    %560 = arith.addf %559, %558 : vector<2x32xf32>
    %561 = arith.divf %559, %560 : vector<2x32xf32>
    %562 = vector.extract_strided_slice %545 {offsets = [0, 64], sizes = [2, 32], strides = [1, 1]} : vector<2x96xf32> to vector<2x32xf32>
    %563 = vector.extract_strided_slice %515 {offsets = [0, 64], sizes = [2, 32], strides = [1, 1]} : vector<2x96xf32> to vector<2x32xf32>
    %564 = arith.mulf %553, %563 : vector<2x32xf32>
    %565 = arith.addf %562, %564 : vector<2x32xf32>
    %566 = math.tanh %565 : vector<2x32xf32>
    %cst_134 = arith.constant 1.000000e+00 : f32
    %567 = vector.broadcast %cst_134 : f32 to vector<2x32xf32>
    %568 = arith.subf %567, %561 : vector<2x32xf32>
    %569 = arith.mulf %568, %566 : vector<2x32xf32>
    %570 = arith.mulf %561, %501 : vector<2x32xf32>
    %571 = arith.addf %569, %570 : vector<2x32xf32>
    %572 = arith.truncf %571 : vector<2x32xf32> to vector<2x32xbf16>
    %cst_135 = arith.constant dense<0.000000e+00> : vector<2x16xf32>
    %573 = tpu.matmul %572, %5, %cst_135 {dimension_numbers = #tpu.dot_dimension_numbers<[1], [0], [0], [1], [0, 0, 1, 1], [], []>} : vector<2x32xbf16>, vector<32x16xbf16>, vector<2x16xf32> -> vector<2x16xf32>
    %574 = vector.broadcast %9 : vector<1x16xf32> to vector<2x16xf32>
    %575 = arith.addf %573, %574 : vector<2x16xf32>
    %576 = arith.index_cast %c7_i32 : i32 to index
    %c0_136 = arith.constant 0 : index
    %c0_137 = arith.constant 0 : index
    %577 = vector.load %arg5[%576, %c0_136, %c0_137] : memref<8x2x16xf32, #tpu.memory_space<vmem>>, vector<1x2x16xf32>
    %578 = vector.shape_cast %577 : vector<1x2x16xf32> to vector<2x16xf32>
    %579 = vector.shape_cast %575 : vector<2x16xf32> to vector<1x2x16xf32>
    tpu.vector_store %arg5[%576, %c0_136, %c0_137], %579 {strides = array<i32>} : memref<8x2x16xf32, #tpu.memory_space<vmem>>, vector<1x2x16xf32>,
    %c8_i32 = arith.constant 8 : i32
    return
  }
}

</mosaic_0001>

<llo_original>
// kernel: tpu_custom_call.1
$region0: #{tpu_custom_call.1}
  #allocation0 [shape = 'u32[]', space=smem, size = 0x4, offset = 0x4, fixed_abs, tag = 'smem constant byte address 0x4 - core index']
  #allocation1 [shape = 'u32[144,128]{1,0:T(1,128)}', space=vmem, size = 0x12000, scoped, tag = 'internal scratch']
  %s0 = inlined_call_operand.hbm [shape: bf16[2,8,32], index: 0, kind: input, shape index: {}]
  %s1 = inlined_call_operand.hbm [shape: f32[8,2,17], index: 1, kind: input, shape index: {}]
  %s2 = inlined_call_operand.hbm [shape: bf16[32,368], index: 2, kind: input, shape index: {}]
  %s3 = inlined_call_operand.hbm [shape: bf16[17,32], index: 3, kind: input, shape index: {}]
  %s4 = inlined_call_operand.vmem [shape: f32[1,304], index: 4, kind: input, shape index: {}]
  %s5 = inlined_call_operand.hbm [shape: f32[8,2,16], index: 5, kind: output, shape index: {}]
  %s6 = sld [smem:[#allocation0]]
  $region46: #{tpu_custom_call.1} parent=0
    _
  %s8 = ssub.s32 1, %s6
  %s9 = scalar_select 0, %s8, %s6
  $region1: #{tpu_custom_call.1} parent=0
    #allocation2 [shape = 'u8[4096]{0}', space=vmem, size = 0x1000, scoped, tag = 'input window, operand 0, single buffered']
    #allocation3 [shape = 's32[1]{0}', space=sflag, size = 0x4, scoped, tag = 'scoped memory for tpu_custom_call.1']
    #allocation4 [shape = 's32[1]{0}', space=sflag, size = 0x4, scoped, tag = 'scoped memory for tpu_custom_call.1']
    #allocation5 [shape = 'u8[8192]{0}', space=vmem, size = 0x2000, scoped, tag = 'input window, operand 1, single buffered']
    #allocation6 [shape = 's32[1]{0}', space=sflag, size = 0x4, scoped, tag = 'scoped memory for tpu_custom_call.1']
    #allocation7 [shape = 'u8[24576]{0}', space=vmem, size = 0x6000, scoped, tag = 'input window, operand 2, single buffered']
    #allocation8 [shape = 'u8[6144]{0}', space=vmem, size = 0x1800, scoped, tag = 'input window, operand 3, single buffered']
    #allocation9 [shape = 's32[1]{0}', space=sflag, size = 0x4, scoped, tag = 'scoped memory for tpu_custom_call.1']
    #allocation10 [shape = 'u8[8192]{0}', space=vmem, size = 0x2000, scoped, tag = 'output window, operand 0, single buffered']
    %10 = vsyncpa [#allocation3], 0
    %11 = vsyncpa [#allocation6], 0
    %12 = vsyncpa [#allocation9], 0
    %13 = vsyncpa [#allocation4], 0
    // Predicated region
    $region2: #{tpu_custom_call.1} parent=1 // pred_check
      _
    $region3: #{tpu_custom_call.1} parent=1 // pred_check_branch
      %15 = sbr.rel (0) target = $region5
    $region4: #{tpu_custom_call.1} parent=1 // pred_region
      %s17 = ssub.s32 128, 128
      %18 = vsyncadd [#allocation3], %s17
      %s19 = sshll.u32 [#allocation2], 4
      %s20 = int_to_ptr.vmem [resolvable:$true] %s19
      %25 = dma.hbm_to_vmem [thread:$0]  %s0, 128, %s20, [#allocation3], 64, 64, 4
    $region5: #{tpu_custom_call.1} parent=1 // pred_fallthru
      _
    // Predicated region
    $region6: #{tpu_custom_call.1} parent=1 // pred_check
      _
    $region7: #{tpu_custom_call.1} parent=1 // pred_check_branch
      %27 = sbr.rel (0) target = $region9
    $region8: #{tpu_custom_call.1} parent=1 // pred_region
      %s29 = ssub.s32 256, 256
      %30 = vsyncadd [#allocation6], %s29
      %s31 = sshll.u32 [#allocation5], 4
      %s32 = int_to_ptr.vmem [resolvable:$true] %s31
      %37 = dma.hbm_to_vmem [thread:$0]  %s1, 256, %s32, [#allocation6], 32, 32, 2
    $region9: #{tpu_custom_call.1} parent=1 // pred_fallthru
      _
    // Predicated region
    $region10: #{tpu_custom_call.1} parent=1 // pred_check
      _
    $region11: #{tpu_custom_call.1} parent=1 // pred_check_branch
      %39 = sbr.rel (0) target = $region13
    $region12: #{tpu_custom_call.1} parent=1 // pred_region
      %s41 = ssub.s32 768, 768
      %42 = vsyncadd [#allocation6], %s41
      %s43 = sshll.u32 [#allocation7], 4
      %s44 = int_to_ptr.vmem [resolvable:$true] %s43
      %49 = dma.hbm_to_vmem [thread:$0]  %s2, 768, %s44, [#allocation6], 192, 192, 12
    $region13: #{tpu_custom_call.1} parent=1 // pred_fallthru
      _
    // Predicated region
    $region14: #{tpu_custom_call.1} parent=1 // pred_check
      _
    $region15: #{tpu_custom_call.1} parent=1 // pred_check_branch
      %51 = sbr.rel (0) target = $region17
    $region16: #{tpu_custom_call.1} parent=1 // pred_region
      %s53 = ssub.s32 192, 192
      %54 = vsyncadd [#allocation9], %s53
      %s55 = sshll.u32 [#allocation8], 4
      %s56 = int_to_ptr.vmem [resolvable:$true] %s55
      %61 = dma.hbm_to_vmem [thread:$0]  %s3, 192, %s56, [#allocation9], 64, 64, 4
    $region17: #{tpu_custom_call.1} parent=1 // pred_fallthru
      _
    // Predicated region
    $region18: #{tpu_custom_call.1} parent=1 // pred_check
      _
    $region19: #{tpu_custom_call.1} parent=1 // pred_check_branch
      %63 = sbr.rel (0) target = $region21
    $region20: #{tpu_custom_call.1} parent=1 // pred_region
      _
    $region21: #{tpu_custom_call.1} parent=1 // pred_fallthru
      _
    // Predicated region
    $region22: #{tpu_custom_call.1} parent=1 // pred_check
      _
    $region23: #{tpu_custom_call.1} parent=1 // pred_check_branch
      %65 = sbr.rel (0) target = $region25
    $region24: #{tpu_custom_call.1} parent=1 // pred_region
      %66 = dma.done [#allocation3], 128
    $region25: #{tpu_custom_call.1} parent=1 // pred_fallthru
      _
    // Predicated region
    $region26: #{tpu_custom_call.1} parent=1 // pred_check
      _
    $region27: #{tpu_custom_call.1} parent=1 // pred_check_branch
      %68 = sbr.rel (0) target = $region29
    $region28: #{tpu_custom_call.1} parent=1 // pred_region
      %69 = dma.done [#allocation6], 256
    $region29: #{tpu_custom_call.1} parent=1 // pred_fallthru
      _
    // Predicated region
    $region30: #{tpu_custom_call.1} parent=1 // pred_check
      _
    $region31: #{tpu_custom_call.1} parent=1 // pred_check_branch
      %71 = sbr.rel (0) target = $region33
    $region32: #{tpu_custom_call.1} parent=1 // pred_region
      %72 = dma.done [#allocation6], 768
    $region33: #{tpu_custom_call.1} parent=1 // pred_fallthru
      _
    // Predicated region
    $region34: #{tpu_custom_call.1} parent=1 // pred_check
      _
    $region35: #{tpu_custom_call.1} parent=1 // pred_check_branch
      %74 = sbr.rel (0) target = $region37
    $region36: #{tpu_custom_call.1} parent=1 // pred_region
      %75 = dma.done [#allocation9], 192
    $region37: #{tpu_custom_call.1} parent=1 // pred_fallthru
      _
    %v77 = vld [vmem:[#allocation2] sm:$0xf]
    %v78 = vld [vmem:[#allocation2 + $0x4] sm:$0xf]
    %v79 = vld [vmem:[#allocation7] sm:$0xf]
    %v80 = vld [vmem:[#allocation7 + $0xc] sm:$0xf]
    %v81 = vld [vmem:[#allocation7 + $0x18] sm:$0xf]
    %v82 = vld [vmem:[#allocation7 + $0x24] sm:$0xf]
    %v83 = vld [vmem:[#allocation7 + $0x4] sm:$0xf]
    %v84 = vld [vmem:[#allocation7 + $0x10] sm:$0xf]
    %v85 = vld [vmem:[#allocation7 + $0x1c] sm:$0xf]
    %v86 = vld [vmem:[#allocation7 + $0x28] sm:$0xf]
    %v87 = vld [vmem:[#allocation7 + $0x4] sm:$0xff]
    %v88 = vld [vmem:[#allocation7 + $0x10] sm:$0xff]
    %v89 = vld [vmem:[#allocation7 + $0x1c] sm:$0xff]
    %v90 = vld [vmem:[#allocation7 + $0x28] sm:$0xff]
    %v91 = vld [vmem:[#allocation7 + $0x8] sm:$0xf]
    %v92 = vld [vmem:[#allocation7 + $0x14] sm:$0xf]
    %v93 = vld [vmem:[#allocation7 + $0x20] sm:$0xf]
    %v94 = vld [vmem:[#allocation7 + $0x2c] sm:$0xf]
    %v95 = vld [vmem:[%s4] sm:$0x1]
    %v96 = vld [vmem:[%s4] sm:$0x3]
    %v97 = vld [vmem:[%s4 + $0x1] sm:$0x1]
    %v98 = vld [vmem:[%s4 + $0x2] sm:$0x1]
    %v101 = vunpack.c.l.b16 %v77
    %v102 = vunpack.c.l.b16 %v78
    %v103 = vpack.c.b16 %v102, %v101
    %v108 = vunpack.c.l.b16 %v91
    %v109 = vunpack.c.l.b16 %v92
    %v110 = vunpack.c.l.b16 %v93
    %v111 = vunpack.c.l.b16 %v94
    %v112 = vpack.c.b16 %v109, %v108
    %v113 = vpack.c.b16 %v111, %v110
    %114 = vrot.lane.b32.xlu0 %v112, 64
    %v115 = vpop.permute.xlu0 %114
    %116 = vrot.lane.b32.xlu0 %v113, 64
    %v117 = vpop.permute.xlu0 %116
    %vm120 = vcmask 261120
    %v122 = vsel %vm120, %v103, 0
    %124 = vmatprep.subr.bf16.mxu0 0
    %125 = vmatpush1.bf16.msra.mxu0 %v115
    %126 = vmatprep.subr.bf16.mxu0 0
    %127 = vmatpush1.bf16.msra.mxu0 %v117
    %128 = vmatprep.subr.bf16.mxu0 0
    %129 = vmatpush1.bf16.msra.mxu0 0
    %130 = vmatprep.subr.bf16.mxu0 0
    %131 = vmatpush1.bf16.msra.mxu0 0
    %132 = vmatprep.subr.bf16.mxu0 0
    %133 = vmatpush1.bf16.msra.mxu0 0
    %134 = vmatprep.subr.bf16.mxu0 0
    %135 = vmatpush1.bf16.msra.mxu0 0
    %136 = vmatprep.subr.bf16.mxu0 0
    %137 = vmatpush1.bf16.msra.mxu0 0
    %138 = vmatprep.subr.bf16.mxu0 0
    %139 = vmatpush1.bf16.msra.mxu0 0
    %140 = vmatprep.subr.bf16.mxu0 0
    %141 = vmatpush1.bf16.msra.mxu0 0
    %142 = vmatprep.subr.bf16.mxu0 0
    %143 = vmatpush1.bf16.msra.mxu0 0
    %144 = vmatprep.subr.bf16.mxu0 0
    %145 = vmatpush1.bf16.msra.mxu0 0
    %146 = vmatprep.subr.bf16.mxu0 0
    %147 = vmatpush1.bf16.msra.mxu0 0
    %148 = vmatprep.subr.bf16.mxu0 0
    %149 = vmatpush1.bf16.msra.mxu0 0
    %150 = vmatprep.subr.bf16.mxu0 0
    %151 = vmatpush1.bf16.msra.mxu0 0
    %152 = vmatprep.subr.bf16.mxu0 0
    %153 = vmatpush1.bf16.msra.mxu0 0
    %154 = vmatprep.subr.bf16.mxu0 0
    %155 = vmatpush1.bf16.msra.mxu0 0
    %156 = vmatprep.mubr.bf16.mxu0 0
    %157 = vmatmul.mubr.bf16.gmra.mrb[0].mxu0 %v122
    %v158 = vpop.f32.mrb[0].mxu0
    %v159 = vadd.f32 0.0, %v158
    %v160 = vpop.f32.mrb[0].mxu0
    %v161 = vpop.f32.mrb[0].mxu0
    %v162 = vadd.f32 0.0, %v161
    %v163 = vpop.f32.mrb[0].mxu0
    %164 = vdwg.mxu0
    %v166 = vlaneseq
    %v167 = vshrl.u32 %v166, 7
    %v168 = vsub.s32 0, %v167
    %v169 = vrot.slane %v95, %v168
    %v171 = vadd.f32 %v159, %v169
    %v172 = vadd.f32 %v162, %v169
    %v173 = vld [vmem:[#allocation8] sm:$0xf]
    %v174 = vld [vmem:[#allocation8 + $0x4] sm:$0xf]
    %v175 = vld [vmem:[#allocation8 + $0x8] sm:$0x1]
    %v179 = vunpack.c.l.b16 %v173
    %v180 = vunpack.c.l.b16 %v174
    %v181 = vunpack.c.l.b16 %v175
    %v182 = vpack.c.b16 %v180, %v179
    %v183 = vpack.c.b16 %v181, %v181
    %v188 = vunpack.c.l.b16 %v87
    %v189 = vunpack.c.h.b16 %v87
    %v190 = vunpack.c.l.b16 %v88
    %v191 = vunpack.c.h.b16 %v88
    %v192 = vunpack.c.l.b16 %v89
    %v193 = vunpack.c.h.b16 %v89
    %v194 = vunpack.c.l.b16 %v90
    %v195 = vunpack.c.h.b16 %v90
    %v196 = vpack.c.b16 %v190, %v188
    %v197 = vpack.c.b16 %v191, %v189
    %v198 = vpack.c.b16 %v194, %v192
    %v199 = vpack.c.b16 %v195, %v193
    %200 = vrot.lane.b32.xlu0 %v196, 32
    %v201 = vpop.permute.xlu0 %200
    %202 = vrot.lane.b32.xlu0 %v197, 32
    %v203 = vpop.permute.xlu0 %202
    %204 = vrot.lane.b32.xlu0 %v198, 32
    %v205 = vpop.permute.xlu0 %204
    %206 = vrot.lane.b32.xlu0 %v199, 32
    %v207 = vpop.permute.xlu0 %206
    %vm208 = vcmask 261120
    %v209 = vsel %vm208, %v201, %v203
    %v210 = vsel %vm208, %v205, %v207
    %v214 = vsel %vm120, %v182, 0
    %v217 = vsel %vm120, %v183, 0
    %219 = vmatprep.subr.bf16.mxu0 0
    %220 = vmatpush1.bf16.msra.mxu0 %v209
    %221 = vmatprep.subr.bf16.mxu0 0
    %222 = vmatpush1.bf16.msra.mxu0 %v210
    %223 = vmatprep.subr.bf16.mxu0 0
    %224 = vmatpush1.bf16.msra.mxu0 0
    %225 = vmatprep.subr.bf16.mxu0 0
    %226 = vmatpush1.bf16.msra.mxu0 0
    %227 = vmatprep.subr.bf16.mxu0 0
    %228 = vmatpush1.bf16.msra.mxu0 0
    %229 = vmatprep.subr.bf16.mxu0 0
    %230 = vmatpush1.bf16.msra.mxu0 0
    %231 = vmatprep.subr.bf16.mxu0 0
    %232 = vmatpush1.bf16.msra.mxu0 0
    %233 = vmatprep.subr.bf16.mxu0 0
    %234 = vmatpush1.bf16.msra.mxu0 0
    %235 = vmatprep.subr.bf16.mxu0 0
    %236 = vmatpush1.bf16.msra.mxu0 0
    %237 = vmatprep.subr.bf16.mxu0 0
    %238 = vmatpush1.bf16.msra.mxu0 0
    %239 = vmatprep.subr.bf16.mxu0 0
    %240 = vmatpush1.bf16.msra.mxu0 0
    %241 = vmatprep.subr.bf16.mxu0 0
    %242 = vmatpush1.bf16.msra.mxu0 0
    %243 = vmatprep.subr.bf16.mxu0 0
    %244 = vmatpush1.bf16.msra.mxu0 0
    %245 = vmatprep.subr.bf16.mxu0 0
    %246 = vmatpush1.bf16.msra.mxu0 0
    %247 = vmatprep.subr.bf16.mxu0 0
    %248 = vmatpush1.bf16.msra.mxu0 0
    %249 = vmatprep.subr.bf16.mxu0 0
    %250 = vmatpush1.bf16.msra.mxu0 0
    %251 = vmatprep.mubr.bf16.mxu0 0
    %252 = vmatmul.mubr.bf16.gmra.mrb[0].mxu0 %v214
    %v253 = vpop.f32.mrb[0].mxu0
    %v254 = vadd.f32 0.0, %v253
    %v255 = vpop.f32.mrb[0].mxu0
    %v256 = vpop.f32.mrb[0].mxu0
    %v257 = vadd.f32 0.0, %v256
    %v258 = vpop.f32.mrb[0].mxu0
    %259 = vmatprep.mubr.bf16.mxu0 0
    %260 = vmatmul.mubr.bf16.gmra.mrb[0].mxu0 %v217
    %v261 = vpop.f32.mrb[0].mxu0
    %v262 = vadd.f32 0.0, %v261
    %v263 = vpop.f32.mrb[0].mxu0
    %v264 = vpop.f32.mrb[0].mxu0
    %v265 = vpop.f32.mrb[0].mxu0
    %266 = vdwg.mxu0
    %v268 = vlaneseq
    %v269 = vshrl.u32 %v268, 7
    %v270 = vsub.s32 0, %v269
    %v271 = vrot.slane %v96, %v270
    %v272 = vlaneseq
    %v273 = vshrl.u32 %v272, 7
    %v274 = vsub.s32 1, %v273
    %v275 = vrot.slane %v96, %v274
    %v280 = vunpack.c.l.b16 %v79
    %v281 = vunpack.c.l.b16 %v80
    %v282 = vunpack.c.l.b16 %v81
    %v283 = vunpack.c.l.b16 %v82
    %v284 = vpack.c.b16 %v281, %v280
    %v285 = vpack.c.b16 %v283, %v282
    %288 = vrot.lane.b32.xlu0 %v271, 96
    %v289 = vpop.permute.xlu0 %288
    %290 = vrot.lane.b32.xlu0 %v275, 96
    %v291 = vpop.permute.xlu0 %290
    %vm292 = vcmask 785408
    %v293 = vsel %vm292, %v289, %v291
    %v296 = vsel %vm120, 0, 0
    %298 = vmatprep.subr.bf16.mxu0 0
    %299 = vmatpush1.bf16.msra.mxu0 %v284
    %300 = vmatprep.subr.bf16.mxu0 0
    %301 = vmatpush1.bf16.msra.mxu0 %v285
    %302 = vmatprep.subr.bf16.mxu0 0
    %303 = vmatpush1.bf16.msra.mxu0 0
    %304 = vmatprep.subr.bf16.mxu0 0
    %305 = vmatpush1.bf16.msra.mxu0 0
    %306 = vmatprep.subr.bf16.mxu0 0
    %307 = vmatpush1.bf16.msra.mxu0 0
    %308 = vmatprep.subr.bf16.mxu0 0
    %309 = vmatpush1.bf16.msra.mxu0 0
    %310 = vmatprep.subr.bf16.mxu0 0
    %311 = vmatpush1.bf16.msra.mxu0 0
    %312 = vmatprep.subr.bf16.mxu0 0
    %313 = vmatpush1.bf16.msra.mxu0 0
    %314 = vmatprep.subr.bf16.mxu0 0
    %315 = vmatpush1.bf16.msra.mxu0 0
    %316 = vmatprep.subr.bf16.mxu0 0
    %317 = vmatpush1.bf16.msra.mxu0 0
    %318 = vmatprep.subr.bf16.mxu0 0
    %319 = vmatpush1.bf16.msra.mxu0 0
    %320 = vmatprep.subr.bf16.mxu0 0
    %321 = vmatpush1.bf16.msra.mxu0 0
    %322 = vmatprep.subr.bf16.mxu0 0
    %323 = vmatpush1.bf16.msra.mxu0 0
    %324 = vmatprep.subr.bf16.mxu0 0
    %325 = vmatpush1.bf16.msra.mxu0 0
    %326 = vmatprep.subr.bf16.mxu0 0
    %327 = vmatpush1.bf16.msra.mxu0 0
    %328 = vmatprep.subr.bf16.mxu0 0
    %329 = vmatpush1.bf16.msra.mxu0 0
    %330 = vmatprep.mubr.bf16.mxu0 0
    %331 = vmatmul.mubr.bf16.gmra.mrb[0].mxu0 %v296
    %v332 = vpop.f32.mrb[0].mxu0
    %v333 = vadd.f32 %v293, %v332
    %v334 = vpop.f32.mrb[0].mxu0
    %v335 = vpop.f32.mrb[0].mxu0
    %v336 = vpop.f32.mrb[0].mxu0
    %337 = vdwg.mxu0
    %v340 = vunpack.c.l.s4 1966171168
    %v341 = vunpack.c.0.s8 %v340
    %v342 = vlaneseq
    %v343 = vshrl.u32 %v342, 7
    %v344 = vsub.s32 %v341, %v343
    %v345 = vrot.slane %v333, %v344
    %v346 = vcombine.high %v345, %v345
    %v348 = vunpack.c.l.s4 1966171168
    %v349 = vunpack.c.0.s8 %v348
    %v350 = vlaneseq
    %v351 = vshrl.u32 %v350, 7
    %v352 = vsub.s32 %v349, %v351
    %v353 = vrot.slane %v345, %v352
    %v355 = vunpack.c.l.s4 1966171168
    %v356 = vunpack.c.0.s8 %v355
    %v357 = vlaneseq
    %v358 = vshrl.u32 %v357, 7
    %v359 = vsub.s32 %v356, %v358
    %v360 = vrot.slane %v346, %v359
    %v361 = vlaneseq
    %v362 = vshrl.u32 %v361, 7
    %v363 = vsub.s32 0, %v362
    %v364 = vrot.slane %v353, %v363
    %v365 = vlaneseq
    %v366 = vshrl.u32 %v365, 7
    %v367 = vsub.s32 0, %v366
    %v368 = vrot.slane %v360, %v367
    %v371 = vadd.f32 %v171, %v364
    %v372 = vadd.f32 %v172, %v368
    %v373 = vtanh.pop %v371
    %v374 = vtanh.pop %v372
    %v376 = vlaneseq
    %v377 = vshrl.u32 %v376, 7
    %v378 = vsub.s32 0, %v377
    %v379 = vrot.slane %v98, %v378
    %380 = vrot.lane.b32.xlu0 %v379, 112
    %v381 = vpop.permute.xlu0 %380
    %v383 = vmul.f32 %v373, %v381
    %v384 = vmul.f32 %v374, %v381
    %v385 = vsel %vm120, %v383, 0.0
    %386 = vadd.xlane.f32.xlu0 %v385
    %v387 = vpop.xlane.xlu0 %386
    %v388 = vsel %vm120, %v384, 0.0
    %389 = vadd.xlane.f32.xlu0 %v388
    %v390 = vpop.xlane.xlu0 %389
    %v393 = vlaneseq
    %v394 = vand.u32 %v393, 127
    %v395 = vlaneseq
    %v396 = vshrl.u32 %v395, 7
    %v397 = vsub.s32 %v394, %v396
    %v398 = vrot.slane %v387, %v397
    %v399 = vlaneseq
    %v400 = vshrl.u32 %v399, 7
    %v401 = vsub.s32 %v394, %v400
    %v402 = vrot.slane %v390, %v401
    %vm403 = vcmask 1041409
    %v404 = vsel %vm403, %v402, %v398
    %vm406 = vcmask 58368
    %v407 = vsel %vm406, %v404, -inf
    %408 = vmax.xlane.f32.xlu0 %v407
    %v409 = vpop.xlane.xlu0 %408
    %v411 = vlaneseq
    %v412 = vshrl.u32 %v411, 7
    %v413 = vsub.s32 0, %v412
    %v414 = vrot.slane %v409, %v413
    %v415 = vlaneseq
    %v416 = vshrl.u32 %v415, 7
    %v417 = vsub.s32 1, %v416
    %v418 = vrot.slane %v409, %v417
    %v421 = vsub.f32 %v387, %v414
    %v422 = vsub.f32 %v390, %v418
    %v423 = vmul.f32 %v421, 1.442695
    %v424 = vpow.pop %v423
    %v425 = vmul.f32 %v422, 1.442695
    %v426 = vpow.pop %v425
    %429 = vset.pattern.permute.xlu0 0
    %430 = vperm.xlu0 %429, %v424
    %v431 = vpop.permute.xlu0 %430
    %432 = vset.pattern.permute.xlu0 0
    %433 = vperm.xlu0 %432, %v426
    %v434 = vpop.permute.xlu0 %433
    %v435 = vlaneseq
    %v436 = vshrl.u32 %v435, 7
    %v437 = vsub.s32 %v394, %v436
    %v438 = vrot.slane %v431, %v437
    %v439 = vlaneseq
    %v440 = vshrl.u32 %v439, 7
    %v441 = vsub.s32 %v394, %v440
    %v442 = vrot.slane %v434, %v441
    %v443 = vsel %vm403, %v442, %v438
    %v445 = vsel %vm406, %v443, 0.0
    %446 = vadd.xlane.f32.xlu0 %v445
    %v447 = vpop.xlane.xlu0 %446
    %v449 = vlaneseq
    %v450 = vshrl.u32 %v449, 7
    %v451 = vsub.s32 0, %v450
    %v452 = vrot.slane %v447, %v451
    %v453 = vlaneseq
    %v454 = vshrl.u32 %v453, 7
    %v455 = vsub.s32 1, %v454
    %v456 = vrot.slane %v447, %v455
    %v459 = vrcp.pop %v452
    %v460 = vmul.f32 %v424, %v459
    %v461 = vrcp.pop %v456
    %v462 = vmul.f32 %v426, %v461
    %v463 = vpack.c.bf16 %v460, %v460
    %v464 = vpack.c.bf16 %v462, %v462
    %v466 = vunpack.c.l.b16 %v463
    %467 = vset.pattern.permute.xlu0 0
    %468 = vperm.xlu0 %467, %v466
    %v469 = vpop.permute.xlu0 %468
    %v470 = vlaneseq
    %v471 = vshrl.u32 %v470, 7
    %v472 = vsub.s32 %v394, %v471
    %v473 = vrot.slane %v469, %v472
    %v474 = vpack.c.b16 %v473, %v473
    %vm475 = vcmask 64512
    %v477 = vsel %vm475, %v474, 0
    %vm479 = vcmask 1043456
    %v481 = vsel %vm479, %v77, 0
    %483 = vmatprep.subr.bf16.mxu0 0
    %484 = vmatpush1.bf16.msra.mxu0 %v481
    %485 = vmatprep.subr.bf16.mxu0 0
    %486 = vmatpush1.bf16.msra.mxu0 0
    %487 = vmatprep.subr.bf16.mxu0 0
    %488 = vmatpush1.bf16.msra.mxu0 0
    %489 = vmatprep.subr.bf16.mxu0 0
    %490 = vmatpush1.bf16.msra.mxu0 0
    %491 = vmatprep.subr.bf16.mxu0 0
    %492 = vmatpush1.bf16.msra.mxu0 0
    %493 = vmatprep.subr.bf16.mxu0 0
    %494 = vmatpush1.bf16.msra.mxu0 0
    %495 = vmatprep.subr.bf16.mxu0 0
    %496 = vmatpush1.bf16.msra.mxu0 0
    %497 = vmatprep.subr.bf16.mxu0 0
    %498 = vmatpush1.bf16.msra.mxu0 0
    %499 = vmatprep.subr.bf16.mxu0 0
    %500 = vmatpush1.bf16.msra.mxu0 0
    %501 = vmatprep.subr.bf16.mxu0 0
    %502 = vmatpush1.bf16.msra.mxu0 0
    %503 = vmatprep.subr.bf16.mxu0 0
    %504 = vmatpush1.bf16.msra.mxu0 0
    %505 = vmatprep.subr.bf16.mxu0 0
    %506 = vmatpush1.bf16.msra.mxu0 0
    %507 = vmatprep.subr.bf16.mxu0 0
    %508 = vmatpush1.bf16.msra.mxu0 0
    %509 = vmatprep.subr.bf16.mxu0 0
    %510 = vmatpush1.bf16.msra.mxu0 0
    %511 = vmatprep.subr.bf16.mxu0 0
    %512 = vmatpush1.bf16.msra.mxu0 0
    %513 = vmatprep.subr.bf16.mxu0 0
    %514 = vmatpush1.bf16.msra.mxu0 0
    %515 = vmatprep.mubr.bf16.mxu0 0
    %516 = vmatmul.mubr.bf16.gmra.mrb[0].mxu0 %v477
    %v517 = vpop.f32.mrb[0].mxu0
    %v518 = vadd.f32 0.0, %v517
    %v519 = vpop.f32.mrb[0].mxu0
    %v520 = vpop.f32.mrb[0].mxu0
    %v521 = vpop.f32.mrb[0].mxu0
    %522 = vdwg.mxu0
    %v524 = vunpack.c.l.b16 %v464
    %525 = vset.pattern.permute.xlu0 0
    %526 = vperm.xlu0 %525, %v524
    %v527 = vpop.permute.xlu0 %526
    %v528 = vlaneseq
    %v529 = vshrl.u32 %v528, 7
    %v530 = vsub.s32 %v394, %v529
    %v531 = vrot.slane %v527, %v530
    %v532 = vpack.c.b16 %v531, %v531
    %v534 = vsel %vm475, %v532, 0
    %v537 = vsel %vm479, %v78, 0
    %539 = vmatprep.subr.bf16.mxu0 0
    %540 = vmatpush1.bf16.msra.mxu0 %v537
    %541 = vmatprep.subr.bf16.mxu0 0
    %542 = vmatpush1.bf16.msra.mxu0 0
    %543 = vmatprep.subr.bf16.mxu0 0
    %544 = vmatpush1.bf16.msra.mxu0 0
    %545 = vmatprep.subr.bf16.mxu0 0
    %546 = vmatpush1.bf16.msra.mxu0 0
    %547 = vmatprep.subr.bf16.mxu0 0
    %548 = vmatpush1.bf16.msra.mxu0 0
    %549 = vmatprep.subr.bf16.mxu0 0
    %550 = vmatpush1.bf16.msra.mxu0 0
    %551 = vmatprep.subr.bf16.mxu0 0
    %552 = vmatpush1.bf16.msra.mxu0 0
    %553 = vmatprep.subr.bf16.mxu0 0
    %554 = vmatpush1.bf16.msra.mxu0 0
    %555 = vmatprep.subr.bf16.mxu0 0
    %556 = vmatpush1.bf16.msra.mxu0 0
    %557 = vmatprep.subr.bf16.mxu0 0
    %558 = vmatpush1.bf16.msra.mxu0 0
    %559 = vmatprep.subr.bf16.mxu0 0
    %560 = vmatpush1.bf16.msra.mxu0 0
    %561 = vmatprep.subr.bf16.mxu0 0
    %562 = vmatpush1.bf16.msra.mxu0 0
    %563 = vmatprep.subr.bf16.mxu0 0
    %564 = vmatpush1.bf16.msra.mxu0 0
    %565 = vmatprep.subr.bf16.mxu0 0
    %566 = vmatpush1.bf16.msra.mxu0 0
    %567 = vmatprep.subr.bf16.mxu0 0
    %568 = vmatpush1.bf16.msra.mxu0 0
    %569 = vmatprep.subr.bf16.mxu0 0
    %570 = vmatpush1.bf16.msra.mxu0 0
    %571 = vmatprep.mubr.bf16.mxu0 0
    %572 = vmatmul.mubr.bf16.gmra.mrb[0].mxu0 %v534
    %v573 = vpop.f32.mrb[0].mxu0
    %v574 = vadd.f32 0.0, %v573
    %v575 = vpop.f32.mrb[0].mxu0
    %v576 = vpop.f32.mrb[0].mxu0
    %v577 = vpop.f32.mrb[0].mxu0
    %578 = vdwg.mxu0
    %v579 = vld [vmem:[#allocation5] sm:$0x3]
    %v580 = vpack.c.bf16 %v518, %v518
    %v581 = vpack.c.bf16 %v574, %v574
    %v584 = vunpack.c.l.b16 %v580
    %v585 = vunpack.c.l.b16 %v581
    %v586 = vrot.slane %v585, 7
    %v587 = vsel %vm403, %v586, %v584
    %v588 = vpack.c.b16 %v587, %v587
    %v593 = vunpack.c.l.b16 %v83
    %v594 = vunpack.c.l.b16 %v84
    %v595 = vunpack.c.l.b16 %v85
    %v596 = vunpack.c.l.b16 %v86
    %v597 = vpack.c.b16 %v594, %v593
    %v598 = vpack.c.b16 %v596, %v595
    %v602 = vsel %vm120, %v588, 0
    %604 = vmatprep.subr.bf16.mxu0 0
    %605 = vmatpush1.bf16.msra.mxu0 %v597
    %606 = vmatprep.subr.bf16.mxu0 0
    %607 = vmatpush1.bf16.msra.mxu0 %v598
    %608 = vmatprep.subr.bf16.mxu0 0
    %609 = vmatpush1.bf16.msra.mxu0 0
    %610 = vmatprep.subr.bf16.mxu0 0
    %611 = vmatpush1.bf16.msra.mxu0 0
    %612 = vmatprep.subr.bf16.mxu0 0
    %613 = vmatpush1.bf16.msra.mxu0 0
    %614 = vmatprep.subr.bf16.mxu0 0
    %615 = vmatpush1.bf16.msra.mxu0 0
    %616 = vmatprep.subr.bf16.mxu0 0
    %617 = vmatpush1.bf16.msra.mxu0 0
    %618 = vmatprep.subr.bf16.mxu0 0
    %619 = vmatpush1.bf16.msra.mxu0 0
    %620 = vmatprep.subr.bf16.mxu0 0
    %621 = vmatpush1.bf16.msra.mxu0 0
    %622 = vmatprep.subr.bf16.mxu0 0
    %623 = vmatpush1.bf16.msra.mxu0 0
    %624 = vmatprep.subr.bf16.mxu0 0
    %625 = vmatpush1.bf16.msra.mxu0 0
    %626 = vmatprep.subr.bf16.mxu0 0
    %627 = vmatpush1.bf16.msra.mxu0 0
    %628 = vmatprep.subr.bf16.mxu0 0
    %629 = vmatpush1.bf16.msra.mxu0 0
    %630 = vmatprep.subr.bf16.mxu0 0
    %631 = vmatpush1.bf16.msra.mxu0 0
    %632 = vmatprep.subr.bf16.mxu0 0
    %633 = vmatpush1.bf16.msra.mxu0 0
    %634 = vmatprep.subr.bf16.mxu0 0
    %635 = vmatpush1.bf16.msra.mxu0 0
    %636 = vmatprep.mubr.bf16.mxu0 0
    %637 = vmatmul.mubr.bf16.gmra.mrb[0].mxu0 %v602
    %v638 = vpop.f32.mrb[0].mxu0
    %v639 = vadd.f32 0.0, %v638
    %v640 = vpop.f32.mrb[0].mxu0
    %v641 = vpop.f32.mrb[0].mxu0
    %v642 = vpop.f32.mrb[0].mxu0
    %643 = vdwg.mxu0
    %vm644 = vcmask 138240
    %v646 = vsel %vm644, %v579, 0
    %vm648 = vcmask 1040384
    %v650 = vsel %vm648, %v262, 0
    %652 = vmatprep.subr.mxu0 0.0
    %653 = vmatpush1.msra.mxu0 %v254
    %654 = vmatprep.subr.mxu0 0.0
    %655 = vmatpush1.msra.mxu0 %v257
    %656 = vmatprep.subr.mxu0 0.0
    %657 = vmatpush1.msra.mxu0 %v650
    %658 = vmatprep.subr.mxu0 0.0
    %659 = vmatpush1.msra.mxu0 0.0
    %660 = vmatprep.subr.mxu0 0.0
    %661 = vmatpush1.msra.mxu0 0.0
    %662 = vmatprep.subr.mxu0 0.0
    %663 = vmatpush1.msra.mxu0 0.0
    %664 = vmatprep.subr.mxu0 0.0
    %665 = vmatpush1.msra.mxu0 0.0
    %666 = vmatprep.subr.mxu0 0.0
    %667 = vmatpush1.msra.mxu0 0.0
    %668 = vmatprep.subr.mxu0 0.0
    %669 = vmatpush1.msra.mxu0 0.0
    %670 = vmatprep.subr.mxu0 0.0
    %671 = vmatpush1.msra.mxu0 0.0
    %672 = vmatprep.subr.mxu0 0.0
    %673 = vmatpush1.msra.mxu0 0.0
    %674 = vmatprep.subr.mxu0 0.0
    %675 = vmatpush1.msra.mxu0 0.0
    %676 = vmatprep.subr.mxu0 0.0
    %677 = vmatpush1.msra.mxu0 0.0
    %678 = vmatprep.subr.mxu0 0.0
    %679 = vmatpush1.msra.mxu0 0.0
    %680 = vmatprep.subr.mxu0 0.0
    %681 = vmatpush1.msra.mxu0 0.0
    %682 = vmatprep.subr.mxu0 0.0
    %683 = vmatpush1.msra.mxu0 0.0
    %684 = vmatprep.subr.mxu0 0.0
    %685 = vmatpush1.msra.mxu0 0.0
    %686 = vmatprep.subr.mxu0 0.0
    %687 = vmatpush1.msra.mxu0 0.0
    %688 = vmatprep.subr.mxu0 0.0
    %689 = vmatpush1.msra.mxu0 0.0
    %690 = vmatprep.subr.mxu0 0.0
    %691 = vmatpush1.msra.mxu0 0.0
    %692 = vmatprep.subr.mxu0 0.0
    %693 = vmatpush1.msra.mxu0 0.0
    %694 = vmatprep.subr.mxu0 0.0
    %695 = vmatpush1.msra.mxu0 0.0
    %696 = vmatprep.subr.mxu0 0.0
    %697 = vmatpush1.msra.mxu0 0.0
    %698 = vmatprep.subr.mxu0 0.0
    %699 = vmatpush1.msra.mxu0 0.0
    %700 = vmatprep.subr.mxu0 0.0
    %701 = vmatpush1.msra.mxu0 0.0
    %702 = vmatprep.subr.mxu0 0.0
    %703 = vmatpush1.msra.mxu0 0.0
    %704 = vmatprep.subr.mxu0 0.0
    %705 = vmatpush1.msra.mxu0 0.0
    %706 = vmatprep.subr.mxu0 0.0
    %707 = vmatpush1.msra.mxu0 0.0
    %708 = vmatprep.subr.mxu0 0.0
    %709 = vmatpush1.msra.mxu0 0.0
    %710 = vmatprep.subr.mxu0 0.0
    %711 = vmatpush1.msra.mxu0 0.0
    %712 = vmatprep.subr.mxu0 0.0
    %713 = vmatpush1.msra.mxu0 0.0
    %714 = vmatprep.subr.mxu0 0.0
    %715 = vmatpush1.msra.mxu0 0.0
    %716 = vmatprep.mubr.f32.mxu0 0.0
    %717 = vmatmul.mubr.f32.gmra.mrb[0].mxu0 %v646
    %v718 = vpop.f32.mrb[0].mxu0
    %v719 = vadd.f32 %v639, %v718
    %v720 = vpop.f32.mrb[0].mxu0
    %721 = vdwg.mxu0
    %v723 = vlaneseq
    %v724 = vshrl.u32 %v723, 7
    %v725 = vsub.s32 0, %v724
    %v726 = vrot.slane %v97, %v725
    %727 = vrot.lane.b32.xlu0 %v726, 96
    %v728 = vpop.permute.xlu0 %727
    %v730 = vadd.f32 %v719, %v728
    %731 = vrot.lane.b32.xlu0 %v333, 96
    %v732 = vpop.permute.xlu0 %731
    %v734 = vadd.f32 %v730, %v732
    %v735 = vxor.u32 %v734, 2147483648
    %v736 = vmul.f32 %v735, 1.442695
    %v737 = vpow.pop %v736
    %v738 = vadd.f32 %v737, 1.0
    %v739 = vrcp.pop %v738
    %v740 = vmul.f32 1.0, %v739
    %741 = vrot.lane.b32.xlu0 %v333, 32
    %v742 = vpop.permute.xlu0 %741
    %v744 = vmul.f32 %v740, %v742
    %746 = vrot.lane.b32.xlu0 %v744, 64
    %v747 = vpop.permute.xlu0 %746
    %v749 = vadd.f32 %v730, %v747
    %v750 = vtanh.pop %v749
    %v751 = vsub.f32 1.0, %v740
    %753 = vrot.lane.b32.xlu0 %v750, 96
    %v754 = vpop.permute.xlu0 %753
    %v756 = vmul.f32 %v751, %v754
    %v757 = vmul.f32 %v740, 0.0
    %v758 = vadd.f32 %v756, %v757
    %v759 = vpack.c.bf16 %v758, %v758
    %762 = vrot.lane.b32.xlu0 %v759, 96
    %v763 = vpop.permute.xlu0 %762
    %764 = vrot.lane.b32.xlu0 %v112, 32
    %v765 = vpop.permute.xlu0 %764
    %766 = vrot.lane.b32.xlu0 %v113, 32
    %v767 = vpop.permute.xlu0 %766
    %v771 = vsel %vm120, %v763, 0
    %773 = vmatprep.subr.bf16.mxu0 0
    %774 = vmatpush1.bf16.msra.mxu0 %v765
    %775 = vmatprep.subr.bf16.mxu0 0
    %776 = vmatpush1.bf16.msra.mxu0 %v767
    %777 = vmatprep.subr.bf16.mxu0 0
    %778 = vmatpush1.bf16.msra.mxu0 0
    %779 = vmatprep.subr.bf16.mxu0 0
    %780 = vmatpush1.bf16.msra.mxu0 0
    %781 = vmatprep.subr.bf16.mxu0 0
    %782 = vmatpush1.bf16.msra.mxu0 0
    %783 = vmatprep.subr.bf16.mxu0 0
    %784 = vmatpush1.bf16.msra.mxu0 0
    %785 = vmatprep.subr.bf16.mxu0 0
    %786 = vmatpush1.bf16.msra.mxu0 0
    %787 = vmatprep.subr.bf16.mxu0 0
    %788 = vmatpush1.bf16.msra.mxu0 0
    %789 = vmatprep.subr.bf16.mxu0 0
    %790 = vmatpush1.bf16.msra.mxu0 0
    %791 = vmatprep.subr.bf16.mxu0 0
    %792 = vmatpush1.bf16.msra.mxu0 0
    %793 = vmatprep.subr.bf16.mxu0 0
    %794 = vmatpush1.bf16.msra.mxu0 0
    %795 = vmatprep.subr.bf16.mxu0 0
    %796 = vmatpush1.bf16.msra.mxu0 0
    %797 = vmatprep.subr.bf16.mxu0 0
    %798 = vmatpush1.bf16.msra.mxu0 0
    %799 = vmatprep.subr.bf16.mxu0 0
    %800 = vmatpush1.bf16.msra.mxu0 0
    %801 = vmatprep.subr.bf16.mxu0 0
    %802 = vmatpush1.bf16.msra.mxu0 0
    %803 = vmatprep.subr.bf16.mxu0 0
    %804 = vmatpush1.bf16.msra.mxu0 0
    %805 = vmatprep.mubr.bf16.mxu0 0
    %806 = vmatmul.mubr.bf16.gmra.mrb[0].mxu0 %v771
    %v807 = vpop.f32.mrb[0].mxu0
    %v808 = vadd.f32 %v379, %v807
    %v809 = vpop.f32.mrb[0].mxu0
    %v810 = vpop.f32.mrb[0].mxu0
    %v811 = vpop.f32.mrb[0].mxu0
    %812 = vdwg.mxu0
    %vm813 = vcmask 123904
    %814 = vst.msk [vmem:[#allocation10] sm:$0x3] %vm813, %v808
    %815 = vmatprep.subr.bf16.mxu0 0
    %816 = vmatpush1.bf16.msra.mxu0 %v284
    %817 = vmatprep.subr.bf16.mxu0 0
    %818 = vmatpush1.bf16.msra.mxu0 %v285
    %819 = vmatprep.subr.bf16.mxu0 0
    %820 = vmatpush1.bf16.msra.mxu0 0
    %821 = vmatprep.subr.bf16.mxu0 0
    %822 = vmatpush1.bf16.msra.mxu0 0
    %823 = vmatprep.subr.bf16.mxu0 0
    %824 = vmatpush1.bf16.msra.mxu0 0
    %825 = vmatprep.subr.bf16.mxu0 0
    %826 = vmatpush1.bf16.msra.mxu0 0
    %827 = vmatprep.subr.bf16.mxu0 0
    %828 = vmatpush1.bf16.msra.mxu0 0
    %829 = vmatprep.subr.bf16.mxu0 0
    %830 = vmatpush1.bf16.msra.mxu0 0
    %831 = vmatprep.subr.bf16.mxu0 0
    %832 = vmatpush1.bf16.msra.mxu0 0
    %833 = vmatprep.subr.bf16.mxu0 0
    %834 = vmatpush1.bf16.msra.mxu0 0
    %835 = vmatprep.subr.bf16.mxu0 0
    %836 = vmatpush1.bf16.msra.mxu0 0
    %837 = vmatprep.subr.bf16.mxu0 0
    %838 = vmatpush1.bf16.msra.mxu0 0
    %839 = vmatprep.subr.bf16.mxu0 0
    %840 = vmatpush1.bf16.msra.mxu0 0
    %841 = vmatprep.subr.bf16.mxu0 0
    %842 = vmatpush1.bf16.msra.mxu0 0
    %843 = vmatprep.subr.bf16.mxu0 0
    %844 = vmatpush1.bf16.msra.mxu0 0
    %845 = vmatprep.subr.bf16.mxu0 0
    %846 = vmatpush1.bf16.msra.mxu0 0
    %847 = vmatprep.mubr.bf16.mxu0 0
    %848 = vmatmul.mubr.bf16.gmra.mrb[0].mxu0 %v771
    %v849 = vpop.f32.mrb[0].mxu0
    %v850 = vadd.f32 %v293, %v849
    %v851 = vpop.f32.mrb[0].mxu0
    %v852 = vpop.f32.mrb[0].mxu0
    %v853 = vpop.f32.mrb[0].mxu0
    %854 = vdwg.mxu0
    %v857 = vunpack.c.l.s4 1966171168
    %v858 = vunpack.c.0.s8 %v857
    %v859 = vlaneseq
    %v860 = vshrl.u32 %v859, 7
    %v861 = vsub.s32 %v858, %v860
    %v862 = vrot.slane %v850, %v861
    %v863 = vcombine.high %v862, %v862
    %v865 = vunpack.c.l.s4 1966171168
    %v866 = vunpack.c.0.s8 %v865
    %v867 = vlaneseq
    %v868 = vshrl.u32 %v867, 7
    %v869 = vsub.s32 %v866, %v868
    %v870 = vrot.slane %v862, %v869
    %v872 = vunpack.c.l.s4 1966171168
    %v873 = vunpack.c.0.s8 %v872
    %v874 = vlaneseq
    %v875 = vshrl.u32 %v874, 7
    %v876 = vsub.s32 %v873, %v875
    %v877 = vrot.slane %v863, %v876
    %v878 = vlaneseq
    %v879 = vshrl.u32 %v878, 7
    %v880 = vsub.s32 0, %v879
    %v881 = vrot.slane %v870, %v880
    %v882 = vlaneseq
    %v883 = vshrl.u32 %v882, 7
    %v884 = vsub.s32 0, %v883
    %v885 = vrot.slane %v877, %v884
    %v888 = vadd.f32 %v171, %v881
    %v889 = vadd.f32 %v172, %v885
    %v890 = vtanh.pop %v888
    %v891 = vtanh.pop %v889
    %v892 = vmul.f32 %v890, %v381
    %v893 = vmul.f32 %v891, %v381
    %v894 = vsel %vm120, %v892, 0.0
    %895 = vadd.xlane.f32.xlu0 %v894
    %v896 = vpop.xlane.xlu0 %895
    %v897 = vsel %vm120, %v893, 0.0
    %898 = vadd.xlane.f32.xlu0 %v897
    %v899 = vpop.xlane.xlu0 %898
    %v902 = vlaneseq
    %v903 = vshrl.u32 %v902, 7
    %v904 = vsub.s32 %v394, %v903
    %v905 = vrot.slane %v896, %v904
    %v906 = vlaneseq
    %v907 = vshrl.u32 %v906, 7
    %v908 = vsub.s32 %v394, %v907
    %v909 = vrot.slane %v899, %v908
    %v910 = vsel %vm403, %v909, %v905
    %v912 = vsel %vm406, %v910, -inf
    %913 = vmax.xlane.f32.xlu0 %v912
    %v914 = vpop.xlane.xlu0 %913
    %v916 = vlaneseq
    %v917 = vshrl.u32 %v916, 7
    %v918 = vsub.s32 0, %v917
    %v919 = vrot.slane %v914, %v918
    %v920 = vlaneseq
    %v921 = vshrl.u32 %v920, 7
    %v922 = vsub.s32 1, %v921
    %v923 = vrot.slane %v914, %v922
    %v926 = vsub.f32 %v896, %v919
    %v927 = vsub.f32 %v899, %v923
    %v928 = vmul.f32 %v926, 1.442695
    %v929 = vpow.pop %v928
    %v930 = vmul.f32 %v927, 1.442695
    %v931 = vpow.pop %v930
    %934 = vset.pattern.permute.xlu0 0
    %935 = vperm.xlu0 %934, %v929
    %v936 = vpop.permute.xlu0 %935
    %937 = vset.pattern.permute.xlu0 0
    %938 = vperm.xlu0 %937, %v931
    %v939 = vpop.permute.xlu0 %938
    %v940 = vlaneseq
    %v941 = vshrl.u32 %v940, 7
    %v942 = vsub.s32 %v394, %v941
    %v943 = vrot.slane %v936, %v942
    %v944 = vlaneseq
    %v945 = vshrl.u32 %v944, 7
    %v946 = vsub.s32 %v394, %v945
    %v947 = vrot.slane %v939, %v946
    %v948 = vsel %vm403, %v947, %v943
    %v950 = vsel %vm406, %v948, 0.0
    %951 = vadd.xlane.f32.xlu0 %v950
    %v952 = vpop.xlane.xlu0 %951
    %v954 = vlaneseq
    %v955 = vshrl.u32 %v954, 7
    %v956 = vsub.s32 0, %v955
    %v957 = vrot.slane %v952, %v956
    %v958 = vlaneseq
    %v959 = vshrl.u32 %v958, 7
    %v960 = vsub.s32 1, %v959
    %v961 = vrot.slane %v952, %v960
    %v964 = vrcp.pop %v957
    %v965 = vmul.f32 %v929, %v964
    %v966 = vrcp.pop %v961
    %v967 = vmul.f32 %v931, %v966
    %v968 = vpack.c.bf16 %v965, %v965
    %v969 = vpack.c.bf16 %v967, %v967
    %v971 = vunpack.c.l.b16 %v968
    %972 = vset.pattern.permute.xlu0 0
    %973 = vperm.xlu0 %972, %v971
    %v974 = vpop.permute.xlu0 %973
    %v975 = vlaneseq
    %v976 = vshrl.u32 %v975, 7
    %v977 = vsub.s32 %v394, %v976
    %v978 = vrot.slane %v974, %v977
    %v979 = vpack.c.b16 %v978, %v978
    %v981 = vsel %vm475, %v979, 0
    %983 = vmatprep.subr.bf16.mxu0 0
    %984 = vmatpush1.bf16.msra.mxu0 %v481
    %985 = vmatprep.subr.bf16.mxu0 0
    %986 = vmatpush1.bf16.msra.mxu0 0
    %987 = vmatprep.subr.bf16.mxu0 0
    %988 = vmatpush1.bf16.msra.mxu0 0
    %989 = vmatprep.subr.bf16.mxu0 0
    %990 = vmatpush1.bf16.msra.mxu0 0
    %991 = vmatprep.subr.bf16.mxu0 0
    %992 = vmatpush1.bf16.msra.mxu0 0
    %993 = vmatprep.subr.bf16.mxu0 0
    %994 = vmatpush1.bf16.msra.mxu0 0
    %995 = vmatprep.subr.bf16.mxu0 0
    %996 = vmatpush1.bf16.msra.mxu0 0
    %997 = vmatprep.subr.bf16.mxu0 0
    %998 = vmatpush1.bf16.msra.mxu0 0
    %999 = vmatprep.subr.bf16.mxu0 0
    %1000 = vmatpush1.bf16.msra.mxu0 0
    %1001 = vmatprep.subr.bf16.mxu0 0
    %1002 = vmatpush1.bf16.msra.mxu0 0
    %1003 = vmatprep.subr.bf16.mxu0 0
    %1004 = vmatpush1.bf16.msra.mxu0 0
    %1005 = vmatprep.subr.bf16.mxu0 0
    %1006 = vmatpush1.bf16.msra.mxu0 0
    %1007 = vmatprep.subr.bf16.mxu0 0
    %1008 = vmatpush1.bf16.msra.mxu0 0
    %1009 = vmatprep.subr.bf16.mxu0 0
    %1010 = vmatpush1.bf16.msra.mxu0 0
    %1011 = vmatprep.subr.bf16.mxu0 0
    %1012 = vmatpush1.bf16.msra.mxu0 0
    %1013 = vmatprep.subr.bf16.mxu0 0
    %1014 = vmatpush1.bf16.msra.mxu0 0
    %1015 = vmatprep.mubr.bf16.mxu0 0
    %1016 = vmatmul.mubr.bf16.gmra.mrb[0].mxu0 %v981
    %v1017 = vpop.f32.mrb[0].mxu0
    %v1018 = vadd.f32 0.0, %v1017
    %v1019 = vpop.f32.mrb[0].mxu0
    %v1020 = vpop.f32.mrb[0].mxu0
    %v1021 = vpop.f32.mrb[0].mxu0
    %1022 = vdwg.mxu0
    %v1024 = vunpack.c.l.b16 %v969
    %1025 = vset.pattern.permute.xlu0 0
    %1026 = vperm.xlu0 %1025, %v1024
    %v1027 = vpop.permute.xlu0 %1026
    %v1028 = vlaneseq
    %v1029 = vshrl.u32 %v1028, 7
    %v1030 = vsub.s32 %v394, %v1029
    %v1031 = vrot.slane %v1027, %v1030
    %v1032 = vpack.c.b16 %v1031, %v1031
    %v1034 = vsel %vm475, %v1032, 0
    %1036 = vmatprep.subr.bf16.mxu0 0
    %1037 = vmatpush1.bf16.msra.mxu0 %v537
    %1038 = vmatprep.subr.bf16.mxu0 0
    %1039 = vmatpush1.bf16.msra.mxu0 0
    %1040 = vmatprep.subr.bf16.mxu0 0
    %1041 = vmatpush1.bf16.msra.mxu0 0
    %1042 = vmatprep.subr.bf16.mxu0 0
    %1043 = vmatpush1.bf16.msra.mxu0 0
    %1044 = vmatprep.subr.bf16.mxu0 0
    %1045 = vmatpush1.bf16.msra.mxu0 0
    %1046 = vmatprep.subr.bf16.mxu0 0
    %1047 = vmatpush1.bf16.msra.mxu0 0
    %1048 = vmatprep.subr.bf16.mxu0 0
    %1049 = vmatpush1.bf16.msra.mxu0 0
    %1050 = vmatprep.subr.bf16.mxu0 0
    %1051 = vmatpush1.bf16.msra.mxu0 0
    %1052 = vmatprep.subr.bf16.mxu0 0
    %1053 = vmatpush1.bf16.msra.mxu0 0
    %1054 = vmatprep.subr.bf16.mxu0 0
    %1055 = vmatpush1.bf16.msra.mxu0 0
    %1056 = vmatprep.subr.bf16.mxu0 0
    %1057 = vmatpush1.bf16.msra.mxu0 0
    %1058 = vmatprep.subr.bf16.mxu0 0
    %1059 = vmatpush1.bf16.msra.mxu0 0
    %1060 = vmatprep.subr.bf16.mxu0 0
    %1061 = vmatpush1.bf16.msra.mxu0 0
    %1062 = vmatprep.subr.bf16.mxu0 0
    %1063 = vmatpush1.bf16.msra.mxu0 0
    %1064 = vmatprep.subr.bf16.mxu0 0
    %1065 = vmatpush1.bf16.msra.mxu0 0
    %1066 = vmatprep.subr.bf16.mxu0 0
    %1067 = vmatpush1.bf16.msra.mxu0 0
    %1068 = vmatprep.mubr.bf16.mxu0 0
    %1069 = vmatmul.mubr.bf16.gmra.mrb[0].mxu0 %v1034
    %v1070 = vpop.f32.mrb[0].mxu0
    %v1071 = vadd.f32 0.0, %v1070
    %v1072 = vpop.f32.mrb[0].mxu0
    %v1073 = vpop.f32.mrb[0].mxu0
    %v1074 = vpop.f32.mrb[0].mxu0
    %1075 = vdwg.mxu0
    %s1076 = scalar_lea.vmem [#allocation5], 2
    %v1077 = vld [vmem:[%s1076] sm:$0x3]
    %v1078 = vpack.c.bf16 %v1018, %v1018
    %v1079 = vpack.c.bf16 %v1071, %v1071
    %v1082 = vunpack.c.l.b16 %v1078
    %v1083 = vunpack.c.l.b16 %v1079
    %v1084 = vrot.slane %v1083, 7
    %v1085 = vsel %vm403, %v1084, %v1082
    %v1086 = vpack.c.b16 %v1085, %v1085
    %v1088 = vsel %vm120, %v1086, 0
    %1090 = vmatprep.subr.bf16.mxu0 0
    %1091 = vmatpush1.bf16.msra.mxu0 %v597
    %1092 = vmatprep.subr.bf16.mxu0 0
    %1093 = vmatpush1.bf16.msra.mxu0 %v598
    %1094 = vmatprep.subr.bf16.mxu0 0
    %1095 = vmatpush1.bf16.msra.mxu0 0
    %1096 = vmatprep.subr.bf16.mxu0 0
    %1097 = vmatpush1.bf16.msra.mxu0 0
    %1098 = vmatprep.subr.bf16.mxu0 0
    %1099 = vmatpush1.bf16.msra.mxu0 0
    %1100 = vmatprep.subr.bf16.mxu0 0
    %1101 = vmatpush1.bf16.msra.mxu0 0
    %1102 = vmatprep.subr.bf16.mxu0 0
    %1103 = vmatpush1.bf16.msra.mxu0 0
    %1104 = vmatprep.subr.bf16.mxu0 0
    %1105 = vmatpush1.bf16.msra.mxu0 0
    %1106 = vmatprep.subr.bf16.mxu0 0
    %1107 = vmatpush1.bf16.msra.mxu0 0
    %1108 = vmatprep.subr.bf16.mxu0 0
    %1109 = vmatpush1.bf16.msra.mxu0 0
    %1110 = vmatprep.subr.bf16.mxu0 0
    %1111 = vmatpush1.bf16.msra.mxu0 0
    %1112 = vmatprep.subr.bf16.mxu0 0
    %1113 = vmatpush1.bf16.msra.mxu0 0
    %1114 = vmatprep.subr.bf16.mxu0 0
    %1115 = vmatpush1.bf16.msra.mxu0 0
    %1116 = vmatprep.subr.bf16.mxu0 0
    %1117 = vmatpush1.bf16.msra.mxu0 0
    %1118 = vmatprep.subr.bf16.mxu0 0
    %1119 = vmatpush1.bf16.msra.mxu0 0
    %1120 = vmatprep.subr.bf16.mxu0 0
    %1121 = vmatpush1.bf16.msra.mxu0 0
    %1122 = vmatprep.mubr.bf16.mxu0 0
    %1123 = vmatmul.mubr.bf16.gmra.mrb[0].mxu0 %v1088
    %v1124 = vpop.f32.mrb[0].mxu0
    %v1125 = vadd.f32 0.0, %v1124
    %v1126 = vpop.f32.mrb[0].mxu0
    %v1127 = vpop.f32.mrb[0].mxu0
    %v1128 = vpop.f32.mrb[0].mxu0
    %1129 = vdwg.mxu0
    %v1131 = vsel %vm644, %v1077, 0
    %1133 = vmatprep.subr.mxu0 0.0
    %1134 = vmatpush1.msra.mxu0 %v254
    %1135 = vmatprep.subr.mxu0 0.0
    %1136 = vmatpush1.msra.mxu0 %v257
    %1137 = vmatprep.subr.mxu0 0.0
    %1138 = vmatpush1.msra.mxu0 %v650
    %1139 = vmatprep.subr.mxu0 0.0
    %1140 = vmatpush1.msra.mxu0 0.0
    %1141 = vmatprep.subr.mxu0 0.0
    %1142 = vmatpush1.msra.mxu0 0.0
    %1143 = vmatprep.subr.mxu0 0.0
    %1144 = vmatpush1.msra.mxu0 0.0
    %1145 = vmatprep.subr.mxu0 0.0
    %1146 = vmatpush1.msra.mxu0 0.0
    %1147 = vmatprep.subr.mxu0 0.0
    %1148 = vmatpush1.msra.mxu0 0.0
    %1149 = vmatprep.subr.mxu0 0.0
    %1150 = vmatpush1.msra.mxu0 0.0
    %1151 = vmatprep.subr.mxu0 0.0
    %1152 = vmatpush1.msra.mxu0 0.0
    %1153 = vmatprep.subr.mxu0 0.0
    %1154 = vmatpush1.msra.mxu0 0.0
    %1155 = vmatprep.subr.mxu0 0.0
    %1156 = vmatpush1.msra.mxu0 0.0
    %1157 = vmatprep.subr.mxu0 0.0
    %1158 = vmatpush1.msra.mxu0 0.0
    %1159 = vmatprep.subr.mxu0 0.0
    %1160 = vmatpush1.msra.mxu0 0.0
    %1161 = vmatprep.subr.mxu0 0.0
    %1162 = vmatpush1.msra.mxu0 0.0
    %1163 = vmatprep.subr.mxu0 0.0
    %1164 = vmatpush1.msra.mxu0 0.0
    %1165 = vmatprep.subr.mxu0 0.0
    %1166 = vmatpush1.msra.mxu0 0.0
    %1167 = vmatprep.subr.mxu0 0.0
    %1168 = vmatpush1.msra.mxu0 0.0
    %1169 = vmatprep.subr.mxu0 0.0
    %1170 = vmatpush1.msra.mxu0 0.0
    %1171 = vmatprep.subr.mxu0 0.0
    %1172 = vmatpush1.msra.mxu0 0.0
    %1173 = vmatprep.subr.mxu0 0.0
    %1174 = vmatpush1.msra.mxu0 0.0
    %1175 = vmatprep.subr.mxu0 0.0
    %1176 = vmatpush1.msra.mxu0 0.0
    %1177 = vmatprep.subr.mxu0 0.0
    %1178 = vmatpush1.msra.mxu0 0.0
    %1179 = vmatprep.subr.mxu0 0.0
    %1180 = vmatpush1.msra.mxu0 0.0
    %1181 = vmatprep.subr.mxu0 0.0
    %1182 = vmatpush1.msra.mxu0 0.0
    %1183 = vmatprep.subr.mxu0 0.0
    %1184 = vmatpush1.msra.mxu0 0.0
    %1185 = vmatprep.subr.mxu0 0.0
    %1186 = vmatpush1.msra.mxu0 0.0
    %1187 = vmatprep.subr.mxu0 0.0
    %1188 = vmatpush1.msra.mxu0 0.0
    %1189 = vmatprep.subr.mxu0 0.0
    %1190 = vmatpush1.msra.mxu0 0.0
    %1191 = vmatprep.subr.mxu0 0.0
    %1192 = vmatpush1.msra.mxu0 0.0
    %1193 = vmatprep.subr.mxu0 0.0
    %1194 = vmatpush1.msra.mxu0 0.0
    %1195 = vmatprep.subr.mxu0 0.0
    %1196 = vmatpush1.msra.mxu0 0.0
    %1197 = vmatprep.mubr.f32.mxu0 0.0
    %1198 = vmatmul.mubr.f32.gmra.mrb[0].mxu0 %v1131
    %v1199 = vpop.f32.mrb[0].mxu0
    %v1200 = vadd.f32 %v1125, %v1199
    %v1201 = vpop.f32.mrb[0].mxu0
    %1202 = vdwg.mxu0
    %v1203 = vadd.f32 %v1200, %v728
    %1204 = vrot.lane.b32.xlu0 %v850, 96
    %v1205 = vpop.permute.xlu0 %1204
    %v1207 = vadd.f32 %v1203, %v1205
    %v1208 = vxor.u32 %v1207, 2147483648
    %v1209 = vmul.f32 %v1208, 1.442695
    %v1210 = vpow.pop %v1209
    %v1211 = vadd.f32 %v1210, 1.0
    %v1212 = vrcp.pop %v1211
    %v1213 = vmul.f32 1.0, %v1212
    %1214 = vrot.lane.b32.xlu0 %v850, 32
    %v1215 = vpop.permute.xlu0 %1214
    %v1217 = vmul.f32 %v1213, %v1215
    %1219 = vrot.lane.b32.xlu0 %v1217, 64
    %v1220 = vpop.permute.xlu0 %1219
    %v1222 = vadd.f32 %v1203, %v1220
    %v1223 = vtanh.pop %v1222
    %v1224 = vsub.f32 1.0, %v1213
    %1226 = vrot.lane.b32.xlu0 %v1223, 96
    %v1227 = vpop.permute.xlu0 %1226
    %v1229 = vmul.f32 %v1224, %v1227
    %v1230 = vmul.f32 %v1213, %v758
    %v1231 = vadd.f32 %v1229, %v1230
    %v1232 = vpack.c.bf16 %v1231, %v1231
    %1234 = vrot.lane.b32.xlu0 %v1232, 96
    %v1235 = vpop.permute.xlu0 %1234
    %v1237 = vsel %vm120, %v1235, 0
    %1239 = vmatprep.subr.bf16.mxu0 0
    %1240 = vmatpush1.bf16.msra.mxu0 %v765
    %1241 = vmatprep.subr.bf16.mxu0 0
    %1242 = vmatpush1.bf16.msra.mxu0 %v767
    %1243 = vmatprep.subr.bf16.mxu0 0
    %1244 = vmatpush1.bf16.msra.mxu0 0
    %1245 = vmatprep.subr.bf16.mxu0 0
    %1246 = vmatpush1.bf16.msra.mxu0 0
    %1247 = vmatprep.subr.bf16.mxu0 0
    %1248 = vmatpush1.bf16.msra.mxu0 0
    %1249 = vmatprep.subr.bf16.mxu0 0
    %1250 = vmatpush1.bf16.msra.mxu0 0
    %1251 = vmatprep.subr.bf16.mxu0 0
    %1252 = vmatpush1.bf16.msra.mxu0 0
    %1253 = vmatprep.subr.bf16.mxu0 0
    %1254 = vmatpush1.bf16.msra.mxu0 0
    %1255 = vmatprep.subr.bf16.mxu0 0
    %1256 = vmatpush1.bf16.msra.mxu0 0
    %1257 = vmatprep.subr.bf16.mxu0 0
    %1258 = vmatpush1.bf16.msra.mxu0 0
    %1259 = vmatprep.subr.bf16.mxu0 0
    %1260 = vmatpush1.bf16.msra.mxu0 0
    %1261 = vmatprep.subr.bf16.mxu0 0
    %1262 = vmatpush1.bf16.msra.mxu0 0
    %1263 = vmatprep.subr.bf16.mxu0 0
    %1264 = vmatpush1.bf16.msra.mxu0 0
    %1265 = vmatprep.subr.bf16.mxu0 0
    %1266 = vmatpush1.bf16.msra.mxu0 0
    %1267 = vmatprep.subr.bf16.mxu0 0
    %1268 = vmatpush1.bf16.msra.mxu0 0
    %1269 = vmatprep.subr.bf16.mxu0 0
    %1270 = vmatpush1.bf16.msra.mxu0 0
    %1271 = vmatprep.mubr.bf16.mxu0 0
    %1272 = vmatmul.mubr.bf16.gmra.mrb[0].mxu0 %v1237
    %v1273 = vpop.f32.mrb[0].mxu0
    %v1274 = vadd.f32 %v379, %v1273
    %v1275 = vpop.f32.mrb[0].mxu0
    %v1276 = vpop.f32.mrb[0].mxu0
    %v1277 = vpop.f32.mrb[0].mxu0
    %1278 = vdwg.mxu0
    %s1279 = scalar_lea.vmem [#allocation10], 2
    %1280 = vst.msk [vmem:[%s1279] sm:$0x3] %vm813, %v1274
    %1281 = vmatprep.subr.bf16.mxu0 0
    %1282 = vmatpush1.bf16.msra.mxu0 %v284
    %1283 = vmatprep.subr.bf16.mxu0 0
    %1284 = vmatpush1.bf16.msra.mxu0 %v285
    %1285 = vmatprep.subr.bf16.mxu0 0
    %1286 = vmatpush1.bf16.msra.mxu0 0
    %1287 = vmatprep.subr.bf16.mxu0 0
    %1288 = vmatpush1.bf16.msra.mxu0 0
    %1289 = vmatprep.subr.bf16.mxu0 0
    %1290 = vmatpush1.bf16.msra.mxu0 0
    %1291 = vmatprep.subr.bf16.mxu0 0
    %1292 = vmatpush1.bf16.msra.mxu0 0
    %1293 = vmatprep.subr.bf16.mxu0 0
    %1294 = vmatpush1.bf16.msra.mxu0 0
    %1295 = vmatprep.subr.bf16.mxu0 0
    %1296 = vmatpush1.bf16.msra.mxu0 0
    %1297 = vmatprep.subr.bf16.mxu0 0
    %1298 = vmatpush1.bf16.msra.mxu0 0
    %1299 = vmatprep.subr.bf16.mxu0 0
    %1300 = vmatpush1.bf16.msra.mxu0 0
    %1301 = vmatprep.subr.bf16.mxu0 0
    %1302 = vmatpush1.bf16.msra.mxu0 0
    %1303 = vmatprep.subr.bf16.mxu0 0
    %1304 = vmatpush1.bf16.msra.mxu0 0
    %1305 = vmatprep.subr.bf16.mxu0 0
    %1306 = vmatpush1.bf16.msra.mxu0 0
    %1307 = vmatprep.subr.bf16.mxu0 0
    %1308 = vmatpush1.bf16.msra.mxu0 0
    %1309 = vmatprep.subr.bf16.mxu0 0
    %1310 = vmatpush1.bf16.msra.mxu0 0
    %1311 = vmatprep.subr.bf16.mxu0 0
    %1312 = vmatpush1.bf16.msra.mxu0 0
    %1313 = vmatprep.mubr.bf16.mxu0 0
    %1314 = vmatmul.mubr.bf16.gmra.mrb[0].mxu0 %v1237
    %v1315 = vpop.f32.mrb[0].mxu0
    %v1316 = vadd.f32 %v293, %v1315
    %v1317 = vpop.f32.mrb[0].mxu0
    %v1318 = vpop.f32.mrb[0].mxu0
    %v1319 = vpop.f32.mrb[0].mxu0
    %1320 = vdwg.mxu0
    %v1323 = vunpack.c.l.s4 1966171168
    %v1324 = vunpack.c.0.s8 %v1323
    %v1325 = vlaneseq
    %v1326 = vshrl.u32 %v1325, 7
    %v1327 = vsub.s32 %v1324, %v1326
    %v1328 = vrot.slane %v1316, %v1327
    %v1329 = vcombine.high %v1328, %v1328
    %v1331 = vunpack.c.l.s4 1966171168
    %v1332 = vunpack.c.0.s8 %v1331
    %v1333 = vlaneseq
    %v1334 = vshrl.u32 %v1333, 7
    %v1335 = vsub.s32 %v1332, %v1334
    %v1336 = vrot.slane %v1328, %v1335
    %v1338 = vunpack.c.l.s4 1966171168
    %v1339 = vunpack.c.0.s8 %v1338
    %v1340 = vlaneseq
    %v1341 = vshrl.u32 %v1340, 7
    %v1342 = vsub.s32 %v1339, %v1341
    %v1343 = vrot.slane %v1329, %v1342
    %v1344 = vlaneseq
    %v1345 = vshrl.u32 %v1344, 7
    %v1346 = vsub.s32 0, %v1345
    %v1347 = vrot.slane %v1336, %v1346
    %v1348 = vlaneseq
    %v1349 = vshrl.u32 %v1348, 7
    %v1350 = vsub.s32 0, %v1349
    %v1351 = vrot.slane %v1343, %v1350
    %v1354 = vadd.f32 %v171, %v1347
    %v1355 = vadd.f32 %v172, %v1351
    %v1356 = vtanh.pop %v1354
    %v1357 = vtanh.pop %v1355
    %v1358 = vmul.f32 %v1356, %v381
    %v1359 = vmul.f32 %v1357, %v381
    %v1360 = vsel %vm120, %v1358, 0.0
    %1361 = vadd.xlane.f32.xlu0 %v1360
    %v1362 = vpop.xlane.xlu0 %1361
    %v1363 = vsel %vm120, %v1359, 0.0
    %1364 = vadd.xlane.f32.xlu0 %v1363
    %v1365 = vpop.xlane.xlu0 %1364
    %v1368 = vlaneseq
    %v1369 = vshrl.u32 %v1368, 7
    %v1370 = vsub.s32 %v394, %v1369
    %v1371 = vrot.slane %v1362, %v1370
    %v1372 = vlaneseq
    %v1373 = vshrl.u32 %v1372, 7
    %v1374 = vsub.s32 %v394, %v1373
    %v1375 = vrot.slane %v1365, %v1374
    %v1376 = vsel %vm403, %v1375, %v1371
    %v1378 = vsel %vm406, %v1376, -inf
    %1379 = vmax.xlane.f32.xlu0 %v1378
    %v1380 = vpop.xlane.xlu0 %1379
    %v1382 = vlaneseq
    %v1383 = vshrl.u32 %v1382, 7
    %v1384 = vsub.s32 0, %v1383
    %v1385 = vrot.slane %v1380, %v1384
    %v1386 = vlaneseq
    %v1387 = vshrl.u32 %v1386, 7
    %v1388 = vsub.s32 1, %v1387
    %v1389 = vrot.slane %v1380, %v1388
    %v1392 = vsub.f32 %v1362, %v1385
    %v1393 = vsub.f32 %v1365, %v1389
    %v1394 = vmul.f32 %v1392, 1.442695
    %v1395 = vpow.pop %v1394
    %v1396 = vmul.f32 %v1393, 1.442695
    %v1397 = vpow.pop %v1396
    %1400 = vset.pattern.permute.xlu0 0
    %1401 = vperm.xlu0 %1400, %v1395
    %v1402 = vpop.permute.xlu0 %1401
    %1403 = vset.pattern.permute.xlu0 0
    %1404 = vperm.xlu0 %1403, %v1397
    %v1405 = vpop.permute.xlu0 %1404
    %v1406 = vlaneseq
    %v1407 = vshrl.u32 %v1406, 7
    %v1408 = vsub.s32 %v394, %v1407
    %v1409 = vrot.slane %v1402, %v1408
    %v1410 = vlaneseq
    %v1411 = vshrl.u32 %v1410, 7
    %v1412 = vsub.s32 %v394, %v1411
    %v1413 = vrot.slane %v1405, %v1412
    %v1414 = vsel %vm403, %v1413, %v1409
    %v1416 = vsel %vm406, %v1414, 0.0
    %1417 = vadd.xlane.f32.xlu0 %v1416
    %v1418 = vpop.xlane.xlu0 %1417
    %v1420 = vlaneseq
    %v1421 = vshrl.u32 %v1420, 7
    %v1422 = vsub.s32 0, %v1421
    %v1423 = vrot.slane %v1418, %v1422
    %v1424 = vlaneseq
    %v1425 = vshrl.u32 %v1424, 7
    %v1426 = vsub.s32 1, %v1425
    %v1427 = vrot.slane %v1418, %v1426
    %v1430 = vrcp.pop %v1423
    %v1431 = vmul.f32 %v1395, %v1430
    %v1432 = vrcp.pop %v1427
    %v1433 = vmul.f32 %v1397, %v1432
    %v1434 = vpack.c.bf16 %v1431, %v1431
    %v1435 = vpack.c.bf16 %v1433, %v1433
    %v1437 = vunpack.c.l.b16 %v1434
    %1438 = vset.pattern.permute.xlu0 0
    %1439 = vperm.xlu0 %1438, %v1437
    %v1440 = vpop.permute.xlu0 %1439
    %v1441 = vlaneseq
    %v1442 = vshrl.u32 %v1441, 7
    %v1443 = vsub.s32 %v394, %v1442
    %v1444 = vrot.slane %v1440, %v1443
    %v1445 = vpack.c.b16 %v1444, %v1444
    %v1447 = vsel %vm475, %v1445, 0
    %1449 = vmatprep.subr.bf16.mxu0 0
    %1450 = vmatpush1.bf16.msra.mxu0 %v481
    %1451 = vmatprep.subr.bf16.mxu0 0
    %1452 = vmatpush1.bf16.msra.mxu0 0
    %1453 = vmatprep.subr.bf16.mxu0 0
    %1454 = vmatpush1.bf16.msra.mxu0 0
    %1455 = vmatprep.subr.bf16.mxu0 0
    %1456 = vmatpush1.bf16.msra.mxu0 0
    %1457 = vmatprep.subr.bf16.mxu0 0
    %1458 = vmatpush1.bf16.msra.mxu0 0
    %1459 = vmatprep.subr.bf16.mxu0 0
    %1460 = vmatpush1.bf16.msra.mxu0 0
    %1461 = vmatprep.subr.bf16.mxu0 0
    %1462 = vmatpush1.bf16.msra.mxu0 0
    %1463 = vmatprep.subr.bf16.mxu0 0
    %1464 = vmatpush1.bf16.msra.mxu0 0
    %1465 = vmatprep.subr.bf16.mxu0 0
    %1466 = vmatpush1.bf16.msra.mxu0 0
    %1467 = vmatprep.subr.bf16.mxu0 0
    %1468 = vmatpush1.bf16.msra.mxu0 0
    %1469 = vmatprep.subr.bf16.mxu0 0
    %1470 = vmatpush1.bf16.msra.mxu0 0
    %1471 = vmatprep.subr.bf16.mxu0 0
    %1472 = vmatpush1.bf16.msra.mxu0 0
    %1473 = vmatprep.subr.bf16.mxu0 0
    %1474 = vmatpush1.bf16.msra.mxu0 0
    %1475 = vmatprep.subr.bf16.mxu0 0
    %1476 = vmatpush1.bf16.msra.mxu0 0
    %1477 = vmatprep.subr.bf16.mxu0 0
    %1478 = vmatpush1.bf16.msra.mxu0 0
    %1479 = vmatprep.subr.bf16.mxu0 0
    %1480 = vmatpush1.bf16.msra.mxu0 0
    %1481 = vmatprep.mubr.bf16.mxu0 0
    %1482 = vmatmul.mubr.bf16.gmra.mrb[0].mxu0 %v1447
    %v1483 = vpop.f32.mrb[0].mxu0
    %v1484 = vadd.f32 0.0, %v1483
    %v1485 = vpop.f32.mrb[0].mxu0
    %v1486 = vpop.f32.mrb[0].mxu0
    %v1487 = vpop.f32.mrb[0].mxu0
    %1488 = vdwg.mxu0
    %v1490 = vunpack.c.l.b16 %v1435
    %1491 = vset.pattern.permute.xlu0 0
    %1492 = vperm.xlu0 %1491, %v1490
    %v1493 = vpop.permute.xlu0 %1492
    %v1494 = vlaneseq
    %v1495 = vshrl.u32 %v1494, 7
    %v1496 = vsub.s32 %v394, %v1495
    %v1497 = vrot.slane %v1493, %v1496
    %v1498 = vpack.c.b16 %v1497, %v1497
    %v1500 = vsel %vm475, %v1498, 0
    %1502 = vmatprep.subr.bf16.mxu0 0
    %1503 = vmatpush1.bf16.msra.mxu0 %v537
    %1504 = vmatprep.subr.bf16.mxu0 0
    %1505 = vmatpush1.bf16.msra.mxu0 0
    %1506 = vmatprep.subr.bf16.mxu0 0
    %1507 = vmatpush1.bf16.msra.mxu0 0
    %1508 = vmatprep.subr.bf16.mxu0 0
    %1509 = vmatpush1.bf16.msra.mxu0 0
    %1510 = vmatprep.subr.bf16.mxu0 0
    %1511 = vmatpush1.bf16.msra.mxu0 0
    %1512 = vmatprep.subr.bf16.mxu0 0
    %1513 = vmatpush1.bf16.msra.mxu0 0
    %1514 = vmatprep.subr.bf16.mxu0 0
    %1515 = vmatpush1.bf16.msra.mxu0 0
    %1516 = vmatprep.subr.bf16.mxu0 0
    %1517 = vmatpush1.bf16.msra.mxu0 0
    %1518 = vmatprep.subr.bf16.mxu0 0
    %1519 = vmatpush1.bf16.msra.mxu0 0
    %1520 = vmatprep.subr.bf16.mxu0 0
    %1521 = vmatpush1.bf16.msra.mxu0 0
    %1522 = vmatprep.subr.bf16.mxu0 0
    %1523 = vmatpush1.bf16.msra.mxu0 0
    %1524 = vmatprep.subr.bf16.mxu0 0
    %1525 = vmatpush1.bf16.msra.mxu0 0
    %1526 = vmatprep.subr.bf16.mxu0 0
    %1527 = vmatpush1.bf16.msra.mxu0 0
    %1528 = vmatprep.subr.bf16.mxu0 0
    %1529 = vmatpush1.bf16.msra.mxu0 0
    %1530 = vmatprep.subr.bf16.mxu0 0
    %1531 = vmatpush1.bf16.msra.mxu0 0
    %1532 = vmatprep.subr.bf16.mxu0 0
    %1533 = vmatpush1.bf16.msra.mxu0 0
    %1534 = vmatprep.mubr.bf16.mxu0 0
    %1535 = vmatmul.mubr.bf16.gmra.mrb[0].mxu0 %v1500
    %v1536 = vpop.f32.mrb[0].mxu0
    %v1537 = vadd.f32 0.0, %v1536
    %v1538 = vpop.f32.mrb[0].mxu0
    %v1539 = vpop.f32.mrb[0].mxu0
    %v1540 = vpop.f32.mrb[0].mxu0
    %1541 = vdwg.mxu0
    %s1542 = scalar_lea.vmem [#allocation5], 4
    %v1543 = vld [vmem:[%s1542] sm:$0x3]
    %v1544 = vpack.c.bf16 %v1484, %v1484
    %v1545 = vpack.c.bf16 %v1537, %v1537
    %v1548 = vunpack.c.l.b16 %v1544
    %v1549 = vunpack.c.l.b16 %v1545
    %v1550 = vrot.slane %v1549, 7
    %v1551 = vsel %vm403, %v1550, %v1548
    %v1552 = vpack.c.b16 %v1551, %v1551
    %v1554 = vsel %vm120, %v1552, 0
    %1556 = vmatprep.subr.bf16.mxu0 0
    %1557 = vmatpush1.bf16.msra.mxu0 %v597
    %1558 = vmatprep.subr.bf16.mxu0 0
    %1559 = vmatpush1.bf16.msra.mxu0 %v598
    %1560 = vmatprep.subr.bf16.mxu0 0
    %1561 = vmatpush1.bf16.msra.mxu0 0
    %1562 = vmatprep.subr.bf16.mxu0 0
    %1563 = vmatpush1.bf16.msra.mxu0 0
    %1564 = vmatprep.subr.bf16.mxu0 0
    %1565 = vmatpush1.bf16.msra.mxu0 0
    %1566 = vmatprep.subr.bf16.mxu0 0
    %1567 = vmatpush1.bf16.msra.mxu0 0
    %1568 = vmatprep.subr.bf16.mxu0 0
    %1569 = vmatpush1.bf16.msra.mxu0 0
    %1570 = vmatprep.subr.bf16.mxu0 0
    %1571 = vmatpush1.bf16.msra.mxu0 0
    %1572 = vmatprep.subr.bf16.mxu0 0
    %1573 = vmatpush1.bf16.msra.mxu0 0
    %1574 = vmatprep.subr.bf16.mxu0 0
    %1575 = vmatpush1.bf16.msra.mxu0 0
    %1576 = vmatprep.subr.bf16.mxu0 0
    %1577 = vmatpush1.bf16.msra.mxu0 0
    %1578 = vmatprep.subr.bf16.mxu0 0
    %1579 = vmatpush1.bf16.msra.mxu0 0
    %1580 = vmatprep.subr.bf16.mxu0 0
    %1581 = vmatpush1.bf16.msra.mxu0 0
    %1582 = vmatprep.subr.bf16.mxu0 0
    %1583 = vmatpush1.bf16.msra.mxu0 0
    %1584 = vmatprep.subr.bf16.mxu0 0
    %1585 = vmatpush1.bf16.msra.mxu0 0
    %1586 = vmatprep.subr.bf16.mxu0 0
    %1587 = vmatpush1.bf16.msra.mxu0 0
    %1588 = vmatprep.mubr.bf16.mxu0 0
    %1589 = vmatmul.mubr.bf16.gmra.mrb[0].mxu0 %v1554
    %v1590 = vpop.f32.mrb[0].mxu0
    %v1591 = vadd.f32 0.0, %v1590
    %v1592 = vpop.f32.mrb[0].mxu0
    %v1593 = vpop.f32.mrb[0].mxu0
    %v1594 = vpop.f32.mrb[0].mxu0
    %1595 = vdwg.mxu0
    %v1597 = vsel %vm644, %v1543, 0
    %1599 = vmatprep.subr.mxu0 0.0
    %1600 = vmatpush1.msra.mxu0 %v254
    %1601 = vmatprep.subr.mxu0 0.0
    %1602 = vmatpush1.msra.mxu0 %v257
    %1603 = vmatprep.subr.mxu0 0.0
    %1604 = vmatpush1.msra.mxu0 %v650
    %1605 = vmatprep.subr.mxu0 0.0
    %1606 = vmatpush1.msra.mxu0 0.0
    %1607 = vmatprep.subr.mxu0 0.0
    %1608 = vmatpush1.msra.mxu0 0.0
    %1609 = vmatprep.subr.mxu0 0.0
    %1610 = vmatpush1.msra.mxu0 0.0
    %1611 = vmatprep.subr.mxu0 0.0
    %1612 = vmatpush1.msra.mxu0 0.0
    %1613 = vmatprep.subr.mxu0 0.0
    %1614 = vmatpush1.msra.mxu0 0.0
    %1615 = vmatprep.subr.mxu0 0.0
    %1616 = vmatpush1.msra.mxu0 0.0
    %1617 = vmatprep.subr.mxu0 0.0
    %1618 = vmatpush1.msra.mxu0 0.0
    %1619 = vmatprep.subr.mxu0 0.0
    %1620 = vmatpush1.msra.mxu0 0.0
    %1621 = vmatprep.subr.mxu0 0.0
    %1622 = vmatpush1.msra.mxu0 0.0
    %1623 = vmatprep.subr.mxu0 0.0
    %1624 = vmatpush1.msra.mxu0 0.0
    %1625 = vmatprep.subr.mxu0 0.0
    %1626 = vmatpush1.msra.mxu0 0.0
    %1627 = vmatprep.subr.mxu0 0.0
    %1628 = vmatpush1.msra.mxu0 0.0
    %1629 = vmatprep.subr.mxu0 0.0
    %1630 = vmatpush1.msra.mxu0 0.0
    %1631 = vmatprep.subr.mxu0 0.0
    %1632 = vmatpush1.msra.mxu0 0.0
    %1633 = vmatprep.subr.mxu0 0.0
    %1634 = vmatpush1.msra.mxu0 0.0
    %1635 = vmatprep.subr.mxu0 0.0
    %1636 = vmatpush1.msra.mxu0 0.0
    %1637 = vmatprep.subr.mxu0 0.0
    %1638 = vmatpush1.msra.mxu0 0.0
    %1639 = vmatprep.subr.mxu0 0.0
    %1640 = vmatpush1.msra.mxu0 0.0
    %1641 = vmatprep.subr.mxu0 0.0
    %1642 = vmatpush1.msra.mxu0 0.0
    %1643 = vmatprep.subr.mxu0 0.0
    %1644 = vmatpush1.msra.mxu0 0.0
    %1645 = vmatprep.subr.mxu0 0.0
    %1646 = vmatpush1.msra.mxu0 0.0
    %1647 = vmatprep.subr.mxu0 0.0
    %1648 = vmatpush1.msra.mxu0 0.0
    %1649 = vmatprep.subr.mxu0 0.0
    %1650 = vmatpush1.msra.mxu0 0.0
    %1651 = vmatprep.subr.mxu0 0.0
    %1652 = vmatpush1.msra.mxu0 0.0
    %1653 = vmatprep.subr.mxu0 0.0
    %1654 = vmatpush1.msra.mxu0 0.0
    %1655 = vmatprep.subr.mxu0 0.0
    %1656 = vmatpush1.msra.mxu0 0.0
    %1657 = vmatprep.subr.mxu0 0.0
    %1658 = vmatpush1.msra.mxu0 0.0
    %1659 = vmatprep.subr.mxu0 0.0
    %1660 = vmatpush1.msra.mxu0 0.0
    %1661 = vmatprep.subr.mxu0 0.0
    %1662 = vmatpush1.msra.mxu0 0.0
    %1663 = vmatprep.mubr.f32.mxu0 0.0
    %1664 = vmatmul.mubr.f32.gmra.mrb[0].mxu0 %v1597
    %v1665 = vpop.f32.mrb[0].mxu0
    %v1666 = vadd.f32 %v1591, %v1665
    %v1667 = vpop.f32.mrb[0].mxu0
    %1668 = vdwg.mxu0
    %v1669 = vadd.f32 %v1666, %v728
    %1670 = vrot.lane.b32.xlu0 %v1316, 96
    %v1671 = vpop.permute.xlu0 %1670
    %v1673 = vadd.f32 %v1669, %v1671
    %v1674 = vxor.u32 %v1673, 2147483648
    %v1675 = vmul.f32 %v1674, 1.442695
    %v1676 = vpow.pop %v1675
    %v1677 = vadd.f32 %v1676, 1.0
    %v1678 = vrcp.pop %v1677
    %v1679 = vmul.f32 1.0, %v1678
    %1680 = vrot.lane.b32.xlu0 %v1316, 32
    %v1681 = vpop.permute.xlu0 %1680
    %v1683 = vmul.f32 %v1679, %v1681
    %1685 = vrot.lane.b32.xlu0 %v1683, 64
    %v1686 = vpop.permute.xlu0 %1685
    %v1688 = vadd.f32 %v1669, %v1686
    %v1689 = vtanh.pop %v1688
    %v1690 = vsub.f32 1.0, %v1679
    %1692 = vrot.lane.b32.xlu0 %v1689, 96
    %v1693 = vpop.permute.xlu0 %1692
    %v1695 = vmul.f32 %v1690, %v1693
    %v1696 = vmul.f32 %v1679, %v1231
    %v1697 = vadd.f32 %v1695, %v1696
    %v1698 = vpack.c.bf16 %v1697, %v1697
    %1700 = vrot.lane.b32.xlu0 %v1698, 96
    %v1701 = vpop.permute.xlu0 %1700
    %v1703 = vsel %vm120, %v1701, 0
    %1705 = vmatprep.subr.bf16.mxu0 0
    %1706 = vmatpush1.bf16.msra.mxu0 %v765
    %1707 = vmatprep.subr.bf16.mxu0 0
    %1708 = vmatpush1.bf16.msra.mxu0 %v767
    %1709 = vmatprep.subr.bf16.mxu0 0
    %1710 = vmatpush1.bf16.msra.mxu0 0
    %1711 = vmatprep.subr.bf16.mxu0 0
    %1712 = vmatpush1.bf16.msra.mxu0 0
    %1713 = vmatprep.subr.bf16.mxu0 0
    %1714 = vmatpush1.bf16.msra.mxu0 0
    %1715 = vmatprep.subr.bf16.mxu0 0
    %1716 = vmatpush1.bf16.msra.mxu0 0
    %1717 = vmatprep.subr.bf16.mxu0 0
    %1718 = vmatpush1.bf16.msra.mxu0 0
    %1719 = vmatprep.subr.bf16.mxu0 0
    %1720 = vmatpush1.bf16.msra.mxu0 0
    %1721 = vmatprep.subr.bf16.mxu0 0
    %1722 = vmatpush1.bf16.msra.mxu0 0
    %1723 = vmatprep.subr.bf16.mxu0 0
    %1724 = vmatpush1.bf16.msra.mxu0 0
    %1725 = vmatprep.subr.bf16.mxu0 0
    %1726 = vmatpush1.bf16.msra.mxu0 0
    %1727 = vmatprep.subr.bf16.mxu0 0
    %1728 = vmatpush1.bf16.msra.mxu0 0
    %1729 = vmatprep.subr.bf16.mxu0 0
    %1730 = vmatpush1.bf16.msra.mxu0 0
    %1731 = vmatprep.subr.bf16.mxu0 0
    %1732 = vmatpush1.bf16.msra.mxu0 0
    %1733 = vmatprep.subr.bf16.mxu0 0
    %1734 = vmatpush1.bf16.msra.mxu0 0
    %1735 = vmatprep.subr.bf16.mxu0 0
    %1736 = vmatpush1.bf16.msra.mxu0 0
    %1737 = vmatprep.mubr.bf16.mxu0 0
    %1738 = vmatmul.mubr.bf16.gmra.mrb[0].mxu0 %v1703
    %v1739 = vpop.f32.mrb[0].mxu0
    %v1740 = vadd.f32 %v379, %v1739
    %v1741 = vpop.f32.mrb[0].mxu0
    %v1742 = vpop.f32.mrb[0].mxu0
    %v1743 = vpop.f32.mrb[0].mxu0
    %1744 = vdwg.mxu0
    %s1745 = scalar_lea.vmem [#allocation10], 4
    %1746 = vst.msk [vmem:[%s1745] sm:$0x3] %vm813, %v1740
    %1747 = vmatprep.subr.bf16.mxu0 0
    %1748 = vmatpush1.bf16.msra.mxu0 %v284
    %1749 = vmatprep.subr.bf16.mxu0 0
    %1750 = vmatpush1.bf16.msra.mxu0 %v285
    %1751 = vmatprep.subr.bf16.mxu0 0
    %1752 = vmatpush1.bf16.msra.mxu0 0
    %1753 = vmatprep.subr.bf16.mxu0 0
    %1754 = vmatpush1.bf16.msra.mxu0 0
    %1755 = vmatprep.subr.bf16.mxu0 0
    %1756 = vmatpush1.bf16.msra.mxu0 0
    %1757 = vmatprep.subr.bf16.mxu0 0
    %1758 = vmatpush1.bf16.msra.mxu0 0
    %1759 = vmatprep.subr.bf16.mxu0 0
    %1760 = vmatpush1.bf16.msra.mxu0 0
    %1761 = vmatprep.subr.bf16.mxu0 0
    %1762 = vmatpush1.bf16.msra.mxu0 0
    %1763 = vmatprep.subr.bf16.mxu0 0
    %1764 = vmatpush1.bf16.msra.mxu0 0
    %1765 = vmatprep.subr.bf16.mxu0 0
    %1766 = vmatpush1.bf16.msra.mxu0 0
    %1767 = vmatprep.subr.bf16.mxu0 0
    %1768 = vmatpush1.bf16.msra.mxu0 0
    %1769 = vmatprep.subr.bf16.mxu0 0
    %1770 = vmatpush1.bf16.msra.mxu0 0
    %1771 = vmatprep.subr.bf16.mxu0 0
    %1772 = vmatpush1.bf16.msra.mxu0 0
    %1773 = vmatprep.subr.bf16.mxu0 0
    %1774 = vmatpush1.bf16.msra.mxu0 0
    %1775 = vmatprep.subr.bf16.mxu0 0
    %1776 = vmatpush1.bf16.msra.mxu0 0
    %1777 = vmatprep.subr.bf16.mxu0 0
    %1778 = vmatpush1.bf16.msra.mxu0 0
    %1779 = vmatprep.mubr.bf16.mxu0 0
    %1780 = vmatmul.mubr.bf16.gmra.mrb[0].mxu0 %v1703
    %v1781 = vpop.f32.mrb[0].mxu0
    %v1782 = vadd.f32 %v293, %v1781
    %v1783 = vpop.f32.mrb[0].mxu0
    %v1784 = vpop.f32.mrb[0].mxu0
    %v1785 = vpop.f32.mrb[0].mxu0
    %1786 = vdwg.mxu0
    %v1789 = vunpack.c.l.s4 1966171168
    %v1790 = vunpack.c.0.s8 %v1789
    %v1791 = vlaneseq
    %v1792 = vshrl.u32 %v1791, 7
    %v1793 = vsub.s32 %v1790, %v1792
    %v1794 = vrot.slane %v1782, %v1793
    %v1795 = vcombine.high %v1794, %v1794
    %v1797 = vunpack.c.l.s4 1966171168
    %v1798 = vunpack.c.0.s8 %v1797
    %v1799 = vlaneseq
    %v1800 = vshrl.u32 %v1799, 7
    %v1801 = vsub.s32 %v1798, %v1800
    %v1802 = vrot.slane %v1794, %v1801
    %v1804 = vunpack.c.l.s4 1966171168
    %v1805 = vunpack.c.0.s8 %v1804
    %v1806 = vlaneseq
    %v1807 = vshrl.u32 %v1806, 7
    %v1808 = vsub.s32 %v1805, %v1807
    %v1809 = vrot.slane %v1795, %v1808
    %v1810 = vlaneseq
    %v1811 = vshrl.u32 %v1810, 7
    %v1812 = vsub.s32 0, %v1811
    %v1813 = vrot.slane %v1802, %v1812
    %v1814 = vlaneseq
    %v1815 = vshrl.u32 %v1814, 7
    %v1816 = vsub.s32 0, %v1815
    %v1817 = vrot.slane %v1809, %v1816
    %v1820 = vadd.f32 %v171, %v1813
    %v1821 = vadd.f32 %v172, %v1817
    %v1822 = vtanh.pop %v1820
    %v1823 = vtanh.pop %v1821
    %v1824 = vmul.f32 %v1822, %v381
    %v1825 = vmul.f32 %v1823, %v381
    %v1826 = vsel %vm120, %v1824, 0.0
    %1827 = vadd.xlane.f32.xlu0 %v1826
    %v1828 = vpop.xlane.xlu0 %1827
    %v1829 = vsel %vm120, %v1825, 0.0
    %1830 = vadd.xlane.f32.xlu0 %v1829
    %v1831 = vpop.xlane.xlu0 %1830
    %v1834 = vlaneseq
    %v1835 = vshrl.u32 %v1834, 7
    %v1836 = vsub.s32 %v394, %v1835
    %v1837 = vrot.slane %v1828, %v1836
    %v1838 = vlaneseq
    %v1839 = vshrl.u32 %v1838, 7
    %v1840 = vsub.s32 %v394, %v1839
    %v1841 = vrot.slane %v1831, %v1840
    %v1842 = vsel %vm403, %v1841, %v1837
    %v1844 = vsel %vm406, %v1842, -inf
    %1845 = vmax.xlane.f32.xlu0 %v1844
    %v1846 = vpop.xlane.xlu0 %1845
    %v1848 = vlaneseq
    %v1849 = vshrl.u32 %v1848, 7
    %v1850 = vsub.s32 0, %v1849
    %v1851 = vrot.slane %v1846, %v1850
    %v1852 = vlaneseq
    %v1853 = vshrl.u32 %v1852, 7
    %v1854 = vsub.s32 1, %v1853
    %v1855 = vrot.slane %v1846, %v1854
    %v1858 = vsub.f32 %v1828, %v1851
    %v1859 = vsub.f32 %v1831, %v1855
    %v1860 = vmul.f32 %v1858, 1.442695
    %v1861 = vpow.pop %v1860
    %v1862 = vmul.f32 %v1859, 1.442695
    %v1863 = vpow.pop %v1862
    %1866 = vset.pattern.permute.xlu0 0
    %1867 = vperm.xlu0 %1866, %v1861
    %v1868 = vpop.permute.xlu0 %1867
    %1869 = vset.pattern.permute.xlu0 0
    %1870 = vperm.xlu0 %1869, %v1863
    %v1871 = vpop.permute.xlu0 %1870
    %v1872 = vlaneseq
    %v1873 = vshrl.u32 %v1872, 7
    %v1874 = vsub.s32 %v394, %v1873
    %v1875 = vrot.slane %v1868, %v1874
    %v1876 = vlaneseq
    %v1877 = vshrl.u32 %v1876, 7
    %v1878 = vsub.s32 %v394, %v1877
    %v1879 = vrot.slane %v1871, %v1878
    %v1880 = vsel %vm403, %v1879, %v1875
    %v1882 = vsel %vm406, %v1880, 0.0
    %1883 = vadd.xlane.f32.xlu0 %v1882
    %v1884 = vpop.xlane.xlu0 %1883
    %v1886 = vlaneseq
    %v1887 = vshrl.u32 %v1886, 7
    %v1888 = vsub.s32 0, %v1887
    %v1889 = vrot.slane %v1884, %v1888
    %v1890 = vlaneseq
    %v1891 = vshrl.u32 %v1890, 7
    %v1892 = vsub.s32 1, %v1891
    %v1893 = vrot.slane %v1884, %v1892
    %v1896 = vrcp.pop %v1889
    %v1897 = vmul.f32 %v1861, %v1896
    %v1898 = vrcp.pop %v1893
    %v1899 = vmul.f32 %v1863, %v1898
    %v1900 = vpack.c.bf16 %v1897, %v1897
    %v1901 = vpack.c.bf16 %v1899, %v1899
    %v1903 = vunpack.c.l.b16 %v1900
    %1904 = vset.pattern.permute.xlu0 0
    %1905 = vperm.xlu0 %1904, %v1903
    %v1906 = vpop.permute.xlu0 %1905
    %v1907 = vlaneseq
    %v1908 = vshrl.u32 %v1907, 7
    %v1909 = vsub.s32 %v394, %v1908
    %v1910 = vrot.slane %v1906, %v1909
    %v1911 = vpack.c.b16 %v1910, %v1910
    %v1913 = vsel %vm475, %v1911, 0
    %1915 = vmatprep.subr.bf16.mxu0 0
    %1916 = vmatpush1.bf16.msra.mxu0 %v481
    %1917 = vmatprep.subr.bf16.mxu0 0
    %1918 = vmatpush1.bf16.msra.mxu0 0
    %1919 = vmatprep.subr.bf16.mxu0 0
    %1920 = vmatpush1.bf16.msra.mxu0 0
    %1921 = vmatprep.subr.bf16.mxu0 0
    %1922 = vmatpush1.bf16.msra.mxu0 0
    %1923 = vmatprep.subr.bf16.mxu0 0
    %1924 = vmatpush1.bf16.msra.mxu0 0
    %1925 = vmatprep.subr.bf16.mxu0 0
    %1926 = vmatpush1.bf16.msra.mxu0 0
    %1927 = vmatprep.subr.bf16.mxu0 0
    %1928 = vmatpush1.bf16.msra.mxu0 0
    %1929 = vmatprep.subr.bf16.mxu0 0
    %1930 = vmatpush1.bf16.msra.mxu0 0
    %1931 = vmatprep.subr.bf16.mxu0 0
    %1932 = vmatpush1.bf16.msra.mxu0 0
    %1933 = vmatprep.subr.bf16.mxu0 0
    %1934 = vmatpush1.bf16.msra.mxu0 0
    %1935 = vmatprep.subr.bf16.mxu0 0
    %1936 = vmatpush1.bf16.msra.mxu0 0
    %1937 = vmatprep.subr.bf16.mxu0 0
    %1938 = vmatpush1.bf16.msra.mxu0 0
    %1939 = vmatprep.subr.bf16.mxu0 0
    %1940 = vmatpush1.bf16.msra.mxu0 0
    %1941 = vmatprep.subr.bf16.mxu0 0
    %1942 = vmatpush1.bf16.msra.mxu0 0
    %1943 = vmatprep.subr.bf16.mxu0 0
    %1944 = vmatpush1.bf16.msra.mxu0 0
    %1945 = vmatprep.subr.bf16.mxu0 0
    %1946 = vmatpush1.bf16.msra.mxu0 0
    %1947 = vmatprep.mubr.bf16.mxu0 0
    %1948 = vmatmul.mubr.bf16.gmra.mrb[0].mxu0 %v1913
    %v1949 = vpop.f32.mrb[0].mxu0
    %v1950 = vadd.f32 0.0, %v1949
    %v1951 = vpop.f32.mrb[0].mxu0
    %v1952 = vpop.f32.mrb[0].mxu0
    %v1953 = vpop.f32.mrb[0].mxu0
    %1954 = vdwg.mxu0
    %v1956 = vunpack.c.l.b16 %v1901
    %1957 = vset.pattern.permute.xlu0 0
    %1958 = vperm.xlu0 %1957, %v1956
    %v1959 = vpop.permute.xlu0 %1958
    %v1960 = vlaneseq
    %v1961 = vshrl.u32 %v1960, 7
    %v1962 = vsub.s32 %v394, %v1961
    %v1963 = vrot.slane %v1959, %v1962
    %v1964 = vpack.c.b16 %v1963, %v1963
    %v1966 = vsel %vm475, %v1964, 0
    %1968 = vmatprep.subr.bf16.mxu0 0
    %1969 = vmatpush1.bf16.msra.mxu0 %v537
    %1970 = vmatprep.subr.bf16.mxu0 0
    %1971 = vmatpush1.bf16.msra.mxu0 0
    %1972 = vmatprep.subr.bf16.mxu0 0
    %1973 = vmatpush1.bf16.msra.mxu0 0
    %1974 = vmatprep.subr.bf16.mxu0 0
    %1975 = vmatpush1.bf16.msra.mxu0 0
    %1976 = vmatprep.subr.bf16.mxu0 0
    %1977 = vmatpush1.bf16.msra.mxu0 0
    %1978 = vmatprep.subr.bf16.mxu0 0
    %1979 = vmatpush1.bf16.msra.mxu0 0
    %1980 = vmatprep.subr.bf16.mxu0 0
    %1981 = vmatpush1.bf16.msra.mxu0 0
    %1982 = vmatprep.subr.bf16.mxu0 0
    %1983 = vmatpush1.bf16.msra.mxu0 0
    %1984 = vmatprep.subr.bf16.mxu0 0
    %1985 = vmatpush1.bf16.msra.mxu0 0
    %1986 = vmatprep.subr.bf16.mxu0 0
    %1987 = vmatpush1.bf16.msra.mxu0 0
    %1988 = vmatprep.subr.bf16.mxu0 0
    %1989 = vmatpush1.bf16.msra.mxu0 0
    %1990 = vmatprep.subr.bf16.mxu0 0
    %1991 = vmatpush1.bf16.msra.mxu0 0
    %1992 = vmatprep.subr.bf16.mxu0 0
    %1993 = vmatpush1.bf16.msra.mxu0 0
    %1994 = vmatprep.subr.bf16.mxu0 0
    %1995 = vmatpush1.bf16.msra.mxu0 0
    %1996 = vmatprep.subr.bf16.mxu0 0
    %1997 = vmatpush1.bf16.msra.mxu0 0
    %1998 = vmatprep.subr.bf16.mxu0 0
    %1999 = vmatpush1.bf16.msra.mxu0 0
    %2000 = vmatprep.mubr.bf16.mxu0 0
    %2001 = vmatmul.mubr.bf16.gmra.mrb[0].mxu0 %v1966
    %v2002 = vpop.f32.mrb[0].mxu0
    %v2003 = vadd.f32 0.0, %v2002
    %v2004 = vpop.f32.mrb[0].mxu0
    %v2005 = vpop.f32.mrb[0].mxu0
    %v2006 = vpop.f32.mrb[0].mxu0
    %2007 = vdwg.mxu0
    %s2008 = scalar_lea.vmem [#allocation5], 6
    %v2009 = vld [vmem:[%s2008] sm:$0x3]
    %v2010 = vpack.c.bf16 %v1950, %v1950
    %v2011 = vpack.c.bf16 %v2003, %v2003
    %v2014 = vunpack.c.l.b16 %v2010
    %v2015 = vunpack.c.l.b16 %v2011
    %v2016 = vrot.slane %v2015, 7
    %v2017 = vsel %vm403, %v2016, %v2014
    %v2018 = vpack.c.b16 %v2017, %v2017
    %v2020 = vsel %vm120, %v2018, 0
    %2022 = vmatprep.subr.bf16.mxu0 0
    %2023 = vmatpush1.bf16.msra.mxu0 %v597
    %2024 = vmatprep.subr.bf16.mxu0 0
    %2025 = vmatpush1.bf16.msra.mxu0 %v598
    %2026 = vmatprep.subr.bf16.mxu0 0
    %2027 = vmatpush1.bf16.msra.mxu0 0
    %2028 = vmatprep.subr.bf16.mxu0 0
    %2029 = vmatpush1.bf16.msra.mxu0 0
    %2030 = vmatprep.subr.bf16.mxu0 0
    %2031 = vmatpush1.bf16.msra.mxu0 0
    %2032 = vmatprep.subr.bf16.mxu0 0
    %2033 = vmatpush1.bf16.msra.mxu0 0
    %2034 = vmatprep.subr.bf16.mxu0 0
    %2035 = vmatpush1.bf16.msra.mxu0 0
    %2036 = vmatprep.subr.bf16.mxu0 0
    %2037 = vmatpush1.bf16.msra.mxu0 0
    %2038 = vmatprep.subr.bf16.mxu0 0
    %2039 = vmatpush1.bf16.msra.mxu0 0
    %2040 = vmatprep.subr.bf16.mxu0 0
    %2041 = vmatpush1.bf16.msra.mxu0 0
    %2042 = vmatprep.subr.bf16.mxu0 0
    %2043 = vmatpush1.bf16.msra.mxu0 0
    %2044 = vmatprep.subr.bf16.mxu0 0
    %2045 = vmatpush1.bf16.msra.mxu0 0
    %2046 = vmatprep.subr.bf16.mxu0 0
    %2047 = vmatpush1.bf16.msra.mxu0 0
    %2048 = vmatprep.subr.bf16.mxu0 0
    %2049 = vmatpush1.bf16.msra.mxu0 0
    %2050 = vmatprep.subr.bf16.mxu0 0
    %2051 = vmatpush1.bf16.msra.mxu0 0
    %2052 = vmatprep.subr.bf16.mxu0 0
    %2053 = vmatpush1.bf16.msra.mxu0 0
    %2054 = vmatprep.mubr.bf16.mxu0 0
    %2055 = vmatmul.mubr.bf16.gmra.mrb[0].mxu0 %v2020
    %v2056 = vpop.f32.mrb[0].mxu0
    %v2057 = vadd.f32 0.0, %v2056
    %v2058 = vpop.f32.mrb[0].mxu0
    %v2059 = vpop.f32.mrb[0].mxu0
    %v2060 = vpop.f32.mrb[0].mxu0
    %2061 = vdwg.mxu0
    %v2063 = vsel %vm644, %v2009, 0
    %2065 = vmatprep.subr.mxu0 0.0
    %2066 = vmatpush1.msra.mxu0 %v254
    %2067 = vmatprep.subr.mxu0 0.0
    %2068 = vmatpush1.msra.mxu0 %v257
    %2069 = vmatprep.subr.mxu0 0.0
    %2070 = vmatpush1.msra.mxu0 %v650
    %2071 = vmatprep.subr.mxu0 0.0
    %2072 = vmatpush1.msra.mxu0 0.0
    %2073 = vmatprep.subr.mxu0 0.0
    %2074 = vmatpush1.msra.mxu0 0.0
    %2075 = vmatprep.subr.mxu0 0.0
    %2076 = vmatpush1.msra.mxu0 0.0
    %2077 = vmatprep.subr.mxu0 0.0
    %2078 = vmatpush1.msra.mxu0 0.0
    %2079 = vmatprep.subr.mxu0 0.0
    %2080 = vmatpush1.msra.mxu0 0.0
    %2081 = vmatprep.subr.mxu0 0.0
    %2082 = vmatpush1.msra.mxu0 0.0
    %2083 = vmatprep.subr.mxu0 0.0
    %2084 = vmatpush1.msra.mxu0 0.0
    %2085 = vmatprep.subr.mxu0 0.0
    %2086 = vmatpush1.msra.mxu0 0.0
    %2087 = vmatprep.subr.mxu0 0.0
    %2088 = vmatpush1.msra.mxu0 0.0
    %2089 = vmatprep.subr.mxu0 0.0
    %2090 = vmatpush1.msra.mxu0 0.0
    %2091 = vmatprep.subr.mxu0 0.0
    %2092 = vmatpush1.msra.mxu0 0.0
    %2093 = vmatprep.subr.mxu0 0.0
    %2094 = vmatpush1.msra.mxu0 0.0
    %2095 = vmatprep.subr.mxu0 0.0
    %2096 = vmatpush1.msra.mxu0 0.0
    %2097 = vmatprep.subr.mxu0 0.0
    %2098 = vmatpush1.msra.mxu0 0.0
    %2099 = vmatprep.subr.mxu0 0.0
    %2100 = vmatpush1.msra.mxu0 0.0
    %2101 = vmatprep.subr.mxu0 0.0
    %2102 = vmatpush1.msra.mxu0 0.0
    %2103 = vmatprep.subr.mxu0 0.0
    %2104 = vmatpush1.msra.mxu0 0.0
    %2105 = vmatprep.subr.mxu0 0.0
    %2106 = vmatpush1.msra.mxu0 0.0
    %2107 = vmatprep.subr.mxu0 0.0
    %2108 = vmatpush1.msra.mxu0 0.0
    %2109 = vmatprep.subr.mxu0 0.0
    %2110 = vmatpush1.msra.mxu0 0.0
    %2111 = vmatprep.subr.mxu0 0.0
    %2112 = vmatpush1.msra.mxu0 0.0
    %2113 = vmatprep.subr.mxu0 0.0
    %2114 = vmatpush1.msra.mxu0 0.0
    %2115 = vmatprep.subr.mxu0 0.0
    %2116 = vmatpush1.msra.mxu0 0.0
    %2117 = vmatprep.subr.mxu0 0.0
    %2118 = vmatpush1.msra.mxu0 0.0
    %2119 = vmatprep.subr.mxu0 0.0
    %2120 = vmatpush1.msra.mxu0 0.0
    %2121 = vmatprep.subr.mxu0 0.0
    %2122 = vmatpush1.msra.mxu0 0.0
    %2123 = vmatprep.subr.mxu0 0.0
    %2124 = vmatpush1.msra.mxu0 0.0
    %2125 = vmatprep.subr.mxu0 0.0
    %2126 = vmatpush1.msra.mxu0 0.0
    %2127 = vmatprep.subr.mxu0 0.0
    %2128 = vmatpush1.msra.mxu0 0.0
    %2129 = vmatprep.mubr.f32.mxu0 0.0
    %2130 = vmatmul.mubr.f32.gmra.mrb[0].mxu0 %v2063
    %v2131 = vpop.f32.mrb[0].mxu0
    %v2132 = vadd.f32 %v2057, %v2131
    %v2133 = vpop.f32.mrb[0].mxu0
    %2134 = vdwg.mxu0
    %v2135 = vadd.f32 %v2132, %v728
    %2136 = vrot.lane.b32.xlu0 %v1782, 96
    %v2137 = vpop.permute.xlu0 %2136
    %v2139 = vadd.f32 %v2135, %v2137
    %v2140 = vxor.u32 %v2139, 2147483648
    %v2141 = vmul.f32 %v2140, 1.442695
    %v2142 = vpow.pop %v2141
    %v2143 = vadd.f32 %v2142, 1.0
    %v2144 = vrcp.pop %v2143
    %v2145 = vmul.f32 1.0, %v2144
    %2146 = vrot.lane.b32.xlu0 %v1782, 32
    %v2147 = vpop.permute.xlu0 %2146
    %v2149 = vmul.f32 %v2145, %v2147
    %2151 = vrot.lane.b32.xlu0 %v2149, 64
    %v2152 = vpop.permute.xlu0 %2151
    %v2154 = vadd.f32 %v2135, %v2152
    %v2155 = vtanh.pop %v2154
    %v2156 = vsub.f32 1.0, %v2145
    %2158 = vrot.lane.b32.xlu0 %v2155, 96
    %v2159 = vpop.permute.xlu0 %2158
    %v2161 = vmul.f32 %v2156, %v2159
    %v2162 = vmul.f32 %v2145, %v1697
    %v2163 = vadd.f32 %v2161, %v2162
    %v2164 = vpack.c.bf16 %v2163, %v2163
    %2166 = vrot.lane.b32.xlu0 %v2164, 96
    %v2167 = vpop.permute.xlu0 %2166
    %v2169 = vsel %vm120, %v2167, 0
    %2171 = vmatprep.subr.bf16.mxu0 0
    %2172 = vmatpush1.bf16.msra.mxu0 %v765
    %2173 = vmatprep.subr.bf16.mxu0 0
    %2174 = vmatpush1.bf16.msra.mxu0 %v767
    %2175 = vmatprep.subr.bf16.mxu0 0
    %2176 = vmatpush1.bf16.msra.mxu0 0
    %2177 = vmatprep.subr.bf16.mxu0 0
    %2178 = vmatpush1.bf16.msra.mxu0 0
    %2179 = vmatprep.subr.bf16.mxu0 0
    %2180 = vmatpush1.bf16.msra.mxu0 0
    %2181 = vmatprep.subr.bf16.mxu0 0
    %2182 = vmatpush1.bf16.msra.mxu0 0
    %2183 = vmatprep.subr.bf16.mxu0 0
    %2184 = vmatpush1.bf16.msra.mxu0 0
    %2185 = vmatprep.subr.bf16.mxu0 0
    %2186 = vmatpush1.bf16.msra.mxu0 0
    %2187 = vmatprep.subr.bf16.mxu0 0
    %2188 = vmatpush1.bf16.msra.mxu0 0
    %2189 = vmatprep.subr.bf16.mxu0 0
    %2190 = vmatpush1.bf16.msra.mxu0 0
    %2191 = vmatprep.subr.bf16.mxu0 0
    %2192 = vmatpush1.bf16.msra.mxu0 0
    %2193 = vmatprep.subr.bf16.mxu0 0
    %2194 = vmatpush1.bf16.msra.mxu0 0
    %2195 = vmatprep.subr.bf16.mxu0 0
    %2196 = vmatpush1.bf16.msra.mxu0 0
    %2197 = vmatprep.subr.bf16.mxu0 0
    %2198 = vmatpush1.bf16.msra.mxu0 0
    %2199 = vmatprep.subr.bf16.mxu0 0
    %2200 = vmatpush1.bf16.msra.mxu0 0
    %2201 = vmatprep.subr.bf16.mxu0 0
    %2202 = vmatpush1.bf16.msra.mxu0 0
    %2203 = vmatprep.mubr.bf16.mxu0 0
    %2204 = vmatmul.mubr.bf16.gmra.mrb[0].mxu0 %v2169
    %v2205 = vpop.f32.mrb[0].mxu0
    %v2206 = vadd.f32 %v379, %v2205
    %v2207 = vpop.f32.mrb[0].mxu0
    %v2208 = vpop.f32.mrb[0].mxu0
    %v2209 = vpop.f32.mrb[0].mxu0
    %2210 = vdwg.mxu0
    %s2211 = scalar_lea.vmem [#allocation10], 6
    %2212 = vst.msk [vmem:[%s2211] sm:$0x3] %vm813, %v2206
    %2213 = vmatprep.subr.bf16.mxu0 0
    %2214 = vmatpush1.bf16.msra.mxu0 %v284
    %2215 = vmatprep.subr.bf16.mxu0 0
    %2216 = vmatpush1.bf16.msra.mxu0 %v285
    %2217 = vmatprep.subr.bf16.mxu0 0
    %2218 = vmatpush1.bf16.msra.mxu0 0
    %2219 = vmatprep.subr.bf16.mxu0 0
    %2220 = vmatpush1.bf16.msra.mxu0 0
    %2221 = vmatprep.subr.bf16.mxu0 0
    %2222 = vmatpush1.bf16.msra.mxu0 0
    %2223 = vmatprep.subr.bf16.mxu0 0
    %2224 = vmatpush1.bf16.msra.mxu0 0
    %2225 = vmatprep.subr.bf16.mxu0 0
    %2226 = vmatpush1.bf16.msra.mxu0 0
    %2227 = vmatprep.subr.bf16.mxu0 0
    %2228 = vmatpush1.bf16.msra.mxu0 0
    %2229 = vmatprep.subr.bf16.mxu0 0
    %2230 = vmatpush1.bf16.msra.mxu0 0
    %2231 = vmatprep.subr.bf16.mxu0 0
    %2232 = vmatpush1.bf16.msra.mxu0 0
    %2233 = vmatprep.subr.bf16.mxu0 0
    %2234 = vmatpush1.bf16.msra.mxu0 0
    %2235 = vmatprep.subr.bf16.mxu0 0
    %2236 = vmatpush1.bf16.msra.mxu0 0
    %2237 = vmatprep.subr.bf16.mxu0 0
    %2238 = vmatpush1.bf16.msra.mxu0 0
    %2239 = vmatprep.subr.bf16.mxu0 0
    %2240 = vmatpush1.bf16.msra.mxu0 0
    %2241 = vmatprep.subr.bf16.mxu0 0
    %2242 = vmatpush1.bf16.msra.mxu0 0
    %2243 = vmatprep.subr.bf16.mxu0 0
    %2244 = vmatpush1.bf16.msra.mxu0 0
    %2245 = vmatprep.mubr.bf16.mxu0 0
    %2246 = vmatmul.mubr.bf16.gmra.mrb[0].mxu0 %v2169
    %v2247 = vpop.f32.mrb[0].mxu0
    %v2248 = vadd.f32 %v293, %v2247
    %v2249 = vpop.f32.mrb[0].mxu0
    %v2250 = vpop.f32.mrb[0].mxu0
    %v2251 = vpop.f32.mrb[0].mxu0
    %2252 = vdwg.mxu0
    %v2255 = vunpack.c.l.s4 1966171168
    %v2256 = vunpack.c.0.s8 %v2255
    %v2257 = vlaneseq
    %v2258 = vshrl.u32 %v2257, 7
    %v2259 = vsub.s32 %v2256, %v2258
    %v2260 = vrot.slane %v2248, %v2259
    %v2261 = vcombine.high %v2260, %v2260
    %v2263 = vunpack.c.l.s4 1966171168
    %v2264 = vunpack.c.0.s8 %v2263
    %v2265 = vlaneseq
    %v2266 = vshrl.u32 %v2265, 7
    %v2267 = vsub.s32 %v2264, %v2266
    %v2268 = vrot.slane %v2260, %v2267
    %v2270 = vunpack.c.l.s4 1966171168
    %v2271 = vunpack.c.0.s8 %v2270
    %v2272 = vlaneseq
    %v2273 = vshrl.u32 %v2272, 7
    %v2274 = vsub.s32 %v2271, %v2273
    %v2275 = vrot.slane %v2261, %v2274
    %v2276 = vlaneseq
    %v2277 = vshrl.u32 %v2276, 7
    %v2278 = vsub.s32 0, %v2277
    %v2279 = vrot.slane %v2268, %v2278
    %v2280 = vlaneseq
    %v2281 = vshrl.u32 %v2280, 7
    %v2282 = vsub.s32 0, %v2281
    %v2283 = vrot.slane %v2275, %v2282
    %v2286 = vadd.f32 %v171, %v2279
    %v2287 = vadd.f32 %v172, %v2283
    %v2288 = vtanh.pop %v2286
    %v2289 = vtanh.pop %v2287
    %v2290 = vmul.f32 %v2288, %v381
    %v2291 = vmul.f32 %v2289, %v381
    %v2292 = vsel %vm120, %v2290, 0.0
    %2293 = vadd.xlane.f32.xlu0 %v2292
    %v2294 = vpop.xlane.xlu0 %2293
    %v2295 = vsel %vm120, %v2291, 0.0
    %2296 = vadd.xlane.f32.xlu0 %v2295
    %v2297 = vpop.xlane.xlu0 %2296
    %v2300 = vlaneseq
    %v2301 = vshrl.u32 %v2300, 7
    %v2302 = vsub.s32 %v394, %v2301
    %v2303 = vrot.slane %v2294, %v2302
    %v2304 = vlaneseq
    %v2305 = vshrl.u32 %v2304, 7
    %v2306 = vsub.s32 %v394, %v2305
    %v2307 = vrot.slane %v2297, %v2306
    %v2308 = vsel %vm403, %v2307, %v2303
    %v2310 = vsel %vm406, %v2308, -inf
    %2311 = vmax.xlane.f32.xlu0 %v2310
    %v2312 = vpop.xlane.xlu0 %2311
    %v2314 = vlaneseq
    %v2315 = vshrl.u32 %v2314, 7
    %v2316 = vsub.s32 0, %v2315
    %v2317 = vrot.slane %v2312, %v2316
    %v2318 = vlaneseq
    %v2319 = vshrl.u32 %v2318, 7
    %v2320 = vsub.s32 1, %v2319
    %v2321 = vrot.slane %v2312, %v2320
    %v2324 = vsub.f32 %v2294, %v2317
    %v2325 = vsub.f32 %v2297, %v2321
    %v2326 = vmul.f32 %v2324, 1.442695
    %v2327 = vpow.pop %v2326
    %v2328 = vmul.f32 %v2325, 1.442695
    %v2329 = vpow.pop %v2328
    %2332 = vset.pattern.permute.xlu0 0
    %2333 = vperm.xlu0 %2332, %v2327
    %v2334 = vpop.permute.xlu0 %2333
    %2335 = vset.pattern.permute.xlu0 0
    %2336 = vperm.xlu0 %2335, %v2329
    %v2337 = vpop.permute.xlu0 %2336
    %v2338 = vlaneseq
    %v2339 = vshrl.u32 %v2338, 7
    %v2340 = vsub.s32 %v394, %v2339
    %v2341 = vrot.slane %v2334, %v2340
    %v2342 = vlaneseq
    %v2343 = vshrl.u32 %v2342, 7
    %v2344 = vsub.s32 %v394, %v2343
    %v2345 = vrot.slane %v2337, %v2344
    %v2346 = vsel %vm403, %v2345, %v2341
    %v2348 = vsel %vm406, %v2346, 0.0
    %2349 = vadd.xlane.f32.xlu0 %v2348
    %v2350 = vpop.xlane.xlu0 %2349
    %v2352 = vlaneseq
    %v2353 = vshrl.u32 %v2352, 7
    %v2354 = vsub.s32 0, %v2353
    %v2355 = vrot.slane %v2350, %v2354
    %v2356 = vlaneseq
    %v2357 = vshrl.u32 %v2356, 7
    %v2358 = vsub.s32 1, %v2357
    %v2359 = vrot.slane %v2350, %v2358
    %v2362 = vrcp.pop %v2355
    %v2363 = vmul.f32 %v2327, %v2362
    %v2364 = vrcp.pop %v2359
    %v2365 = vmul.f32 %v2329, %v2364
    %v2366 = vpack.c.bf16 %v2363, %v2363
    %v2367 = vpack.c.bf16 %v2365, %v2365
    %v2369 = vunpack.c.l.b16 %v2366
    %2370 = vset.pattern.permute.xlu0 0
    %2371 = vperm.xlu0 %2370, %v2369
    %v2372 = vpop.permute.xlu0 %2371
    %v2373 = vlaneseq
    %v2374 = vshrl.u32 %v2373, 7
    %v2375 = vsub.s32 %v394, %v2374
    %v2376 = vrot.slane %v2372, %v2375
    %v2377 = vpack.c.b16 %v2376, %v2376
    %v2379 = vsel %vm475, %v2377, 0
    %2381 = vmatprep.subr.bf16.mxu0 0
    %2382 = vmatpush1.bf16.msra.mxu0 %v481
    %2383 = vmatprep.subr.bf16.mxu0 0
    %2384 = vmatpush1.bf16.msra.mxu0 0
    %2385 = vmatprep.subr.bf16.mxu0 0
    %2386 = vmatpush1.bf16.msra.mxu0 0
    %2387 = vmatprep.subr.bf16.mxu0 0
    %2388 = vmatpush1.bf16.msra.mxu0 0
    %2389 = vmatprep.subr.bf16.mxu0 0
    %2390 = vmatpush1.bf16.msra.mxu0 0
    %2391 = vmatprep.subr.bf16.mxu0 0
    %2392 = vmatpush1.bf16.msra.mxu0 0
    %2393 = vmatprep.subr.bf16.mxu0 0
    %2394 = vmatpush1.bf16.msra.mxu0 0
    %2395 = vmatprep.subr.bf16.mxu0 0
    %2396 = vmatpush1.bf16.msra.mxu0 0
    %2397 = vmatprep.subr.bf16.mxu0 0
    %2398 = vmatpush1.bf16.msra.mxu0 0
    %2399 = vmatprep.subr.bf16.mxu0 0
    %2400 = vmatpush1.bf16.msra.mxu0 0
    %2401 = vmatprep.subr.bf16.mxu0 0
    %2402 = vmatpush1.bf16.msra.mxu0 0
    %2403 = vmatprep.subr.bf16.mxu0 0
    %2404 = vmatpush1.bf16.msra.mxu0 0
    %2405 = vmatprep.subr.bf16.mxu0 0
    %2406 = vmatpush1.bf16.msra.mxu0 0
    %2407 = vmatprep.subr.bf16.mxu0 0
    %2408 = vmatpush1.bf16.msra.mxu0 0
    %2409 = vmatprep.subr.bf16.mxu0 0
    %2410 = vmatpush1.bf16.msra.mxu0 0
    %2411 = vmatprep.subr.bf16.mxu0 0
    %2412 = vmatpush1.bf16.msra.mxu0 0
    %2413 = vmatprep.mubr.bf16.mxu0 0
    %2414 = vmatmul.mubr.bf16.gmra.mrb[0].mxu0 %v2379
    %v2415 = vpop.f32.mrb[0].mxu0
    %v2416 = vadd.f32 0.0, %v2415
    %v2417 = vpop.f32.mrb[0].mxu0
    %v2418 = vpop.f32.mrb[0].mxu0
    %v2419 = vpop.f32.mrb[0].mxu0
    %2420 = vdwg.mxu0
    %v2422 = vunpack.c.l.b16 %v2367
    %2423 = vset.pattern.permute.xlu0 0
    %2424 = vperm.xlu0 %2423, %v2422
    %v2425 = vpop.permute.xlu0 %2424
    %v2426 = vlaneseq
    %v2427 = vshrl.u32 %v2426, 7
    %v2428 = vsub.s32 %v394, %v2427
    %v2429 = vrot.slane %v2425, %v2428
    %v2430 = vpack.c.b16 %v2429, %v2429
    %v2432 = vsel %vm475, %v2430, 0
    %2434 = vmatprep.subr.bf16.mxu0 0
    %2435 = vmatpush1.bf16.msra.mxu0 %v537
    %2436 = vmatprep.subr.bf16.mxu0 0
    %2437 = vmatpush1.bf16.msra.mxu0 0
    %2438 = vmatprep.subr.bf16.mxu0 0
    %2439 = vmatpush1.bf16.msra.mxu0 0
    %2440 = vmatprep.subr.bf16.mxu0 0
    %2441 = vmatpush1.bf16.msra.mxu0 0
    %2442 = vmatprep.subr.bf16.mxu0 0
    %2443 = vmatpush1.bf16.msra.mxu0 0
    %2444 = vmatprep.subr.bf16.mxu0 0
    %2445 = vmatpush1.bf16.msra.mxu0 0
    %2446 = vmatprep.subr.bf16.mxu0 0
    %2447 = vmatpush1.bf16.msra.mxu0 0
    %2448 = vmatprep.subr.bf16.mxu0 0
    %2449 = vmatpush1.bf16.msra.mxu0 0
    %2450 = vmatprep.subr.bf16.mxu0 0
    %2451 = vmatpush1.bf16.msra.mxu0 0
    %2452 = vmatprep.subr.bf16.mxu0 0
    %2453 = vmatpush1.bf16.msra.mxu0 0
    %2454 = vmatprep.subr.bf16.mxu0 0
    %2455 = vmatpush1.bf16.msra.mxu0 0
    %2456 = vmatprep.subr.bf16.mxu0 0
    %2457 = vmatpush1.bf16.msra.mxu0 0
    %2458 = vmatprep.subr.bf16.mxu0 0
    %2459 = vmatpush1.bf16.msra.mxu0 0
    %2460 = vmatprep.subr.bf16.mxu0 0
    %2461 = vmatpush1.bf16.msra.mxu0 0
    %2462 = vmatprep.subr.bf16.mxu0 0
    %2463 = vmatpush1.bf16.msra.mxu0 0
    %2464 = vmatprep.subr.bf16.mxu0 0
    %2465 = vmatpush1.bf16.msra.mxu0 0
    %2466 = vmatprep.mubr.bf16.mxu0 0
    %2467 = vmatmul.mubr.bf16.gmra.mrb[0].mxu0 %v2432
    %v2468 = vpop.f32.mrb[0].mxu0
    %v2469 = vadd.f32 0.0, %v2468
    %v2470 = vpop.f32.mrb[0].mxu0
    %v2471 = vpop.f32.mrb[0].mxu0
    %v2472 = vpop.f32.mrb[0].mxu0
    %2473 = vdwg.mxu0
    %s2474 = scalar_lea.vmem [#allocation5], 8
    %v2475 = vld [vmem:[%s2474] sm:$0x3]
    %v2476 = vpack.c.bf16 %v2416, %v2416
    %v2477 = vpack.c.bf16 %v2469, %v2469
    %v2480 = vunpack.c.l.b16 %v2476
    %v2481 = vunpack.c.l.b16 %v2477
    %v2482 = vrot.slane %v2481, 7
    %v2483 = vsel %vm403, %v2482, %v2480
    %v2484 = vpack.c.b16 %v2483, %v2483
    %v2486 = vsel %vm120, %v2484, 0
    %2488 = vmatprep.subr.bf16.mxu0 0
    %2489 = vmatpush1.bf16.msra.mxu0 %v597
    %2490 = vmatprep.subr.bf16.mxu0 0
    %2491 = vmatpush1.bf16.msra.mxu0 %v598
    %2492 = vmatprep.subr.bf16.mxu0 0
    %2493 = vmatpush1.bf16.msra.mxu0 0
    %2494 = vmatprep.subr.bf16.mxu0 0
    %2495 = vmatpush1.bf16.msra.mxu0 0
    %2496 = vmatprep.subr.bf16.mxu0 0
    %2497 = vmatpush1.bf16.msra.mxu0 0
    %2498 = vmatprep.subr.bf16.mxu0 0
    %2499 = vmatpush1.bf16.msra.mxu0 0
    %2500 = vmatprep.subr.bf16.mxu0 0
    %2501 = vmatpush1.bf16.msra.mxu0 0
    %2502 = vmatprep.subr.bf16.mxu0 0
    %2503 = vmatpush1.bf16.msra.mxu0 0
    %2504 = vmatprep.subr.bf16.mxu0 0
    %2505 = vmatpush1.bf16.msra.mxu0 0
    %2506 = vmatprep.subr.bf16.mxu0 0
    %2507 = vmatpush1.bf16.msra.mxu0 0
    %2508 = vmatprep.subr.bf16.mxu0 0
    %2509 = vmatpush1.bf16.msra.mxu0 0
    %2510 = vmatprep.subr.bf16.mxu0 0
    %2511 = vmatpush1.bf16.msra.mxu0 0
    %2512 = vmatprep.subr.bf16.mxu0 0
    %2513 = vmatpush1.bf16.msra.mxu0 0
    %2514 = vmatprep.subr.bf16.mxu0 0
    %2515 = vmatpush1.bf16.msra.mxu0 0
    %2516 = vmatprep.subr.bf16.mxu0 0
    %2517 = vmatpush1.bf16.msra.mxu0 0
    %2518 = vmatprep.subr.bf16.mxu0 0
    %2519 = vmatpush1.bf16.msra.mxu0 0
    %2520 = vmatprep.mubr.bf16.mxu0 0
    %2521 = vmatmul.mubr.bf16.gmra.mrb[0].mxu0 %v2486
    %v2522 = vpop.f32.mrb[0].mxu0
    %v2523 = vadd.f32 0.0, %v2522
    %v2524 = vpop.f32.mrb[0].mxu0
    %v2525 = vpop.f32.mrb[0].mxu0
    %v2526 = vpop.f32.mrb[0].mxu0
    %2527 = vdwg.mxu0
    %v2529 = vsel %vm644, %v2475, 0
    %2531 = vmatprep.subr.mxu0 0.0
    %2532 = vmatpush1.msra.mxu0 %v254
    %2533 = vmatprep.subr.mxu0 0.0
    %2534 = vmatpush1.msra.mxu0 %v257
    %2535 = vmatprep.subr.mxu0 0.0
    %2536 = vmatpush1.msra.mxu0 %v650
    %2537 = vmatprep.subr.mxu0 0.0
    %2538 = vmatpush1.msra.mxu0 0.0
    %2539 = vmatprep.subr.mxu0 0.0
    %2540 = vmatpush1.msra.mxu0 0.0
    %2541 = vmatprep.subr.mxu0 0.0
    %2542 = vmatpush1.msra.mxu0 0.0
    %2543 = vmatprep.subr.mxu0 0.0
    %2544 = vmatpush1.msra.mxu0 0.0
    %2545 = vmatprep.subr.mxu0 0.0
    %2546 = vmatpush1.msra.mxu0 0.0
    %2547 = vmatprep.subr.mxu0 0.0
    %2548 = vmatpush1.msra.mxu0 0.0
    %2549 = vmatprep.subr.mxu0 0.0
    %2550 = vmatpush1.msra.mxu0 0.0
    %2551 = vmatprep.subr.mxu0 0.0
    %2552 = vmatpush1.msra.mxu0 0.0
    %2553 = vmatprep.subr.mxu0 0.0
    %2554 = vmatpush1.msra.mxu0 0.0
    %2555 = vmatprep.subr.mxu0 0.0
    %2556 = vmatpush1.msra.mxu0 0.0
    %2557 = vmatprep.subr.mxu0 0.0
    %2558 = vmatpush1.msra.mxu0 0.0
    %2559 = vmatprep.subr.mxu0 0.0
    %2560 = vmatpush1.msra.mxu0 0.0
    %2561 = vmatprep.subr.mxu0 0.0
    %2562 = vmatpush1.msra.mxu0 0.0
    %2563 = vmatprep.subr.mxu0 0.0
    %2564 = vmatpush1.msra.mxu0 0.0
    %2565 = vmatprep.subr.mxu0 0.0
    %2566 = vmatpush1.msra.mxu0 0.0
    %2567 = vmatprep.subr.mxu0 0.0
    %2568 = vmatpush1.msra.mxu0 0.0
    %2569 = vmatprep.subr.mxu0 0.0
    %2570 = vmatpush1.msra.mxu0 0.0
    %2571 = vmatprep.subr.mxu0 0.0
    %2572 = vmatpush1.msra.mxu0 0.0
    %2573 = vmatprep.subr.mxu0 0.0
    %2574 = vmatpush1.msra.mxu0 0.0
    %2575 = vmatprep.subr.mxu0 0.0
    %2576 = vmatpush1.msra.mxu0 0.0
    %2577 = vmatprep.subr.mxu0 0.0
    %2578 = vmatpush1.msra.mxu0 0.0
    %2579 = vmatprep.subr.mxu0 0.0
    %2580 = vmatpush1.msra.mxu0 0.0
    %2581 = vmatprep.subr.mxu0 0.0
    %2582 = vmatpush1.msra.mxu0 0.0
    %2583 = vmatprep.subr.mxu0 0.0
    %2584 = vmatpush1.msra.mxu0 0.0
    %2585 = vmatprep.subr.mxu0 0.0
    %2586 = vmatpush1.msra.mxu0 0.0
    %2587 = vmatprep.subr.mxu0 0.0
    %2588 = vmatpush1.msra.mxu0 0.0
    %2589 = vmatprep.subr.mxu0 0.0
    %2590 = vmatpush1.msra.mxu0 0.0
    %2591 = vmatprep.subr.mxu0 0.0
    %2592 = vmatpush1.msra.mxu0 0.0
    %2593 = vmatprep.subr.mxu0 0.0
    %2594 = vmatpush1.msra.mxu0 0.0
    %2595 = vmatprep.mubr.f32.mxu0 0.0
    %2596 = vmatmul.mubr.f32.gmra.mrb[0].mxu0 %v2529
    %v2597 = vpop.f32.mrb[0].mxu0
    %v2598 = vadd.f32 %v2523, %v2597
    %v2599 = vpop.f32.mrb[0].mxu0
    %2600 = vdwg.mxu0
    %v2601 = vadd.f32 %v2598, %v728
    %2602 = vrot.lane.b32.xlu0 %v2248, 96
    %v2603 = vpop.permute.xlu0 %2602
    %v2605 = vadd.f32 %v2601, %v2603
    %v2606 = vxor.u32 %v2605, 2147483648
    %v2607 = vmul.f32 %v2606, 1.442695
    %v2608 = vpow.pop %v2607
    %v2609 = vadd.f32 %v2608, 1.0
    %v2610 = vrcp.pop %v2609
    %v2611 = vmul.f32 1.0, %v2610
    %2612 = vrot.lane.b32.xlu0 %v2248, 32
    %v2613 = vpop.permute.xlu0 %2612
    %v2615 = vmul.f32 %v2611, %v2613
    %2617 = vrot.lane.b32.xlu0 %v2615, 64
    %v2618 = vpop.permute.xlu0 %2617
    %v2620 = vadd.f32 %v2601, %v2618
    %v2621 = vtanh.pop %v2620
    %v2622 = vsub.f32 1.0, %v2611
    %2624 = vrot.lane.b32.xlu0 %v2621, 96
    %v2625 = vpop.permute.xlu0 %2624
    %v2627 = vmul.f32 %v2622, %v2625
    %v2628 = vmul.f32 %v2611, %v2163
    %v2629 = vadd.f32 %v2627, %v2628
    %v2630 = vpack.c.bf16 %v2629, %v2629
    %2632 = vrot.lane.b32.xlu0 %v2630, 96
    %v2633 = vpop.permute.xlu0 %2632
    %v2635 = vsel %vm120, %v2633, 0
    %2637 = vmatprep.subr.bf16.mxu0 0
    %2638 = vmatpush1.bf16.msra.mxu0 %v765
    %2639 = vmatprep.subr.bf16.mxu0 0
    %2640 = vmatpush1.bf16.msra.mxu0 %v767
    %2641 = vmatprep.subr.bf16.mxu0 0
    %2642 = vmatpush1.bf16.msra.mxu0 0
    %2643 = vmatprep.subr.bf16.mxu0 0
    %2644 = vmatpush1.bf16.msra.mxu0 0
    %2645 = vmatprep.subr.bf16.mxu0 0
    %2646 = vmatpush1.bf16.msra.mxu0 0
    %2647 = vmatprep.subr.bf16.mxu0 0
    %2648 = vmatpush1.bf16.msra.mxu0 0
    %2649 = vmatprep.subr.bf16.mxu0 0
    %2650 = vmatpush1.bf16.msra.mxu0 0
    %2651 = vmatprep.subr.bf16.mxu0 0
    %2652 = vmatpush1.bf16.msra.mxu0 0
    %2653 = vmatprep.subr.bf16.mxu0 0
    %2654 = vmatpush1.bf16.msra.mxu0 0
    %2655 = vmatprep.subr.bf16.mxu0 0
    %2656 = vmatpush1.bf16.msra.mxu0 0
    %2657 = vmatprep.subr.bf16.mxu0 0
    %2658 = vmatpush1.bf16.msra.mxu0 0
    %2659 = vmatprep.subr.bf16.mxu0 0
    %2660 = vmatpush1.bf16.msra.mxu0 0
    %2661 = vmatprep.subr.bf16.mxu0 0
    %2662 = vmatpush1.bf16.msra.mxu0 0
    %2663 = vmatprep.subr.bf16.mxu0 0
    %2664 = vmatpush1.bf16.msra.mxu0 0
    %2665 = vmatprep.subr.bf16.mxu0 0
    %2666 = vmatpush1.bf16.msra.mxu0 0
    %2667 = vmatprep.subr.bf16.mxu0 0
    %2668 = vmatpush1.bf16.msra.mxu0 0
    %2669 = vmatprep.mubr.bf16.mxu0 0
    %2670 = vmatmul.mubr.bf16.gmra.mrb[0].mxu0 %v2635
    %v2671 = vpop.f32.mrb[0].mxu0
    %v2672 = vadd.f32 %v379, %v2671
    %v2673 = vpop.f32.mrb[0].mxu0
    %v2674 = vpop.f32.mrb[0].mxu0
    %v2675 = vpop.f32.mrb[0].mxu0
    %2676 = vdwg.mxu0
    %s2677 = scalar_lea.vmem [#allocation10], 8
    %2678 = vst.msk [vmem:[%s2677] sm:$0x3] %vm813, %v2672
    %2679 = vmatprep.subr.bf16.mxu0 0
    %2680 = vmatpush1.bf16.msra.mxu0 %v284
    %2681 = vmatprep.subr.bf16.mxu0 0
    %2682 = vmatpush1.bf16.msra.mxu0 %v285
    %2683 = vmatprep.subr.bf16.mxu0 0
    %2684 = vmatpush1.bf16.msra.mxu0 0
    %2685 = vmatprep.subr.bf16.mxu0 0
    %2686 = vmatpush1.bf16.msra.mxu0 0
    %2687 = vmatprep.subr.bf16.mxu0 0
    %2688 = vmatpush1.bf16.msra.mxu0 0
    %2689 = vmatprep.subr.bf16.mxu0 0
    %2690 = vmatpush1.bf16.msra.mxu0 0
    %2691 = vmatprep.subr.bf16.mxu0 0
    %2692 = vmatpush1.bf16.msra.mxu0 0
    %2693 = vmatprep.subr.bf16.mxu0 0
    %2694 = vmatpush1.bf16.msra.mxu0 0
    %2695 = vmatprep.subr.bf16.mxu0 0
    %2696 = vmatpush1.bf16.msra.mxu0 0
    %2697 = vmatprep.subr.bf16.mxu0 0
    %2698 = vmatpush1.bf16.msra.mxu0 0
    %2699 = vmatprep.subr.bf16.mxu0 0
    %2700 = vmatpush1.bf16.msra.mxu0 0
    %2701 = vmatprep.subr.bf16.mxu0 0
    %2702 = vmatpush1.bf16.msra.mxu0 0
    %2703 = vmatprep.subr.bf16.mxu0 0
    %2704 = vmatpush1.bf16.msra.mxu0 0
    %2705 = vmatprep.subr.bf16.mxu0 0
    %2706 = vmatpush1.bf16.msra.mxu0 0
    %2707 = vmatprep.subr.bf16.mxu0 0
    %2708 = vmatpush1.bf16.msra.mxu0 0
    %2709 = vmatprep.subr.bf16.mxu0 0
    %2710 = vmatpush1.bf16.msra.mxu0 0
    %2711 = vmatprep.mubr.bf16.mxu0 0
    %2712 = vmatmul.mubr.bf16.gmra.mrb[0].mxu0 %v2635
    %v2713 = vpop.f32.mrb[0].mxu0
    %v2714 = vadd.f32 %v293, %v2713
    %v2715 = vpop.f32.mrb[0].mxu0
    %v2716 = vpop.f32.mrb[0].mxu0
    %v2717 = vpop.f32.mrb[0].mxu0
    %2718 = vdwg.mxu0
    %v2721 = vunpack.c.l.s4 1966171168
    %v2722 = vunpack.c.0.s8 %v2721
    %v2723 = vlaneseq
    %v2724 = vshrl.u32 %v2723, 7
    %v2725 = vsub.s32 %v2722, %v2724
    %v2726 = vrot.slane %v2714, %v2725
    %v2727 = vcombine.high %v2726, %v2726
    %v2729 = vunpack.c.l.s4 1966171168
    %v2730 = vunpack.c.0.s8 %v2729
    %v2731 = vlaneseq
    %v2732 = vshrl.u32 %v2731, 7
    %v2733 = vsub.s32 %v2730, %v2732
    %v2734 = vrot.slane %v2726, %v2733
    %v2736 = vunpack.c.l.s4 1966171168
    %v2737 = vunpack.c.0.s8 %v2736
    %v2738 = vlaneseq
    %v2739 = vshrl.u32 %v2738, 7
    %v2740 = vsub.s32 %v2737, %v2739
    %v2741 = vrot.slane %v2727, %v2740
    %v2742 = vlaneseq
    %v2743 = vshrl.u32 %v2742, 7
    %v2744 = vsub.s32 0, %v2743
    %v2745 = vrot.slane %v2734, %v2744
    %v2746 = vlaneseq
    %v2747 = vshrl.u32 %v2746, 7
    %v2748 = vsub.s32 0, %v2747
    %v2749 = vrot.slane %v2741, %v2748
    %v2752 = vadd.f32 %v171, %v2745
    %v2753 = vadd.f32 %v172, %v2749
    %v2754 = vtanh.pop %v2752
    %v2755 = vtanh.pop %v2753
    %v2756 = vmul.f32 %v2754, %v381
    %v2757 = vmul.f32 %v2755, %v381
    %v2758 = vsel %vm120, %v2756, 0.0
    %2759 = vadd.xlane.f32.xlu0 %v2758
    %v2760 = vpop.xlane.xlu0 %2759
    %v2761 = vsel %vm120, %v2757, 0.0
    %2762 = vadd.xlane.f32.xlu0 %v2761
    %v2763 = vpop.xlane.xlu0 %2762
    %v2766 = vlaneseq
    %v2767 = vshrl.u32 %v2766, 7
    %v2768 = vsub.s32 %v394, %v2767
    %v2769 = vrot.slane %v2760, %v2768
    %v2770 = vlaneseq
    %v2771 = vshrl.u32 %v2770, 7
    %v2772 = vsub.s32 %v394, %v2771
    %v2773 = vrot.slane %v2763, %v2772
    %v2774 = vsel %vm403, %v2773, %v2769
    %v2776 = vsel %vm406, %v2774, -inf
    %2777 = vmax.xlane.f32.xlu0 %v2776
    %v2778 = vpop.xlane.xlu0 %2777
    %v2780 = vlaneseq
    %v2781 = vshrl.u32 %v2780, 7
    %v2782 = vsub.s32 0, %v2781
    %v2783 = vrot.slane %v2778, %v2782
    %v2784 = vlaneseq
    %v2785 = vshrl.u32 %v2784, 7
    %v2786 = vsub.s32 1, %v2785
    %v2787 = vrot.slane %v2778, %v2786
    %v2790 = vsub.f32 %v2760, %v2783
    %v2791 = vsub.f32 %v2763, %v2787
    %v2792 = vmul.f32 %v2790, 1.442695
    %v2793 = vpow.pop %v2792
    %v2794 = vmul.f32 %v2791, 1.442695
    %v2795 = vpow.pop %v2794
    %2798 = vset.pattern.permute.xlu0 0
    %2799 = vperm.xlu0 %2798, %v2793
    %v2800 = vpop.permute.xlu0 %2799
    %2801 = vset.pattern.permute.xlu0 0
    %2802 = vperm.xlu0 %2801, %v2795
    %v2803 = vpop.permute.xlu0 %2802
    %v2804 = vlaneseq
    %v2805 = vshrl.u32 %v2804, 7
    %v2806 = vsub.s32 %v394, %v2805
    %v2807 = vrot.slane %v2800, %v2806
    %v2808 = vlaneseq
    %v2809 = vshrl.u32 %v2808, 7
    %v2810 = vsub.s32 %v394, %v2809
    %v2811 = vrot.slane %v2803, %v2810
    %v2812 = vsel %vm403, %v2811, %v2807
    %v2814 = vsel %vm406, %v2812, 0.0
    %2815 = vadd.xlane.f32.xlu0 %v2814
    %v2816 = vpop.xlane.xlu0 %2815
    %v2818 = vlaneseq
    %v2819 = vshrl.u32 %v2818, 7
    %v2820 = vsub.s32 0, %v2819
    %v2821 = vrot.slane %v2816, %v2820
    %v2822 = vlaneseq
    %v2823 = vshrl.u32 %v2822, 7
    %v2824 = vsub.s32 1, %v2823
    %v2825 = vrot.slane %v2816, %v2824
    %v2828 = vrcp.pop %v2821
    %v2829 = vmul.f32 %v2793, %v2828
    %v2830 = vrcp.pop %v2825
    %v2831 = vmul.f32 %v2795, %v2830
    %v2832 = vpack.c.bf16 %v2829, %v2829
    %v2833 = vpack.c.bf16 %v2831, %v2831
    %v2835 = vunpack.c.l.b16 %v2832
    %2836 = vset.pattern.permute.xlu0 0
    %2837 = vperm.xlu0 %2836, %v2835
    %v2838 = vpop.permute.xlu0 %2837
    %v2839 = vlaneseq
    %v2840 = vshrl.u32 %v2839, 7
    %v2841 = vsub.s32 %v394, %v2840
    %v2842 = vrot.slane %v2838, %v2841
    %v2843 = vpack.c.b16 %v2842, %v2842
    %v2845 = vsel %vm475, %v2843, 0
    %2847 = vmatprep.subr.bf16.mxu0 0
    %2848 = vmatpush1.bf16.msra.mxu0 %v481
    %2849 = vmatprep.subr.bf16.mxu0 0
    %2850 = vmatpush1.bf16.msra.mxu0 0
    %2851 = vmatprep.subr.bf16.mxu0 0
    %2852 = vmatpush1.bf16.msra.mxu0 0
    %2853 = vmatprep.subr.bf16.mxu0 0
    %2854 = vmatpush1.bf16.msra.mxu0 0
    %2855 = vmatprep.subr.bf16.mxu0 0
    %2856 = vmatpush1.bf16.msra.mxu0 0
    %2857 = vmatprep.subr.bf16.mxu0 0
    %2858 = vmatpush1.bf16.msra.mxu0 0
    %2859 = vmatprep.subr.bf16.mxu0 0
    %2860 = vmatpush1.bf16.msra.mxu0 0
    %2861 = vmatprep.subr.bf16.mxu0 0
    %2862 = vmatpush1.bf16.msra.mxu0 0
    %2863 = vmatprep.subr.bf16.mxu0 0
    %2864 = vmatpush1.bf16.msra.mxu0 0
    %2865 = vmatprep.subr.bf16.mxu0 0
    %2866 = vmatpush1.bf16.msra.mxu0 0
    %2867 = vmatprep.subr.bf16.mxu0 0
    %2868 = vmatpush1.bf16.msra.mxu0 0
    %2869 = vmatprep.subr.bf16.mxu0 0
    %2870 = vmatpush1.bf16.msra.mxu0 0
    %2871 = vmatprep.subr.bf16.mxu0 0
    %2872 = vmatpush1.bf16.msra.mxu0 0
    %2873 = vmatprep.subr.bf16.mxu0 0
    %2874 = vmatpush1.bf16.msra.mxu0 0
    %2875 = vmatprep.subr.bf16.mxu0 0
    %2876 = vmatpush1.bf16.msra.mxu0 0
    %2877 = vmatprep.subr.bf16.mxu0 0
    %2878 = vmatpush1.bf16.msra.mxu0 0
    %2879 = vmatprep.mubr.bf16.mxu0 0
    %2880 = vmatmul.mubr.bf16.gmra.mrb[0].mxu0 %v2845
    %v2881 = vpop.f32.mrb[0].mxu0
    %v2882 = vadd.f32 0.0, %v2881
    %v2883 = vpop.f32.mrb[0].mxu0
    %v2884 = vpop.f32.mrb[0].mxu0
    %v2885 = vpop.f32.mrb[0].mxu0
    %2886 = vdwg.mxu0
    %v2888 = vunpack.c.l.b16 %v2833
    %2889 = vset.pattern.permute.xlu0 0
    %2890 = vperm.xlu0 %2889, %v2888
    %v2891 = vpop.permute.xlu0 %2890
    %v2892 = vlaneseq
    %v2893 = vshrl.u32 %v2892, 7
    %v2894 = vsub.s32 %v394, %v2893
    %v2895 = vrot.slane %v2891, %v2894
    %v2896 = vpack.c.b16 %v2895, %v2895
    %v2898 = vsel %vm475, %v2896, 0
    %2900 = vmatprep.subr.bf16.mxu0 0
    %2901 = vmatpush1.bf16.msra.mxu0 %v537
    %2902 = vmatprep.subr.bf16.mxu0 0
    %2903 = vmatpush1.bf16.msra.mxu0 0
    %2904 = vmatprep.subr.bf16.mxu0 0
    %2905 = vmatpush1.bf16.msra.mxu0 0
    %2906 = vmatprep.subr.bf16.mxu0 0
    %2907 = vmatpush1.bf16.msra.mxu0 0
    %2908 = vmatprep.subr.bf16.mxu0 0
    %2909 = vmatpush1.bf16.msra.mxu0 0
    %2910 = vmatprep.subr.bf16.mxu0 0
    %2911 = vmatpush1.bf16.msra.mxu0 0
    %2912 = vmatprep.subr.bf16.mxu0 0
    %2913 = vmatpush1.bf16.msra.mxu0 0
    %2914 = vmatprep.subr.bf16.mxu0 0
    %2915 = vmatpush1.bf16.msra.mxu0 0
    %2916 = vmatprep.subr.bf16.mxu0 0
    %2917 = vmatpush1.bf16.msra.mxu0 0
    %2918 = vmatprep.subr.bf16.mxu0 0
    %2919 = vmatpush1.bf16.msra.mxu0 0
    %2920 = vmatprep.subr.bf16.mxu0 0
    %2921 = vmatpush1.bf16.msra.mxu0 0
    %2922 = vmatprep.subr.bf16.mxu0 0
    %2923 = vmatpush1.bf16.msra.mxu0 0
    %2924 = vmatprep.subr.bf16.mxu0 0
    %2925 = vmatpush1.bf16.msra.mxu0 0
    %2926 = vmatprep.subr.bf16.mxu0 0
    %2927 = vmatpush1.bf16.msra.mxu0 0
    %2928 = vmatprep.subr.bf16.mxu0 0
    %2929 = vmatpush1.bf16.msra.mxu0 0
    %2930 = vmatprep.subr.bf16.mxu0 0
    %2931 = vmatpush1.bf16.msra.mxu0 0
    %2932 = vmatprep.mubr.bf16.mxu0 0
    %2933 = vmatmul.mubr.bf16.gmra.mrb[0].mxu0 %v2898
    %v2934 = vpop.f32.mrb[0].mxu0
    %v2935 = vadd.f32 0.0, %v2934
    %v2936 = vpop.f32.mrb[0].mxu0
    %v2937 = vpop.f32.mrb[0].mxu0
    %v2938 = vpop.f32.mrb[0].mxu0
    %2939 = vdwg.mxu0
    %s2940 = scalar_lea.vmem [#allocation5], 10
    %v2941 = vld [vmem:[%s2940] sm:$0x3]
    %v2942 = vpack.c.bf16 %v2882, %v2882
    %v2943 = vpack.c.bf16 %v2935, %v2935
    %v2946 = vunpack.c.l.b16 %v2942
    %v2947 = vunpack.c.l.b16 %v2943
    %v2948 = vrot.slane %v2947, 7
    %v2949 = vsel %vm403, %v2948, %v2946
    %v2950 = vpack.c.b16 %v2949, %v2949
    %v2952 = vsel %vm120, %v2950, 0
    %2954 = vmatprep.subr.bf16.mxu0 0
    %2955 = vmatpush1.bf16.msra.mxu0 %v597
    %2956 = vmatprep.subr.bf16.mxu0 0
    %2957 = vmatpush1.bf16.msra.mxu0 %v598
    %2958 = vmatprep.subr.bf16.mxu0 0
    %2959 = vmatpush1.bf16.msra.mxu0 0
    %2960 = vmatprep.subr.bf16.mxu0 0
    %2961 = vmatpush1.bf16.msra.mxu0 0
    %2962 = vmatprep.subr.bf16.mxu0 0
    %2963 = vmatpush1.bf16.msra.mxu0 0
    %2964 = vmatprep.subr.bf16.mxu0 0
    %2965 = vmatpush1.bf16.msra.mxu0 0
    %2966 = vmatprep.subr.bf16.mxu0 0
    %2967 = vmatpush1.bf16.msra.mxu0 0
    %2968 = vmatprep.subr.bf16.mxu0 0
    %2969 = vmatpush1.bf16.msra.mxu0 0
    %2970 = vmatprep.subr.bf16.mxu0 0
    %2971 = vmatpush1.bf16.msra.mxu0 0
    %2972 = vmatprep.subr.bf16.mxu0 0
    %2973 = vmatpush1.bf16.msra.mxu0 0
    %2974 = vmatprep.subr.bf16.mxu0 0
    %2975 = vmatpush1.bf16.msra.mxu0 0
    %2976 = vmatprep.subr.bf16.mxu0 0
    %2977 = vmatpush1.bf16.msra.mxu0 0
    %2978 = vmatprep.subr.bf16.mxu0 0
    %2979 = vmatpush1.bf16.msra.mxu0 0
    %2980 = vmatprep.subr.bf16.mxu0 0
    %2981 = vmatpush1.bf16.msra.mxu0 0
    %2982 = vmatprep.subr.bf16.mxu0 0
    %2983 = vmatpush1.bf16.msra.mxu0 0
    %2984 = vmatprep.subr.bf16.mxu0 0
    %2985 = vmatpush1.bf16.msra.mxu0 0
    %2986 = vmatprep.mubr.bf16.mxu0 0
    %2987 = vmatmul.mubr.bf16.gmra.mrb[0].mxu0 %v2952
    %v2988 = vpop.f32.mrb[0].mxu0
    %v2989 = vadd.f32 0.0, %v2988
    %v2990 = vpop.f32.mrb[0].mxu0
    %v2991 = vpop.f32.mrb[0].mxu0
    %v2992 = vpop.f32.mrb[0].mxu0
    %2993 = vdwg.mxu0
    %v2995 = vsel %vm644, %v2941, 0
    %2997 = vmatprep.subr.mxu0 0.0
    %2998 = vmatpush1.msra.mxu0 %v254
    %2999 = vmatprep.subr.mxu0 0.0
    %3000 = vmatpush1.msra.mxu0 %v257
    %3001 = vmatprep.subr.mxu0 0.0
    %3002 = vmatpush1.msra.mxu0 %v650
    %3003 = vmatprep.subr.mxu0 0.0
    %3004 = vmatpush1.msra.mxu0 0.0
    %3005 = vmatprep.subr.mxu0 0.0
    %3006 = vmatpush1.msra.mxu0 0.0
    %3007 = vmatprep.subr.mxu0 0.0
    %3008 = vmatpush1.msra.mxu0 0.0
    %3009 = vmatprep.subr.mxu0 0.0
    %3010 = vmatpush1.msra.mxu0 0.0
    %3011 = vmatprep.subr.mxu0 0.0
    %3012 = vmatpush1.msra.mxu0 0.0
    %3013 = vmatprep.subr.mxu0 0.0
    %3014 = vmatpush1.msra.mxu0 0.0
    %3015 = vmatprep.subr.mxu0 0.0
    %3016 = vmatpush1.msra.mxu0 0.0
    %3017 = vmatprep.subr.mxu0 0.0
    %3018 = vmatpush1.msra.mxu0 0.0
    %3019 = vmatprep.subr.mxu0 0.0
    %3020 = vmatpush1.msra.mxu0 0.0
    %3021 = vmatprep.subr.mxu0 0.0
    %3022 = vmatpush1.msra.mxu0 0.0
    %3023 = vmatprep.subr.mxu0 0.0
    %3024 = vmatpush1.msra.mxu0 0.0
    %3025 = vmatprep.subr.mxu0 0.0
    %3026 = vmatpush1.msra.mxu0 0.0
    %3027 = vmatprep.subr.mxu0 0.0
    %3028 = vmatpush1.msra.mxu0 0.0
    %3029 = vmatprep.subr.mxu0 0.0
    %3030 = vmatpush1.msra.mxu0 0.0
    %3031 = vmatprep.subr.mxu0 0.0
    %3032 = vmatpush1.msra.mxu0 0.0
    %3033 = vmatprep.subr.mxu0 0.0
    %3034 = vmatpush1.msra.mxu0 0.0
    %3035 = vmatprep.subr.mxu0 0.0
    %3036 = vmatpush1.msra.mxu0 0.0
    %3037 = vmatprep.subr.mxu0 0.0
    %3038 = vmatpush1.msra.mxu0 0.0
    %3039 = vmatprep.subr.mxu0 0.0
    %3040 = vmatpush1.msra.mxu0 0.0
    %3041 = vmatprep.subr.mxu0 0.0
    %3042 = vmatpush1.msra.mxu0 0.0
    %3043 = vmatprep.subr.mxu0 0.0
    %3044 = vmatpush1.msra.mxu0 0.0
    %3045 = vmatprep.subr.mxu0 0.0
    %3046 = vmatpush1.msra.mxu0 0.0
    %3047 = vmatprep.subr.mxu0 0.0
    %3048 = vmatpush1.msra.mxu0 0.0
    %3049 = vmatprep.subr.mxu0 0.0
    %3050 = vmatpush1.msra.mxu0 0.0
    %3051 = vmatprep.subr.mxu0 0.0
    %3052 = vmatpush1.msra.mxu0 0.0
    %3053 = vmatprep.subr.mxu0 0.0
    %3054 = vmatpush1.msra.mxu0 0.0
    %3055 = vmatprep.subr.mxu0 0.0
    %3056 = vmatpush1.msra.mxu0 0.0
    %3057 = vmatprep.subr.mxu0 0.0
    %3058 = vmatpush1.msra.mxu0 0.0
    %3059 = vmatprep.subr.mxu0 0.0
    %3060 = vmatpush1.msra.mxu0 0.0
    %3061 = vmatprep.mubr.f32.mxu0 0.0
    %3062 = vmatmul.mubr.f32.gmra.mrb[0].mxu0 %v2995
    %v3063 = vpop.f32.mrb[0].mxu0
    %v3064 = vadd.f32 %v2989, %v3063
    %v3065 = vpop.f32.mrb[0].mxu0
    %3066 = vdwg.mxu0
    %v3067 = vadd.f32 %v3064, %v728
    %3068 = vrot.lane.b32.xlu0 %v2714, 96
    %v3069 = vpop.permute.xlu0 %3068
    %v3071 = vadd.f32 %v3067, %v3069
    %v3072 = vxor.u32 %v3071, 2147483648
    %v3073 = vmul.f32 %v3072, 1.442695
    %v3074 = vpow.pop %v3073
    %v3075 = vadd.f32 %v3074, 1.0
    %v3076 = vrcp.pop %v3075
    %v3077 = vmul.f32 1.0, %v3076
    %3078 = vrot.lane.b32.xlu0 %v2714, 32
    %v3079 = vpop.permute.xlu0 %3078
    %v3081 = vmul.f32 %v3077, %v3079
    %3083 = vrot.lane.b32.xlu0 %v3081, 64
    %v3084 = vpop.permute.xlu0 %3083
    %v3086 = vadd.f32 %v3067, %v3084
    %v3087 = vtanh.pop %v3086
    %v3088 = vsub.f32 1.0, %v3077
    %3090 = vrot.lane.b32.xlu0 %v3087, 96
    %v3091 = vpop.permute.xlu0 %3090
    %v3093 = vmul.f32 %v3088, %v3091
    %v3094 = vmul.f32 %v3077, %v2629
    %v3095 = vadd.f32 %v3093, %v3094
    %v3096 = vpack.c.bf16 %v3095, %v3095
    %3098 = vrot.lane.b32.xlu0 %v3096, 96
    %v3099 = vpop.permute.xlu0 %3098
    %v3101 = vsel %vm120, %v3099, 0
    %3103 = vmatprep.subr.bf16.mxu0 0
    %3104 = vmatpush1.bf16.msra.mxu0 %v765
    %3105 = vmatprep.subr.bf16.mxu0 0
    %3106 = vmatpush1.bf16.msra.mxu0 %v767
    %3107 = vmatprep.subr.bf16.mxu0 0
    %3108 = vmatpush1.bf16.msra.mxu0 0
    %3109 = vmatprep.subr.bf16.mxu0 0
    %3110 = vmatpush1.bf16.msra.mxu0 0
    %3111 = vmatprep.subr.bf16.mxu0 0
    %3112 = vmatpush1.bf16.msra.mxu0 0
    %3113 = vmatprep.subr.bf16.mxu0 0
    %3114 = vmatpush1.bf16.msra.mxu0 0
    %3115 = vmatprep.subr.bf16.mxu0 0
    %3116 = vmatpush1.bf16.msra.mxu0 0
    %3117 = vmatprep.subr.bf16.mxu0 0
    %3118 = vmatpush1.bf16.msra.mxu0 0
    %3119 = vmatprep.subr.bf16.mxu0 0
    %3120 = vmatpush1.bf16.msra.mxu0 0
    %3121 = vmatprep.subr.bf16.mxu0 0
    %3122 = vmatpush1.bf16.msra.mxu0 0
    %3123 = vmatprep.subr.bf16.mxu0 0
    %3124 = vmatpush1.bf16.msra.mxu0 0
    %3125 = vmatprep.subr.bf16.mxu0 0
    %3126 = vmatpush1.bf16.msra.mxu0 0
    %3127 = vmatprep.subr.bf16.mxu0 0
    %3128 = vmatpush1.bf16.msra.mxu0 0
    %3129 = vmatprep.subr.bf16.mxu0 0
    %3130 = vmatpush1.bf16.msra.mxu0 0
    %3131 = vmatprep.subr.bf16.mxu0 0
    %3132 = vmatpush1.bf16.msra.mxu0 0
    %3133 = vmatprep.subr.bf16.mxu0 0
    %3134 = vmatpush1.bf16.msra.mxu0 0
    %3135 = vmatprep.mubr.bf16.mxu0 0
    %3136 = vmatmul.mubr.bf16.gmra.mrb[0].mxu0 %v3101
    %v3137 = vpop.f32.mrb[0].mxu0
    %v3138 = vadd.f32 %v379, %v3137
    %v3139 = vpop.f32.mrb[0].mxu0
    %v3140 = vpop.f32.mrb[0].mxu0
    %v3141 = vpop.f32.mrb[0].mxu0
    %3142 = vdwg.mxu0
    %s3143 = scalar_lea.vmem [#allocation10], 10
    %3144 = vst.msk [vmem:[%s3143] sm:$0x3] %vm813, %v3138
    %3145 = vmatprep.subr.bf16.mxu0 0
    %3146 = vmatpush1.bf16.msra.mxu0 %v284
    %3147 = vmatprep.subr.bf16.mxu0 0
    %3148 = vmatpush1.bf16.msra.mxu0 %v285
    %3149 = vmatprep.subr.bf16.mxu0 0
    %3150 = vmatpush1.bf16.msra.mxu0 0
    %3151 = vmatprep.subr.bf16.mxu0 0
    %3152 = vmatpush1.bf16.msra.mxu0 0
    %3153 = vmatprep.subr.bf16.mxu0 0
    %3154 = vmatpush1.bf16.msra.mxu0 0
    %3155 = vmatprep.subr.bf16.mxu0 0
    %3156 = vmatpush1.bf16.msra.mxu0 0
    %3157 = vmatprep.subr.bf16.mxu0 0
    %3158 = vmatpush1.bf16.msra.mxu0 0
    %3159 = vmatprep.subr.bf16.mxu0 0
    %3160 = vmatpush1.bf16.msra.mxu0 0
    %3161 = vmatprep.subr.bf16.mxu0 0
    %3162 = vmatpush1.bf16.msra.mxu0 0
    %3163 = vmatprep.subr.bf16.mxu0 0
    %3164 = vmatpush1.bf16.msra.mxu0 0
    %3165 = vmatprep.subr.bf16.mxu0 0
    %3166 = vmatpush1.bf16.msra.mxu0 0
    %3167 = vmatprep.subr.bf16.mxu0 0
    %3168 = vmatpush1.bf16.msra.mxu0 0
    %3169 = vmatprep.subr.bf16.mxu0 0
    %3170 = vmatpush1.bf16.msra.mxu0 0
    %3171 = vmatprep.subr.bf16.mxu0 0
    %3172 = vmatpush1.bf16.msra.mxu0 0
    %3173 = vmatprep.subr.bf16.mxu0 0
    %3174 = vmatpush1.bf16.msra.mxu0 0
    %3175 = vmatprep.subr.bf16.mxu0 0
    %3176 = vmatpush1.bf16.msra.mxu0 0
    %3177 = vmatprep.mubr.bf16.mxu0 0
    %3178 = vmatmul.mubr.bf16.gmra.mrb[0].mxu0 %v3101
    %v3179 = vpop.f32.mrb[0].mxu0
    %v3180 = vadd.f32 %v293, %v3179
    %v3181 = vpop.f32.mrb[0].mxu0
    %v3182 = vpop.f32.mrb[0].mxu0
    %v3183 = vpop.f32.mrb[0].mxu0
    %3184 = vdwg.mxu0
    %v3187 = vunpack.c.l.s4 1966171168
    %v3188 = vunpack.c.0.s8 %v3187
    %v3189 = vlaneseq
    %v3190 = vshrl.u32 %v3189, 7
    %v3191 = vsub.s32 %v3188, %v3190
    %v3192 = vrot.slane %v3180, %v3191
    %v3193 = vcombine.high %v3192, %v3192
    %v3195 = vunpack.c.l.s4 1966171168
    %v3196 = vunpack.c.0.s8 %v3195
    %v3197 = vlaneseq
    %v3198 = vshrl.u32 %v3197, 7
    %v3199 = vsub.s32 %v3196, %v3198
    %v3200 = vrot.slane %v3192, %v3199
    %v3202 = vunpack.c.l.s4 1966171168
    %v3203 = vunpack.c.0.s8 %v3202
    %v3204 = vlaneseq
    %v3205 = vshrl.u32 %v3204, 7
    %v3206 = vsub.s32 %v3203, %v3205
    %v3207 = vrot.slane %v3193, %v3206
    %v3208 = vlaneseq
    %v3209 = vshrl.u32 %v3208, 7
    %v3210 = vsub.s32 0, %v3209
    %v3211 = vrot.slane %v3200, %v3210
    %v3212 = vlaneseq
    %v3213 = vshrl.u32 %v3212, 7
    %v3214 = vsub.s32 0, %v3213
    %v3215 = vrot.slane %v3207, %v3214
    %v3218 = vadd.f32 %v171, %v3211
    %v3219 = vadd.f32 %v172, %v3215
    %v3220 = vtanh.pop %v3218
    %v3221 = vtanh.pop %v3219
    %v3222 = vmul.f32 %v3220, %v381
    %v3223 = vmul.f32 %v3221, %v381
    %v3224 = vsel %vm120, %v3222, 0.0
    %3225 = vadd.xlane.f32.xlu0 %v3224
    %v3226 = vpop.xlane.xlu0 %3225
    %v3227 = vsel %vm120, %v3223, 0.0
    %3228 = vadd.xlane.f32.xlu0 %v3227
    %v3229 = vpop.xlane.xlu0 %3228
    %v3232 = vlaneseq
    %v3233 = vshrl.u32 %v3232, 7
    %v3234 = vsub.s32 %v394, %v3233
    %v3235 = vrot.slane %v3226, %v3234
    %v3236 = vlaneseq
    %v3237 = vshrl.u32 %v3236, 7
    %v3238 = vsub.s32 %v394, %v3237
    %v3239 = vrot.slane %v3229, %v3238
    %v3240 = vsel %vm403, %v3239, %v3235
    %v3242 = vsel %vm406, %v3240, -inf
    %3243 = vmax.xlane.f32.xlu0 %v3242
    %v3244 = vpop.xlane.xlu0 %3243
    %v3246 = vlaneseq
    %v3247 = vshrl.u32 %v3246, 7
    %v3248 = vsub.s32 0, %v3247
    %v3249 = vrot.slane %v3244, %v3248
    %v3250 = vlaneseq
    %v3251 = vshrl.u32 %v3250, 7
    %v3252 = vsub.s32 1, %v3251
    %v3253 = vrot.slane %v3244, %v3252
    %v3256 = vsub.f32 %v3226, %v3249
    %v3257 = vsub.f32 %v3229, %v3253
    %v3258 = vmul.f32 %v3256, 1.442695
    %v3259 = vpow.pop %v3258
    %v3260 = vmul.f32 %v3257, 1.442695
    %v3261 = vpow.pop %v3260
    %3264 = vset.pattern.permute.xlu0 0
    %3265 = vperm.xlu0 %3264, %v3259
    %v3266 = vpop.permute.xlu0 %3265
    %3267 = vset.pattern.permute.xlu0 0
    %3268 = vperm.xlu0 %3267, %v3261
    %v3269 = vpop.permute.xlu0 %3268
    %v3270 = vlaneseq
    %v3271 = vshrl.u32 %v3270, 7
    %v3272 = vsub.s32 %v394, %v3271
    %v3273 = vrot.slane %v3266, %v3272
    %v3274 = vlaneseq
    %v3275 = vshrl.u32 %v3274, 7
    %v3276 = vsub.s32 %v394, %v3275
    %v3277 = vrot.slane %v3269, %v3276
    %v3278 = vsel %vm403, %v3277, %v3273
    %v3280 = vsel %vm406, %v3278, 0.0
    %3281 = vadd.xlane.f32.xlu0 %v3280
    %v3282 = vpop.xlane.xlu0 %3281
    %v3284 = vlaneseq
    %v3285 = vshrl.u32 %v3284, 7
    %v3286 = vsub.s32 0, %v3285
    %v3287 = vrot.slane %v3282, %v3286
    %v3288 = vlaneseq
    %v3289 = vshrl.u32 %v3288, 7
    %v3290 = vsub.s32 1, %v3289
    %v3291 = vrot.slane %v3282, %v3290
    %v3294 = vrcp.pop %v3287
    %v3295 = vmul.f32 %v3259, %v3294
    %v3296 = vrcp.pop %v3291
    %v3297 = vmul.f32 %v3261, %v3296
    %v3298 = vpack.c.bf16 %v3295, %v3295
    %v3299 = vpack.c.bf16 %v3297, %v3297
    %v3301 = vunpack.c.l.b16 %v3298
    %3302 = vset.pattern.permute.xlu0 0
    %3303 = vperm.xlu0 %3302, %v3301
    %v3304 = vpop.permute.xlu0 %3303
    %v3305 = vlaneseq
    %v3306 = vshrl.u32 %v3305, 7
    %v3307 = vsub.s32 %v394, %v3306
    %v3308 = vrot.slane %v3304, %v3307
    %v3309 = vpack.c.b16 %v3308, %v3308
    %v3311 = vsel %vm475, %v3309, 0
    %3313 = vmatprep.subr.bf16.mxu0 0
    %3314 = vmatpush1.bf16.msra.mxu0 %v481
    %3315 = vmatprep.subr.bf16.mxu0 0
    %3316 = vmatpush1.bf16.msra.mxu0 0
    %3317 = vmatprep.subr.bf16.mxu0 0
    %3318 = vmatpush1.bf16.msra.mxu0 0
    %3319 = vmatprep.subr.bf16.mxu0 0
    %3320 = vmatpush1.bf16.msra.mxu0 0
    %3321 = vmatprep.subr.bf16.mxu0 0
    %3322 = vmatpush1.bf16.msra.mxu0 0
    %3323 = vmatprep.subr.bf16.mxu0 0
    %3324 = vmatpush1.bf16.msra.mxu0 0
    %3325 = vmatprep.subr.bf16.mxu0 0
    %3326 = vmatpush1.bf16.msra.mxu0 0
    %3327 = vmatprep.subr.bf16.mxu0 0
    %3328 = vmatpush1.bf16.msra.mxu0 0
    %3329 = vmatprep.subr.bf16.mxu0 0
    %3330 = vmatpush1.bf16.msra.mxu0 0
    %3331 = vmatprep.subr.bf16.mxu0 0
    %3332 = vmatpush1.bf16.msra.mxu0 0
    %3333 = vmatprep.subr.bf16.mxu0 0
    %3334 = vmatpush1.bf16.msra.mxu0 0
    %3335 = vmatprep.subr.bf16.mxu0 0
    %3336 = vmatpush1.bf16.msra.mxu0 0
    %3337 = vmatprep.subr.bf16.mxu0 0
    %3338 = vmatpush1.bf16.msra.mxu0 0
    %3339 = vmatprep.subr.bf16.mxu0 0
    %3340 = vmatpush1.bf16.msra.mxu0 0
    %3341 = vmatprep.subr.bf16.mxu0 0
    %3342 = vmatpush1.bf16.msra.mxu0 0
    %3343 = vmatprep.subr.bf16.mxu0 0
    %3344 = vmatpush1.bf16.msra.mxu0 0
    %3345 = vmatprep.mubr.bf16.mxu0 0
    %3346 = vmatmul.mubr.bf16.gmra.mrb[0].mxu0 %v3311
    %v3347 = vpop.f32.mrb[0].mxu0
    %v3348 = vadd.f32 0.0, %v3347
    %v3349 = vpop.f32.mrb[0].mxu0
    %v3350 = vpop.f32.mrb[0].mxu0
    %v3351 = vpop.f32.mrb[0].mxu0
    %3352 = vdwg.mxu0
    %v3354 = vunpack.c.l.b16 %v3299
    %3355 = vset.pattern.permute.xlu0 0
    %3356 = vperm.xlu0 %3355, %v3354
    %v3357 = vpop.permute.xlu0 %3356
    %v3358 = vlaneseq
    %v3359 = vshrl.u32 %v3358, 7
    %v3360 = vsub.s32 %v394, %v3359
    %v3361 = vrot.slane %v3357, %v3360
    %v3362 = vpack.c.b16 %v3361, %v3361
    %v3364 = vsel %vm475, %v3362, 0
    %3366 = vmatprep.subr.bf16.mxu0 0
    %3367 = vmatpush1.bf16.msra.mxu0 %v537
    %3368 = vmatprep.subr.bf16.mxu0 0
    %3369 = vmatpush1.bf16.msra.mxu0 0
    %3370 = vmatprep.subr.bf16.mxu0 0
    %3371 = vmatpush1.bf16.msra.mxu0 0
    %3372 = vmatprep.subr.bf16.mxu0 0
    %3373 = vmatpush1.bf16.msra.mxu0 0
    %3374 = vmatprep.subr.bf16.mxu0 0
    %3375 = vmatpush1.bf16.msra.mxu0 0
    %3376 = vmatprep.subr.bf16.mxu0 0
    %3377 = vmatpush1.bf16.msra.mxu0 0
    %3378 = vmatprep.subr.bf16.mxu0 0
    %3379 = vmatpush1.bf16.msra.mxu0 0
    %3380 = vmatprep.subr.bf16.mxu0 0
    %3381 = vmatpush1.bf16.msra.mxu0 0
    %3382 = vmatprep.subr.bf16.mxu0 0
    %3383 = vmatpush1.bf16.msra.mxu0 0
    %3384 = vmatprep.subr.bf16.mxu0 0
    %3385 = vmatpush1.bf16.msra.mxu0 0
    %3386 = vmatprep.subr.bf16.mxu0 0
    %3387 = vmatpush1.bf16.msra.mxu0 0
    %3388 = vmatprep.subr.bf16.mxu0 0
    %3389 = vmatpush1.bf16.msra.mxu0 0
    %3390 = vmatprep.subr.bf16.mxu0 0
    %3391 = vmatpush1.bf16.msra.mxu0 0
    %3392 = vmatprep.subr.bf16.mxu0 0
    %3393 = vmatpush1.bf16.msra.mxu0 0
    %3394 = vmatprep.subr.bf16.mxu0 0
    %3395 = vmatpush1.bf16.msra.mxu0 0
    %3396 = vmatprep.subr.bf16.mxu0 0
    %3397 = vmatpush1.bf16.msra.mxu0 0
    %3398 = vmatprep.mubr.bf16.mxu0 0
    %3399 = vmatmul.mubr.bf16.gmra.mrb[0].mxu0 %v3364
    %v3400 = vpop.f32.mrb[0].mxu0
    %v3401 = vadd.f32 0.0, %v3400
    %v3402 = vpop.f32.mrb[0].mxu0
    %v3403 = vpop.f32.mrb[0].mxu0
    %v3404 = vpop.f32.mrb[0].mxu0
    %3405 = vdwg.mxu0
    %s3406 = scalar_lea.vmem [#allocation5], 12
    %v3407 = vld [vmem:[%s3406] sm:$0x3]
    %v3408 = vpack.c.bf16 %v3348, %v3348
    %v3409 = vpack.c.bf16 %v3401, %v3401
    %v3412 = vunpack.c.l.b16 %v3408
    %v3413 = vunpack.c.l.b16 %v3409
    %v3414 = vrot.slane %v3413, 7
    %v3415 = vsel %vm403, %v3414, %v3412
    %v3416 = vpack.c.b16 %v3415, %v3415
    %v3418 = vsel %vm120, %v3416, 0
    %3420 = vmatprep.subr.bf16.mxu0 0
    %3421 = vmatpush1.bf16.msra.mxu0 %v597
    %3422 = vmatprep.subr.bf16.mxu0 0
    %3423 = vmatpush1.bf16.msra.mxu0 %v598
    %3424 = vmatprep.subr.bf16.mxu0 0
    %3425 = vmatpush1.bf16.msra.mxu0 0
    %3426 = vmatprep.subr.bf16.mxu0 0
    %3427 = vmatpush1.bf16.msra.mxu0 0
    %3428 = vmatprep.subr.bf16.mxu0 0
    %3429 = vmatpush1.bf16.msra.mxu0 0
    %3430 = vmatprep.subr.bf16.mxu0 0
    %3431 = vmatpush1.bf16.msra.mxu0 0
    %3432 = vmatprep.subr.bf16.mxu0 0
    %3433 = vmatpush1.bf16.msra.mxu0 0
    %3434 = vmatprep.subr.bf16.mxu0 0
    %3435 = vmatpush1.bf16.msra.mxu0 0
    %3436 = vmatprep.subr.bf16.mxu0 0
    %3437 = vmatpush1.bf16.msra.mxu0 0
    %3438 = vmatprep.subr.bf16.mxu0 0
    %3439 = vmatpush1.bf16.msra.mxu0 0
    %3440 = vmatprep.subr.bf16.mxu0 0
    %3441 = vmatpush1.bf16.msra.mxu0 0
    %3442 = vmatprep.subr.bf16.mxu0 0
    %3443 = vmatpush1.bf16.msra.mxu0 0
    %3444 = vmatprep.subr.bf16.mxu0 0
    %3445 = vmatpush1.bf16.msra.mxu0 0
    %3446 = vmatprep.subr.bf16.mxu0 0
    %3447 = vmatpush1.bf16.msra.mxu0 0
    %3448 = vmatprep.subr.bf16.mxu0 0
    %3449 = vmatpush1.bf16.msra.mxu0 0
    %3450 = vmatprep.subr.bf16.mxu0 0
    %3451 = vmatpush1.bf16.msra.mxu0 0
    %3452 = vmatprep.mubr.bf16.mxu0 0
    %3453 = vmatmul.mubr.bf16.gmra.mrb[0].mxu0 %v3418
    %v3454 = vpop.f32.mrb[0].mxu0
    %v3455 = vadd.f32 0.0, %v3454
    %v3456 = vpop.f32.mrb[0].mxu0
    %v3457 = vpop.f32.mrb[0].mxu0
    %v3458 = vpop.f32.mrb[0].mxu0
    %3459 = vdwg.mxu0
    %v3461 = vsel %vm644, %v3407, 0
    %3463 = vmatprep.subr.mxu0 0.0
    %3464 = vmatpush1.msra.mxu0 %v254
    %3465 = vmatprep.subr.mxu0 0.0
    %3466 = vmatpush1.msra.mxu0 %v257
    %3467 = vmatprep.subr.mxu0 0.0
    %3468 = vmatpush1.msra.mxu0 %v650
    %3469 = vmatprep.subr.mxu0 0.0
    %3470 = vmatpush1.msra.mxu0 0.0
    %3471 = vmatprep.subr.mxu0 0.0
    %3472 = vmatpush1.msra.mxu0 0.0
    %3473 = vmatprep.subr.mxu0 0.0
    %3474 = vmatpush1.msra.mxu0 0.0
    %3475 = vmatprep.subr.mxu0 0.0
    %3476 = vmatpush1.msra.mxu0 0.0
    %3477 = vmatprep.subr.mxu0 0.0
    %3478 = vmatpush1.msra.mxu0 0.0
    %3479 = vmatprep.subr.mxu0 0.0
    %3480 = vmatpush1.msra.mxu0 0.0
    %3481 = vmatprep.subr.mxu0 0.0
    %3482 = vmatpush1.msra.mxu0 0.0
    %3483 = vmatprep.subr.mxu0 0.0
    %3484 = vmatpush1.msra.mxu0 0.0
    %3485 = vmatprep.subr.mxu0 0.0
    %3486 = vmatpush1.msra.mxu0 0.0
    %3487 = vmatprep.subr.mxu0 0.0
    %3488 = vmatpush1.msra.mxu0 0.0
    %3489 = vmatprep.subr.mxu0 0.0
    %3490 = vmatpush1.msra.mxu0 0.0
    %3491 = vmatprep.subr.mxu0 0.0
    %3492 = vmatpush1.msra.mxu0 0.0
    %3493 = vmatprep.subr.mxu0 0.0
    %3494 = vmatpush1.msra.mxu0 0.0
    %3495 = vmatprep.subr.mxu0 0.0
    %3496 = vmatpush1.msra.mxu0 0.0
    %3497 = vmatprep.subr.mxu0 0.0
    %3498 = vmatpush1.msra.mxu0 0.0
    %3499 = vmatprep.subr.mxu0 0.0
    %3500 = vmatpush1.msra.mxu0 0.0
    %3501 = vmatprep.subr.mxu0 0.0
    %3502 = vmatpush1.msra.mxu0 0.0
    %3503 = vmatprep.subr.mxu0 0.0
    %3504 = vmatpush1.msra.mxu0 0.0
    %3505 = vmatprep.subr.mxu0 0.0
    %3506 = vmatpush1.msra.mxu0 0.0
    %3507 = vmatprep.subr.mxu0 0.0
    %3508 = vmatpush1.msra.mxu0 0.0
    %3509 = vmatprep.subr.mxu0 0.0
    %3510 = vmatpush1.msra.mxu0 0.0
    %3511 = vmatprep.subr.mxu0 0.0
    %3512 = vmatpush1.msra.mxu0 0.0
    %3513 = vmatprep.subr.mxu0 0.0
    %3514 = vmatpush1.msra.mxu0 0.0
    %3515 = vmatprep.subr.mxu0 0.0
    %3516 = vmatpush1.msra.mxu0 0.0
    %3517 = vmatprep.subr.mxu0 0.0
    %3518 = vmatpush1.msra.mxu0 0.0
    %3519 = vmatprep.subr.mxu0 0.0
    %3520 = vmatpush1.msra.mxu0 0.0
    %3521 = vmatprep.subr.mxu0 0.0
    %3522 = vmatpush1.msra.mxu0 0.0
    %3523 = vmatprep.subr.mxu0 0.0
    %3524 = vmatpush1.msra.mxu0 0.0
    %3525 = vmatprep.subr.mxu0 0.0
    %3526 = vmatpush1.msra.mxu0 0.0
    %3527 = vmatprep.mubr.f32.mxu0 0.0
    %3528 = vmatmul.mubr.f32.gmra.mrb[0].mxu0 %v3461
    %v3529 = vpop.f32.mrb[0].mxu0
    %v3530 = vadd.f32 %v3455, %v3529
    %v3531 = vpop.f32.mrb[0].mxu0
    %3532 = vdwg.mxu0
    %v3533 = vadd.f32 %v3530, %v728
    %3534 = vrot.lane.b32.xlu0 %v3180, 96
    %v3535 = vpop.permute.xlu0 %3534
    %v3537 = vadd.f32 %v3533, %v3535
    %v3538 = vxor.u32 %v3537, 2147483648
    %v3539 = vmul.f32 %v3538, 1.442695
    %v3540 = vpow.pop %v3539
    %v3541 = vadd.f32 %v3540, 1.0
    %v3542 = vrcp.pop %v3541
    %v3543 = vmul.f32 1.0, %v3542
    %3544 = vrot.lane.b32.xlu0 %v3180, 32
    %v3545 = vpop.permute.xlu0 %3544
    %v3547 = vmul.f32 %v3543, %v3545
    %3549 = vrot.lane.b32.xlu0 %v3547, 64
    %v3550 = vpop.permute.xlu0 %3549
    %v3552 = vadd.f32 %v3533, %v3550
    %v3553 = vtanh.pop %v3552
    %v3554 = vsub.f32 1.0, %v3543
    %3556 = vrot.lane.b32.xlu0 %v3553, 96
    %v3557 = vpop.permute.xlu0 %3556
    %v3559 = vmul.f32 %v3554, %v3557
    %v3560 = vmul.f32 %v3543, %v3095
    %v3561 = vadd.f32 %v3559, %v3560
    %v3562 = vpack.c.bf16 %v3561, %v3561
    %3564 = vrot.lane.b32.xlu0 %v3562, 96
    %v3565 = vpop.permute.xlu0 %3564
    %v3567 = vsel %vm120, %v3565, 0
    %3569 = vmatprep.subr.bf16.mxu0 0
    %3570 = vmatpush1.bf16.msra.mxu0 %v765
    %3571 = vmatprep.subr.bf16.mxu0 0
    %3572 = vmatpush1.bf16.msra.mxu0 %v767
    %3573 = vmatprep.subr.bf16.mxu0 0
    %3574 = vmatpush1.bf16.msra.mxu0 0
    %3575 = vmatprep.subr.bf16.mxu0 0
    %3576 = vmatpush1.bf16.msra.mxu0 0
    %3577 = vmatprep.subr.bf16.mxu0 0
    %3578 = vmatpush1.bf16.msra.mxu0 0
    %3579 = vmatprep.subr.bf16.mxu0 0
    %3580 = vmatpush1.bf16.msra.mxu0 0
    %3581 = vmatprep.subr.bf16.mxu0 0
    %3582 = vmatpush1.bf16.msra.mxu0 0
    %3583 = vmatprep.subr.bf16.mxu0 0
    %3584 = vmatpush1.bf16.msra.mxu0 0
    %3585 = vmatprep.subr.bf16.mxu0 0
    %3586 = vmatpush1.bf16.msra.mxu0 0
    %3587 = vmatprep.subr.bf16.mxu0 0
    %3588 = vmatpush1.bf16.msra.mxu0 0
    %3589 = vmatprep.subr.bf16.mxu0 0
    %3590 = vmatpush1.bf16.msra.mxu0 0
    %3591 = vmatprep.subr.bf16.mxu0 0
    %3592 = vmatpush1.bf16.msra.mxu0 0
    %3593 = vmatprep.subr.bf16.mxu0 0
    %3594 = vmatpush1.bf16.msra.mxu0 0
    %3595 = vmatprep.subr.bf16.mxu0 0
    %3596 = vmatpush1.bf16.msra.mxu0 0
    %3597 = vmatprep.subr.bf16.mxu0 0
    %3598 = vmatpush1.bf16.msra.mxu0 0
    %3599 = vmatprep.subr.bf16.mxu0 0
    %3600 = vmatpush1.bf16.msra.mxu0 0
    %3601 = vmatprep.mubr.bf16.mxu0 0
    %3602 = vmatmul.mubr.bf16.gmra.mrb[0].mxu0 %v3567
    %v3603 = vpop.f32.mrb[0].mxu0
    %v3604 = vadd.f32 %v379, %v3603
    %v3605 = vpop.f32.mrb[0].mxu0
    %v3606 = vpop.f32.mrb[0].mxu0
    %v3607 = vpop.f32.mrb[0].mxu0
    %3608 = vdwg.mxu0
    %s3609 = scalar_lea.vmem [#allocation10], 12
    %3610 = vst.msk [vmem:[%s3609] sm:$0x3] %vm813, %v3604
    %3611 = vmatprep.subr.bf16.mxu0 0
    %3612 = vmatpush1.bf16.msra.mxu0 %v284
    %3613 = vmatprep.subr.bf16.mxu0 0
    %3614 = vmatpush1.bf16.msra.mxu0 %v285
    %3615 = vmatprep.subr.bf16.mxu0 0
    %3616 = vmatpush1.bf16.msra.mxu0 0
    %3617 = vmatprep.subr.bf16.mxu0 0
    %3618 = vmatpush1.bf16.msra.mxu0 0
    %3619 = vmatprep.subr.bf16.mxu0 0
    %3620 = vmatpush1.bf16.msra.mxu0 0
    %3621 = vmatprep.subr.bf16.mxu0 0
    %3622 = vmatpush1.bf16.msra.mxu0 0
    %3623 = vmatprep.subr.bf16.mxu0 0
    %3624 = vmatpush1.bf16.msra.mxu0 0
    %3625 = vmatprep.subr.bf16.mxu0 0
    %3626 = vmatpush1.bf16.msra.mxu0 0
    %3627 = vmatprep.subr.bf16.mxu0 0
    %3628 = vmatpush1.bf16.msra.mxu0 0
    %3629 = vmatprep.subr.bf16.mxu0 0
    %3630 = vmatpush1.bf16.msra.mxu0 0
    %3631 = vmatprep.subr.bf16.mxu0 0
    %3632 = vmatpush1.bf16.msra.mxu0 0
    %3633 = vmatprep.subr.bf16.mxu0 0
    %3634 = vmatpush1.bf16.msra.mxu0 0
    %3635 = vmatprep.subr.bf16.mxu0 0
    %3636 = vmatpush1.bf16.msra.mxu0 0
    %3637 = vmatprep.subr.bf16.mxu0 0
    %3638 = vmatpush1.bf16.msra.mxu0 0
    %3639 = vmatprep.subr.bf16.mxu0 0
    %3640 = vmatpush1.bf16.msra.mxu0 0
    %3641 = vmatprep.subr.bf16.mxu0 0
    %3642 = vmatpush1.bf16.msra.mxu0 0
    %3643 = vmatprep.mubr.bf16.mxu0 0
    %3644 = vmatmul.mubr.bf16.gmra.mrb[0].mxu0 %v3567
    %v3645 = vpop.f32.mrb[0].mxu0
    %v3646 = vadd.f32 %v293, %v3645
    %v3647 = vpop.f32.mrb[0].mxu0
    %v3648 = vpop.f32.mrb[0].mxu0
    %v3649 = vpop.f32.mrb[0].mxu0
    %3650 = vdwg.mxu0
    %v3653 = vunpack.c.l.s4 1966171168
    %v3654 = vunpack.c.0.s8 %v3653
    %v3655 = vlaneseq
    %v3656 = vshrl.u32 %v3655, 7
    %v3657 = vsub.s32 %v3654, %v3656
    %v3658 = vrot.slane %v3646, %v3657
    %v3659 = vcombine.high %v3658, %v3658
    %v3661 = vunpack.c.l.s4 1966171168
    %v3662 = vunpack.c.0.s8 %v3661
    %v3663 = vlaneseq
    %v3664 = vshrl.u32 %v3663, 7
    %v3665 = vsub.s32 %v3662, %v3664
    %v3666 = vrot.slane %v3658, %v3665
    %v3668 = vunpack.c.l.s4 1966171168
    %v3669 = vunpack.c.0.s8 %v3668
    %v3670 = vlaneseq
    %v3671 = vshrl.u32 %v3670, 7
    %v3672 = vsub.s32 %v3669, %v3671
    %v3673 = vrot.slane %v3659, %v3672
    %v3674 = vlaneseq
    %v3675 = vshrl.u32 %v3674, 7
    %v3676 = vsub.s32 0, %v3675
    %v3677 = vrot.slane %v3666, %v3676
    %v3678 = vlaneseq
    %v3679 = vshrl.u32 %v3678, 7
    %v3680 = vsub.s32 0, %v3679
    %v3681 = vrot.slane %v3673, %v3680
    %v3684 = vadd.f32 %v171, %v3677
    %v3685 = vadd.f32 %v172, %v3681
    %v3686 = vtanh.pop %v3684
    %v3687 = vtanh.pop %v3685
    %v3688 = vmul.f32 %v3686, %v381
    %v3689 = vmul.f32 %v3687, %v381
    %v3690 = vsel %vm120, %v3688, 0.0
    %3691 = vadd.xlane.f32.xlu0 %v3690
    %v3692 = vpop.xlane.xlu0 %3691
    %v3693 = vsel %vm120, %v3689, 0.0
    %3694 = vadd.xlane.f32.xlu0 %v3693
    %v3695 = vpop.xlane.xlu0 %3694
    %v3698 = vlaneseq
    %v3699 = vshrl.u32 %v3698, 7
    %v3700 = vsub.s32 %v394, %v3699
    %v3701 = vrot.slane %v3692, %v3700
    %v3702 = vlaneseq
    %v3703 = vshrl.u32 %v3702, 7
    %v3704 = vsub.s32 %v394, %v3703
    %v3705 = vrot.slane %v3695, %v3704
    %v3706 = vsel %vm403, %v3705, %v3701
    %v3708 = vsel %vm406, %v3706, -inf
    %3709 = vmax.xlane.f32.xlu0 %v3708
    %v3710 = vpop.xlane.xlu0 %3709
    %v3712 = vlaneseq
    %v3713 = vshrl.u32 %v3712, 7
    %v3714 = vsub.s32 0, %v3713
    %v3715 = vrot.slane %v3710, %v3714
    %v3716 = vlaneseq
    %v3717 = vshrl.u32 %v3716, 7
    %v3718 = vsub.s32 1, %v3717
    %v3719 = vrot.slane %v3710, %v3718
    %v3722 = vsub.f32 %v3692, %v3715
    %v3723 = vsub.f32 %v3695, %v3719
    %v3724 = vmul.f32 %v3722, 1.442695
    %v3725 = vpow.pop %v3724
    %v3726 = vmul.f32 %v3723, 1.442695
    %v3727 = vpow.pop %v3726
    %3730 = vset.pattern.permute.xlu0 0
    %3731 = vperm.xlu0 %3730, %v3725
    %v3732 = vpop.permute.xlu0 %3731
    %3733 = vset.pattern.permute.xlu0 0
    %3734 = vperm.xlu0 %3733, %v3727
    %v3735 = vpop.permute.xlu0 %3734
    %v3736 = vlaneseq
    %v3737 = vshrl.u32 %v3736, 7
    %v3738 = vsub.s32 %v394, %v3737
    %v3739 = vrot.slane %v3732, %v3738
    %v3740 = vlaneseq
    %v3741 = vshrl.u32 %v3740, 7
    %v3742 = vsub.s32 %v394, %v3741
    %v3743 = vrot.slane %v3735, %v3742
    %v3744 = vsel %vm403, %v3743, %v3739
    %v3746 = vsel %vm406, %v3744, 0.0
    %3747 = vadd.xlane.f32.xlu0 %v3746
    %v3748 = vpop.xlane.xlu0 %3747
    %v3750 = vlaneseq
    %v3751 = vshrl.u32 %v3750, 7
    %v3752 = vsub.s32 0, %v3751
    %v3753 = vrot.slane %v3748, %v3752
    %v3754 = vlaneseq
    %v3755 = vshrl.u32 %v3754, 7
    %v3756 = vsub.s32 1, %v3755
    %v3757 = vrot.slane %v3748, %v3756
    %v3760 = vrcp.pop %v3753
    %v3761 = vmul.f32 %v3725, %v3760
    %v3762 = vrcp.pop %v3757
    %v3763 = vmul.f32 %v3727, %v3762
    %v3764 = vpack.c.bf16 %v3761, %v3761
    %v3765 = vpack.c.bf16 %v3763, %v3763
    %v3767 = vunpack.c.l.b16 %v3764
    %3768 = vset.pattern.permute.xlu0 0
    %3769 = vperm.xlu0 %3768, %v3767
    %v3770 = vpop.permute.xlu0 %3769
    %v3771 = vlaneseq
    %v3772 = vshrl.u32 %v3771, 7
    %v3773 = vsub.s32 %v394, %v3772
    %v3774 = vrot.slane %v3770, %v3773
    %v3775 = vpack.c.b16 %v3774, %v3774
    %v3777 = vsel %vm475, %v3775, 0
    %3779 = vmatprep.subr.bf16.mxu0 0
    %3780 = vmatpush1.bf16.msra.mxu0 %v481
    %3781 = vmatprep.subr.bf16.mxu0 0
    %3782 = vmatpush1.bf16.msra.mxu0 0
    %3783 = vmatprep.subr.bf16.mxu0 0
    %3784 = vmatpush1.bf16.msra.mxu0 0
    %3785 = vmatprep.subr.bf16.mxu0 0
    %3786 = vmatpush1.bf16.msra.mxu0 0
    %3787 = vmatprep.subr.bf16.mxu0 0
    %3788 = vmatpush1.bf16.msra.mxu0 0
    %3789 = vmatprep.subr.bf16.mxu0 0
    %3790 = vmatpush1.bf16.msra.mxu0 0
    %3791 = vmatprep.subr.bf16.mxu0 0
    %3792 = vmatpush1.bf16.msra.mxu0 0
    %3793 = vmatprep.subr.bf16.mxu0 0
    %3794 = vmatpush1.bf16.msra.mxu0 0
    %3795 = vmatprep.subr.bf16.mxu0 0
    %3796 = vmatpush1.bf16.msra.mxu0 0
    %3797 = vmatprep.subr.bf16.mxu0 0
    %3798 = vmatpush1.bf16.msra.mxu0 0
    %3799 = vmatprep.subr.bf16.mxu0 0
    %3800 = vmatpush1.bf16.msra.mxu0 0
    %3801 = vmatprep.subr.bf16.mxu0 0
    %3802 = vmatpush1.bf16.msra.mxu0 0
    %3803 = vmatprep.subr.bf16.mxu0 0
    %3804 = vmatpush1.bf16.msra.mxu0 0
    %3805 = vmatprep.subr.bf16.mxu0 0
    %3806 = vmatpush1.bf16.msra.mxu0 0
    %3807 = vmatprep.subr.bf16.mxu0 0
    %3808 = vmatpush1.bf16.msra.mxu0 0
    %3809 = vmatprep.subr.bf16.mxu0 0
    %3810 = vmatpush1.bf16.msra.mxu0 0
    %3811 = vmatprep.mubr.bf16.mxu0 0
    %3812 = vmatmul.mubr.bf16.gmra.mrb[0].mxu0 %v3777
    %v3813 = vpop.f32.mrb[0].mxu0
    %v3814 = vadd.f32 0.0, %v3813
    %v3815 = vpop.f32.mrb[0].mxu0
    %v3816 = vpop.f32.mrb[0].mxu0
    %v3817 = vpop.f32.mrb[0].mxu0
    %3818 = vdwg.mxu0
    %v3820 = vunpack.c.l.b16 %v3765
    %3821 = vset.pattern.permute.xlu0 0
    %3822 = vperm.xlu0 %3821, %v3820
    %v3823 = vpop.permute.xlu0 %3822
    %v3824 = vlaneseq
    %v3825 = vshrl.u32 %v3824, 7
    %v3826 = vsub.s32 %v394, %v3825
    %v3827 = vrot.slane %v3823, %v3826
    %v3828 = vpack.c.b16 %v3827, %v3827
    %v3830 = vsel %vm475, %v3828, 0
    %3832 = vmatprep.subr.bf16.mxu0 0
    %3833 = vmatpush1.bf16.msra.mxu0 %v537
    %3834 = vmatprep.subr.bf16.mxu0 0
    %3835 = vmatpush1.bf16.msra.mxu0 0
    %3836 = vmatprep.subr.bf16.mxu0 0
    %3837 = vmatpush1.bf16.msra.mxu0 0
    %3838 = vmatprep.subr.bf16.mxu0 0
    %3839 = vmatpush1.bf16.msra.mxu0 0
    %3840 = vmatprep.subr.bf16.mxu0 0
    %3841 = vmatpush1.bf16.msra.mxu0 0
    %3842 = vmatprep.subr.bf16.mxu0 0
    %3843 = vmatpush1.bf16.msra.mxu0 0
    %3844 = vmatprep.subr.bf16.mxu0 0
    %3845 = vmatpush1.bf16.msra.mxu0 0
    %3846 = vmatprep.subr.bf16.mxu0 0
    %3847 = vmatpush1.bf16.msra.mxu0 0
    %3848 = vmatprep.subr.bf16.mxu0 0
    %3849 = vmatpush1.bf16.msra.mxu0 0
    %3850 = vmatprep.subr.bf16.mxu0 0
    %3851 = vmatpush1.bf16.msra.mxu0 0
    %3852 = vmatprep.subr.bf16.mxu0 0
    %3853 = vmatpush1.bf16.msra.mxu0 0
    %3854 = vmatprep.subr.bf16.mxu0 0
    %3855 = vmatpush1.bf16.msra.mxu0 0
    %3856 = vmatprep.subr.bf16.mxu0 0
    %3857 = vmatpush1.bf16.msra.mxu0 0
    %3858 = vmatprep.subr.bf16.mxu0 0
    %3859 = vmatpush1.bf16.msra.mxu0 0
    %3860 = vmatprep.subr.bf16.mxu0 0
    %3861 = vmatpush1.bf16.msra.mxu0 0
    %3862 = vmatprep.subr.bf16.mxu0 0
    %3863 = vmatpush1.bf16.msra.mxu0 0
    %3864 = vmatprep.mubr.bf16.mxu0 0
    %3865 = vmatmul.mubr.bf16.gmra.mrb[0].mxu0 %v3830
    %v3866 = vpop.f32.mrb[0].mxu0
    %v3867 = vadd.f32 0.0, %v3866
    %v3868 = vpop.f32.mrb[0].mxu0
    %v3869 = vpop.f32.mrb[0].mxu0
    %v3870 = vpop.f32.mrb[0].mxu0
    %3871 = vdwg.mxu0
    %s3872 = scalar_lea.vmem [#allocation5], 14
    %v3873 = vld [vmem:[%s3872] sm:$0x3]
    %v3874 = vpack.c.bf16 %v3814, %v3814
    %v3875 = vpack.c.bf16 %v3867, %v3867
    %v3878 = vunpack.c.l.b16 %v3874
    %v3879 = vunpack.c.l.b16 %v3875
    %v3880 = vrot.slane %v3879, 7
    %v3881 = vsel %vm403, %v3880, %v3878
    %v3882 = vpack.c.b16 %v3881, %v3881
    %v3884 = vsel %vm120, %v3882, 0
    %3886 = vmatprep.subr.bf16.mxu0 0
    %3887 = vmatpush1.bf16.msra.mxu0 %v597
    %3888 = vmatprep.subr.bf16.mxu0 0
    %3889 = vmatpush1.bf16.msra.mxu0 %v598
    %3890 = vmatprep.subr.bf16.mxu0 0
    %3891 = vmatpush1.bf16.msra.mxu0 0
    %3892 = vmatprep.subr.bf16.mxu0 0
    %3893 = vmatpush1.bf16.msra.mxu0 0
    %3894 = vmatprep.subr.bf16.mxu0 0
    %3895 = vmatpush1.bf16.msra.mxu0 0
    %3896 = vmatprep.subr.bf16.mxu0 0
    %3897 = vmatpush1.bf16.msra.mxu0 0
    %3898 = vmatprep.subr.bf16.mxu0 0
    %3899 = vmatpush1.bf16.msra.mxu0 0
    %3900 = vmatprep.subr.bf16.mxu0 0
    %3901 = vmatpush1.bf16.msra.mxu0 0
    %3902 = vmatprep.subr.bf16.mxu0 0
    %3903 = vmatpush1.bf16.msra.mxu0 0
    %3904 = vmatprep.subr.bf16.mxu0 0
    %3905 = vmatpush1.bf16.msra.mxu0 0
    %3906 = vmatprep.subr.bf16.mxu0 0
    %3907 = vmatpush1.bf16.msra.mxu0 0
    %3908 = vmatprep.subr.bf16.mxu0 0
    %3909 = vmatpush1.bf16.msra.mxu0 0
    %3910 = vmatprep.subr.bf16.mxu0 0
    %3911 = vmatpush1.bf16.msra.mxu0 0
    %3912 = vmatprep.subr.bf16.mxu0 0
    %3913 = vmatpush1.bf16.msra.mxu0 0
    %3914 = vmatprep.subr.bf16.mxu0 0
    %3915 = vmatpush1.bf16.msra.mxu0 0
    %3916 = vmatprep.subr.bf16.mxu0 0
    %3917 = vmatpush1.bf16.msra.mxu0 0
    %3918 = vmatprep.mubr.bf16.mxu0 0
    %3919 = vmatmul.mubr.bf16.gmra.mrb[0].mxu0 %v3884
    %v3920 = vpop.f32.mrb[0].mxu0
    %v3921 = vadd.f32 0.0, %v3920
    %v3922 = vpop.f32.mrb[0].mxu0
    %v3923 = vpop.f32.mrb[0].mxu0
    %v3924 = vpop.f32.mrb[0].mxu0
    %3925 = vdwg.mxu0
    %v3927 = vsel %vm644, %v3873, 0
    %3929 = vmatprep.subr.mxu0 0.0
    %3930 = vmatpush1.msra.mxu0 %v254
    %3931 = vmatprep.subr.mxu0 0.0
    %3932 = vmatpush1.msra.mxu0 %v257
    %3933 = vmatprep.subr.mxu0 0.0
    %3934 = vmatpush1.msra.mxu0 %v650
    %3935 = vmatprep.subr.mxu0 0.0
    %3936 = vmatpush1.msra.mxu0 0.0
    %3937 = vmatprep.subr.mxu0 0.0
    %3938 = vmatpush1.msra.mxu0 0.0
    %3939 = vmatprep.subr.mxu0 0.0
    %3940 = vmatpush1.msra.mxu0 0.0
    %3941 = vmatprep.subr.mxu0 0.0
    %3942 = vmatpush1.msra.mxu0 0.0
    %3943 = vmatprep.subr.mxu0 0.0
    %3944 = vmatpush1.msra.mxu0 0.0
    %3945 = vmatprep.subr.mxu0 0.0
    %3946 = vmatpush1.msra.mxu0 0.0
    %3947 = vmatprep.subr.mxu0 0.0
    %3948 = vmatpush1.msra.mxu0 0.0
    %3949 = vmatprep.subr.mxu0 0.0
    %3950 = vmatpush1.msra.mxu0 0.0
    %3951 = vmatprep.subr.mxu0 0.0
    %3952 = vmatpush1.msra.mxu0 0.0
    %3953 = vmatprep.subr.mxu0 0.0
    %3954 = vmatpush1.msra.mxu0 0.0
    %3955 = vmatprep.subr.mxu0 0.0
    %3956 = vmatpush1.msra.mxu0 0.0
    %3957 = vmatprep.subr.mxu0 0.0
    %3958 = vmatpush1.msra.mxu0 0.0
    %3959 = vmatprep.subr.mxu0 0.0
    %3960 = vmatpush1.msra.mxu0 0.0
    %3961 = vmatprep.subr.mxu0 0.0
    %3962 = vmatpush1.msra.mxu0 0.0
    %3963 = vmatprep.subr.mxu0 0.0
    %3964 = vmatpush1.msra.mxu0 0.0
    %3965 = vmatprep.subr.mxu0 0.0
    %3966 = vmatpush1.msra.mxu0 0.0
    %3967 = vmatprep.subr.mxu0 0.0
    %3968 = vmatpush1.msra.mxu0 0.0
    %3969 = vmatprep.subr.mxu0 0.0
    %3970 = vmatpush1.msra.mxu0 0.0
    %3971 = vmatprep.subr.mxu0 0.0
    %3972 = vmatpush1.msra.mxu0 0.0
    %3973 = vmatprep.subr.mxu0 0.0
    %3974 = vmatpush1.msra.mxu0 0.0
    %3975 = vmatprep.subr.mxu0 0.0
    %3976 = vmatpush1.msra.mxu0 0.0
    %3977 = vmatprep.subr.mxu0 0.0
    %3978 = vmatpush1.msra.mxu0 0.0
    %3979 = vmatprep.subr.mxu0 0.0
    %3980 = vmatpush1.msra.mxu0 0.0
    %3981 = vmatprep.subr.mxu0 0.0
    %3982 = vmatpush1.msra.mxu0 0.0
    %3983 = vmatprep.subr.mxu0 0.0
    %3984 = vmatpush1.msra.mxu0 0.0
    %3985 = vmatprep.subr.mxu0 0.0
    %3986 = vmatpush1.msra.mxu0 0.0
    %3987 = vmatprep.subr.mxu0 0.0
    %3988 = vmatpush1.msra.mxu0 0.0
    %3989 = vmatprep.subr.mxu0 0.0
    %3990 = vmatpush1.msra.mxu0 0.0
    %3991 = vmatprep.subr.mxu0 0.0
    %3992 = vmatpush1.msra.mxu0 0.0
    %3993 = vmatprep.mubr.f32.mxu0 0.0
    %3994 = vmatmul.mubr.f32.gmra.mrb[0].mxu0 %v3927
    %v3995 = vpop.f32.mrb[0].mxu0
    %v3996 = vadd.f32 %v3921, %v3995
    %v3997 = vpop.f32.mrb[0].mxu0
    %3998 = vdwg.mxu0
    %v3999 = vadd.f32 %v3996, %v728
    %4000 = vrot.lane.b32.xlu0 %v3646, 96
    %v4001 = vpop.permute.xlu0 %4000
    %v4003 = vadd.f32 %v3999, %v4001
    %v4004 = vxor.u32 %v4003, 2147483648
    %v4005 = vmul.f32 %v4004, 1.442695
    %v4006 = vpow.pop %v4005
    %v4007 = vadd.f32 %v4006, 1.0
    %v4008 = vrcp.pop %v4007
    %v4009 = vmul.f32 1.0, %v4008
    %4010 = vrot.lane.b32.xlu0 %v3646, 32
    %v4011 = vpop.permute.xlu0 %4010
    %v4013 = vmul.f32 %v4009, %v4011
    %4015 = vrot.lane.b32.xlu0 %v4013, 64
    %v4016 = vpop.permute.xlu0 %4015
    %v4018 = vadd.f32 %v3999, %v4016
    %v4019 = vtanh.pop %v4018
    %v4020 = vsub.f32 1.0, %v4009
    %4022 = vrot.lane.b32.xlu0 %v4019, 96
    %v4023 = vpop.permute.xlu0 %4022
    %v4025 = vmul.f32 %v4020, %v4023
    %v4026 = vmul.f32 %v4009, %v3561
    %v4027 = vadd.f32 %v4025, %v4026
    %v4028 = vpack.c.bf16 %v4027, %v4027
    %4030 = vrot.lane.b32.xlu0 %v4028, 96
    %v4031 = vpop.permute.xlu0 %4030
    %v4033 = vsel %vm120, %v4031, 0
    %4035 = vmatprep.subr.bf16.mxu0 0
    %4036 = vmatpush1.bf16.msra.mxu0 %v765
    %4037 = vmatprep.subr.bf16.mxu0 0
    %4038 = vmatpush1.bf16.msra.mxu0 %v767
    %4039 = vmatprep.subr.bf16.mxu0 0
    %4040 = vmatpush1.bf16.msra.mxu0 0
    %4041 = vmatprep.subr.bf16.mxu0 0
    %4042 = vmatpush1.bf16.msra.mxu0 0
    %4043 = vmatprep.subr.bf16.mxu0 0
    %4044 = vmatpush1.bf16.msra.mxu0 0
    %4045 = vmatprep.subr.bf16.mxu0 0
    %4046 = vmatpush1.bf16.msra.mxu0 0
    %4047 = vmatprep.subr.bf16.mxu0 0
    %4048 = vmatpush1.bf16.msra.mxu0 0
    %4049 = vmatprep.subr.bf16.mxu0 0
    %4050 = vmatpush1.bf16.msra.mxu0 0
    %4051 = vmatprep.subr.bf16.mxu0 0
    %4052 = vmatpush1.bf16.msra.mxu0 0
    %4053 = vmatprep.subr.bf16.mxu0 0
    %4054 = vmatpush1.bf16.msra.mxu0 0
    %4055 = vmatprep.subr.bf16.mxu0 0
    %4056 = vmatpush1.bf16.msra.mxu0 0
    %4057 = vmatprep.subr.bf16.mxu0 0
    %4058 = vmatpush1.bf16.msra.mxu0 0
    %4059 = vmatprep.subr.bf16.mxu0 0
    %4060 = vmatpush1.bf16.msra.mxu0 0
    %4061 = vmatprep.subr.bf16.mxu0 0
    %4062 = vmatpush1.bf16.msra.mxu0 0
    %4063 = vmatprep.subr.bf16.mxu0 0
    %4064 = vmatpush1.bf16.msra.mxu0 0
    %4065 = vmatprep.subr.bf16.mxu0 0
    %4066 = vmatpush1.bf16.msra.mxu0 0
    %4067 = vmatprep.mubr.bf16.mxu0 0
    %4068 = vmatmul.mubr.bf16.gmra.mrb[0].mxu0 %v4033
    %v4069 = vpop.f32.mrb[0].mxu0
    %v4070 = vadd.f32 %v379, %v4069
    %v4071 = vpop.f32.mrb[0].mxu0
    %v4072 = vpop.f32.mrb[0].mxu0
    %v4073 = vpop.f32.mrb[0].mxu0
    %4074 = vdwg.mxu0
    %s4075 = scalar_lea.vmem [#allocation10], 14
    %4076 = vst.msk [vmem:[%s4075] sm:$0x3] %vm813, %v4070
    // Predicated region
    $region38: #{tpu_custom_call.1} parent=1 // pred_check
      _
    $region39: #{tpu_custom_call.1} parent=1 // pred_check_branch
      %4078 = sbr.rel (0) target = $region41
    $region40: #{tpu_custom_call.1} parent=1 // pred_region
      %s4080 = ssub.s32 256, 256
      %4081 = vsyncadd [#allocation4], %s4080
      %s4082 = sshll.u32 [#allocation10], 4
      %s4083 = int_to_ptr.vmem [resolvable:$true] %s4082
      %4088 = dma.vmem_to_hbm [thread:$0]  %s4083, 256, %s5, [#allocation4], 32, 32, 2
    $region41: #{tpu_custom_call.1} parent=1 // pred_fallthru
      _
    // Predicated region
    $region42: #{tpu_custom_call.1} parent=1 // pred_check
      _
    $region43: #{tpu_custom_call.1} parent=1 // pred_check_branch
      %4090 = sbr.rel (0) target = $region45
    $region44: #{tpu_custom_call.1} parent=1 // pred_region
      %4091 = dma.done [#allocation4], 256
    $region45: #{tpu_custom_call.1} parent=1 // pred_fallthru
      _
    %4092 = vsyncpa [#allocation3], 1
    %4093 = vsyncpa [#allocation6], 1
    %4094 = vsyncpa [#allocation9], 1
    %4095 = vsyncpa [#allocation4], 1

</llo_original>
